<compile_context>
chip_gen: v6e
topology: v6e:2x2x1
jax: 0.10.0
libtpu: 0.0.40
codegen_flags: <defaults>
</compile_context>

<pallas_src>
import functools

import jax
import jax.numpy as jnp
from jax import lax
from jax.experimental import pallas as pl
from jax.experimental.pallas import tpu as pltpu


LANE = 128  # lane width / MXU-friendly multiple


def _round_up(n, m):
    return ((n + m - 1) // m) * m


def mlp_kernel(x_ref,
               w1_ref, b1_ref,
               w2_ref, b2_ref,
               w3_ref, b3_ref,
               w4_ref, b4_ref,
               o_ref):
    """All four matmuls + ReLUs fused; f32 operands, f32 accumulation."""
    hi = lax.Precision.HIGHEST  # MXU is idle at these shapes; exact f32 is free.

    h = jnp.dot(x_ref[...], w1_ref[...],
                preferred_element_type=jnp.float32, precision=hi) + b1_ref[...]
    h = jnp.maximum(h, 0.0)

    h = jnp.dot(h, w2_ref[...],
                preferred_element_type=jnp.float32, precision=hi) + b2_ref[...]
    h = jnp.maximum(h, 0.0)

    h = jnp.dot(h, w3_ref[...],
                preferred_element_type=jnp.float32, precision=hi) + b3_ref[...]
    h = jnp.maximum(h, 0.0)

    h = jnp.dot(h, w4_ref[...],
                preferred_element_type=jnp.float32, precision=hi) + b4_ref[...]
    o_ref[...] = h.astype(o_ref.dtype)


def prepare_params(params):
    """One-time prep: transpose to (in, out) and zero-pad output dims to 128.

    Layer 1 keeps its true in_features so the activation x needs no K padding.
    Returns a pytree of arrays only (safe to pass through jax.jit).
    """
    layers = []
    prev_true = params["w1"].shape[1]   # true input feature count
    prev_pad = prev_true                # layer-1 K kept unpadded
    for i in (1, 2, 3, 4):
        w = params[f"w{i}"]             # PyTorch layout: (out_features, in_features)
        b = params[f"b{i}"]             # (out_features,)
        out_f, in_f = w.shape
        assert in_f == prev_true, "layer dimension mismatch"
        out_p = _round_up(out_f, LANE)

        wt = jnp.zeros((prev_pad, out_p), jnp.float32)
        wt = wt.at[:in_f, :out_f].set(w.T.astype(jnp.float32))

        bp = jnp.zeros((1, out_p), jnp.float32)
        bp = bp.at[:, :out_f].set(b.astype(jnp.float32))

        layers.append((wt, bp))
        prev_true, prev_pad = out_f, out_p
    return tuple(layers)


def mlp_forward(x, layers, *, num_classes, tm=128):
    """x: (B, input_size) f32. layers: prepared (W, b) pairs.

    Returns (B, num_classes) f32.
    """
    B, K = x.shape
    (w1, b1), (w2, b2), (w3, b3), (w4, b4) = layers
    Cp = w4.shape[1]                    # padded class dim (lane-dense stores)

    # Batch tile: multiple of 8 sublanes; tm=128 gives a grid of 2 for B=200
    # (one tile per TensorCore on v7x, negligible extra step on v5e/v6e).
    tm = _round_up(max(8, min(tm, B)), 8)
    grid = (pl.cdiv(B, tm),)            # partial last block -> masked store

    def full(arr):
        return pl.BlockSpec(arr.shape, lambda i: (0, 0))

    flops = 2 * B * sum(w.shape[0] * w.shape[1]
                        for (w, _) in (layers[0], layers[1], layers[2], layers[3]))
    bytes_accessed = (x.size * x.dtype.itemsize
                      + sum(w.size * w.dtype.itemsize + b.size * b.dtype.itemsize
                            for (w, b) in layers)
                      + B * Cp * 4)

    out_padded = pl.pallas_call(
        mlp_kernel,
        out_shape=jax.ShapeDtypeStruct((B, Cp), jnp.float32),
        grid_spec=pltpu.PrefetchScalarGridSpec(
            num_scalar_prefetch=0,
            grid=grid,
            in_specs=[
                pl.BlockSpec((tm, K), lambda i: (i, 0)),   # x tile over batch
                full(w1), full(b1),
                full(w2), full(b2),
                full(w3), full(b3),
                full(w4), full(b4),
            ],
            out_specs=pl.BlockSpec((tm, Cp), lambda i: (i, 0)),
        ),
        compiler_params=pltpu.CompilerParams(
            dimension_semantics=("parallel",)),
        cost_estimate=pl.CostEstimate(
            flops=flops, transcendentals=0, bytes_accessed=bytes_accessed),
    )(x, w1, b1, w2, b2, w3, b3, w4, b4)

    # Only the (tiny) class-column padding is sliced away in the wrapper.
    return out_padded[:, :num_classes]


def init_params(key, input_size, h1, h2, h3, num_classes):
    # Deterministic init mimicking PyTorch nn.Linear default: U(-1/sqrt(fan_in), ...)
    ks = jax.random.split(key, 8)

    def lin(kw, kb, fan_in, fan_out):
        bound = 1.0 / jnp.sqrt(fan_in)
        w = jax.random.uniform(kw, (fan_out, fan_in), jnp.float32, -bound, bound)
        b = jax.random.uniform(kb, (fan_out,), jnp.float32, -bound, bound)
        return w, b

    w1, b1 = lin(ks[0], ks[1], input_size, h1)
    w2, b2 = lin(ks[2], ks[3], h1, h2)
    w3, b3 = lin(ks[4], ks[5], h2, h3)
    w4, b4 = lin(ks[6], ks[7], h3, num_classes)
    return dict(w1=w1, b1=b1, w2=w2, b2=b2, w3=w3, b3=b3, w4=w4, b4=b4)


def reference_forward(x, p):
    hi = lax.Precision.HIGHEST
    h = jnp.maximum(jnp.dot(x, p["w1"].T, precision=hi) + p["b1"], 0.0)
    h = jnp.maximum(jnp.dot(h, p["w2"].T, precision=hi) + p["b2"], 0.0)
    h = jnp.maximum(jnp.dot(h, p["w3"].T, precision=hi) + p["b3"], 0.0)
    return jnp.dot(h, p["w4"].T, precision=hi) + p["b4"]


if __name__ == "__main__":
    # Small shapes consistent with the module (deliberately non-128-aligned to
    # exercise the padding / ragged-last-block paths): batch=200, input=100,
    # hiddens=128/120/128, classes=10.
    batch, input_size = 200, 100
    h1, h2, h3 = 128, 120, 128
    num_classes = 10

    key = jax.random.PRNGKey(0)
    kx, kp = jax.random.split(key)
    x = jax.random.normal(kx, (batch, input_size), jnp.float32)
    params = init_params(kp, input_size, h1, h2, h3, num_classes)

    # One-time weight prep (transpose + pad) outside the hot path.
    layers = prepare_params(params)

    fwd = jax.jit(functools.partial(mlp_forward, num_classes=num_classes, tm=128))
    out = jax.block_until_ready(fwd(x, layers))

    ref = reference_forward(x, params)
    assert out.shape == (batch, num_classes)
    # f32 operands + HIGHEST-precision dots -> near-exact agreement.
    rel_err = jnp.max(jnp.abs(out - ref)) / (jnp.max(jnp.abs(ref)) + 1e-6)
    assert rel_err < 1e-3, f"mismatch vs reference, rel_err={rel_err}"

    print("KERNEL_OK")
</pallas_src>

<mosaic_0001>
module attributes {stable_mosaic.version = 11 : i64} {
  func.func @mlp_kernel(%arg0: i32, %arg1: memref<128x100xf32, #tpu.memory_space<vmem>>, %arg2: memref<100x128xf32, #tpu.memory_space<vmem>>, %arg3: memref<1x128xf32, #tpu.memory_space<vmem>>, %arg4: memref<128x128xf32, #tpu.memory_space<vmem>>, %arg5: memref<1x128xf32, #tpu.memory_space<vmem>>, %arg6: memref<128x128xf32, #tpu.memory_space<vmem>>, %arg7: memref<1x128xf32, #tpu.memory_space<vmem>>, %arg8: memref<128x128xf32, #tpu.memory_space<vmem>>, %arg9: memref<1x128xf32, #tpu.memory_space<vmem>>, %arg10: memref<128x128xf32, #tpu.memory_space<vmem>>) attributes {dimension_semantics = [#tpu.dimension_semantics<parallel>], iteration_bounds = array<i64: 2>, scalar_prefetch = 0 : i64, scratch_operands = 0 : i64, tpu.core_type = #tpu.core_type<tc>, window_params = [{transform_indices = @transform_0, window_bounds = array<i64: 128, 100>}, {pipeline_mode = #tpu.pipeline_mode<synchronous>, transform_indices = @transform_1, window_bounds = array<i64: 100, 128>}, {pipeline_mode = #tpu.pipeline_mode<synchronous>, transform_indices = @transform_2, window_bounds = array<i64: 1, 128>}, {pipeline_mode = #tpu.pipeline_mode<synchronous>, transform_indices = @transform_3, window_bounds = array<i64: 128, 128>}, {pipeline_mode = #tpu.pipeline_mode<synchronous>, transform_indices = @transform_4, window_bounds = array<i64: 1, 128>}, {pipeline_mode = #tpu.pipeline_mode<synchronous>, transform_indices = @transform_5, window_bounds = array<i64: 128, 128>}, {pipeline_mode = #tpu.pipeline_mode<synchronous>, transform_indices = @transform_6, window_bounds = array<i64: 1, 128>}, {pipeline_mode = #tpu.pipeline_mode<synchronous>, transform_indices = @transform_7, window_bounds = array<i64: 128, 128>}, {pipeline_mode = #tpu.pipeline_mode<synchronous>, transform_indices = @transform_8, window_bounds = array<i64: 1, 128>}, {transform_indices = @transform_9, window_bounds = array<i64: 128, 128>}]} {
    %c0 = arith.constant 0 : index
    %c0_0 = arith.constant 0 : index
    %0 = vector.load %arg1[%c0, %c0_0] : memref<128x100xf32, #tpu.memory_space<vmem>>, vector<128x100xf32>
    %c0_1 = arith.constant 0 : index
    %c0_2 = arith.constant 0 : index
    %1 = vector.load %arg2[%c0_1, %c0_2] : memref<100x128xf32, #tpu.memory_space<vmem>>, vector<100x128xf32>
    %cst = arith.constant dense<0.000000e+00> : vector<128x128xf32>
    %2 = tpu.matmul %0, %1, %cst {dimension_numbers = #tpu.dot_dimension_numbers<[1], [0], [0], [1], [0, 0, 1, 1], [], []>, precision = #tpu.contract_precision<fp32>} : vector<128x100xf32>, vector<100x128xf32>, vector<128x128xf32> -> vector<128x128xf32>
    %c0_3 = arith.constant 0 : index
    %c0_4 = arith.constant 0 : index
    %3 = vector.load %arg3[%c0_3, %c0_4] : memref<1x128xf32, #tpu.memory_space<vmem>>, vector<1x128xf32>
    %4 = vector.broadcast %3 : vector<1x128xf32> to vector<128x128xf32>
    %5 = arith.addf %2, %4 : vector<128x128xf32>
    %cst_5 = arith.constant 0.000000e+00 : f32
    %6 = vector.broadcast %cst_5 : f32 to vector<128x128xf32>
    %7 = arith.maximumf %5, %6 : vector<128x128xf32>
    %c0_6 = arith.constant 0 : index
    %c0_7 = arith.constant 0 : index
    %8 = vector.load %arg4[%c0_6, %c0_7] : memref<128x128xf32, #tpu.memory_space<vmem>>, vector<128x128xf32>
    %cst_8 = arith.constant dense<0.000000e+00> : vector<128x128xf32>
    %9 = tpu.matmul %7, %8, %cst_8 {dimension_numbers = #tpu.dot_dimension_numbers<[1], [0], [0], [1], [0, 0, 1, 1], [], []>, precision = #tpu.contract_precision<fp32>} : vector<128x128xf32>, vector<128x128xf32>, vector<128x128xf32> -> vector<128x128xf32>
    %c0_9 = arith.constant 0 : index
    %c0_10 = arith.constant 0 : index
    %10 = vector.load %arg5[%c0_9, %c0_10] : memref<1x128xf32, #tpu.memory_space<vmem>>, vector<1x128xf32>
    %11 = vector.broadcast %10 : vector<1x128xf32> to vector<128x128xf32>
    %12 = arith.addf %9, %11 : vector<128x128xf32>
    %cst_11 = arith.constant 0.000000e+00 : f32
    %13 = vector.broadcast %cst_11 : f32 to vector<128x128xf32>
    %14 = arith.maximumf %12, %13 : vector<128x128xf32>
    %c0_12 = arith.constant 0 : index
    %c0_13 = arith.constant 0 : index
    %15 = vector.load %arg6[%c0_12, %c0_13] : memref<128x128xf32, #tpu.memory_space<vmem>>, vector<128x128xf32>
    %cst_14 = arith.constant dense<0.000000e+00> : vector<128x128xf32>
    %16 = tpu.matmul %14, %15, %cst_14 {dimension_numbers = #tpu.dot_dimension_numbers<[1], [0], [0], [1], [0, 0, 1, 1], [], []>, precision = #tpu.contract_precision<fp32>} : vector<128x128xf32>, vector<128x128xf32>, vector<128x128xf32> -> vector<128x128xf32>
    %c0_15 = arith.constant 0 : index
    %c0_16 = arith.constant 0 : index
    %17 = vector.load %arg7[%c0_15, %c0_16] : memref<1x128xf32, #tpu.memory_space<vmem>>, vector<1x128xf32>
    %18 = vector.broadcast %17 : vector<1x128xf32> to vector<128x128xf32>
    %19 = arith.addf %16, %18 : vector<128x128xf32>
    %cst_17 = arith.constant 0.000000e+00 : f32
    %20 = vector.broadcast %cst_17 : f32 to vector<128x128xf32>
    %21 = arith.maximumf %19, %20 : vector<128x128xf32>
    %c0_18 = arith.constant 0 : index
    %c0_19 = arith.constant 0 : index
    %22 = vector.load %arg8[%c0_18, %c0_19] : memref<128x128xf32, #tpu.memory_space<vmem>>, vector<128x128xf32>
    %cst_20 = arith.constant dense<0.000000e+00> : vector<128x128xf32>
    %23 = tpu.matmul %21, %22, %cst_20 {dimension_numbers = #tpu.dot_dimension_numbers<[1], [0], [0], [1], [0, 0, 1, 1], [], []>, precision = #tpu.contract_precision<fp32>} : vector<128x128xf32>, vector<128x128xf32>, vector<128x128xf32> -> vector<128x128xf32>
    %c0_21 = arith.constant 0 : index
    %c0_22 = arith.constant 0 : index
    %24 = vector.load %arg9[%c0_21, %c0_22] : memref<1x128xf32, #tpu.memory_space<vmem>>, vector<1x128xf32>
    %25 = vector.broadcast %24 : vector<1x128xf32> to vector<128x128xf32>
    %26 = arith.addf %23, %25 : vector<128x128xf32>
    %c0_23 = arith.constant 0 : index
    %c0_24 = arith.constant 0 : index
    %27 = vector.load %arg10[%c0_23, %c0_24] : memref<128x128xf32, #tpu.memory_space<vmem>>, vector<128x128xf32>
    tpu.vector_store %arg10[%c0_23, %c0_24], %26 {strides = array<i32>} : memref<128x128xf32, #tpu.memory_space<vmem>>, vector<128x128xf32>,
    return
  }
  func.func @transform_0(%arg0: i32) -> (i32, i32) {
    %c0_i32 = arith.constant 0 : i32
    %c0_i32_0 = arith.constant 0 : i32
    return %arg0, %c0_i32 : i32, i32
  }
  func.func @transform_1(%arg0: i32) -> (i32, i32) {
    %c0_i32 = arith.constant 0 : i32
    %c0_i32_0 = arith.constant 0 : i32
    %c0_i32_1 = arith.constant 0 : i32
    return %c0_i32, %c0_i32_0 : i32, i32
  }
  func.func @transform_2(%arg0: i32) -> (i32, i32) {
    %c0_i32 = arith.constant 0 : i32
    %c0_i32_0 = arith.constant 0 : i32
    %c0_i32_1 = arith.constant 0 : i32
    return %c0_i32, %c0_i32_0 : i32, i32
  }
  func.func @transform_3(%arg0: i32) -> (i32, i32) {
    %c0_i32 = arith.constant 0 : i32
    %c0_i32_0 = arith.constant 0 : i32
    %c0_i32_1 = arith.constant 0 : i32
    return %c0_i32, %c0_i32_0 : i32, i32
  }
  func.func @transform_4(%arg0: i32) -> (i32, i32) {
    %c0_i32 = arith.constant 0 : i32
    %c0_i32_0 = arith.constant 0 : i32
    %c0_i32_1 = arith.constant 0 : i32
    return %c0_i32, %c0_i32_0 : i32, i32
  }
  func.func @transform_5(%arg0: i32) -> (i32, i32) {
    %c0_i32 = arith.constant 0 : i32
    %c0_i32_0 = arith.constant 0 : i32
    %c0_i32_1 = arith.constant 0 : i32
    return %c0_i32, %c0_i32_0 : i32, i32
  }
  func.func @transform_6(%arg0: i32) -> (i32, i32) {
    %c0_i32 = arith.constant 0 : i32
    %c0_i32_0 = arith.constant 0 : i32
    %c0_i32_1 = arith.constant 0 : i32
    return %c0_i32, %c0_i32_0 : i32, i32
  }
  func.func @transform_7(%arg0: i32) -> (i32, i32) {
    %c0_i32 = arith.constant 0 : i32
    %c0_i32_0 = arith.constant 0 : i32
    %c0_i32_1 = arith.constant 0 : i32
    return %c0_i32, %c0_i32_0 : i32, i32
  }
  func.func @transform_8(%arg0: i32) -> (i32, i32) {
    %c0_i32 = arith.constant 0 : i32
    %c0_i32_0 = arith.constant 0 : i32
    %c0_i32_1 = arith.constant 0 : i32
    return %c0_i32, %c0_i32_0 : i32, i32
  }
  func.func @transform_9(%arg0: i32) -> (i32, i32) {
    %c0_i32 = arith.constant 0 : i32
    %c0_i32_0 = arith.constant 0 : i32
    return %arg0, %c0_i32 : i32, i32
  }
}

</mosaic_0001>

<llo_original>
// kernel: mlp_forward.1
$region0: #{mlp_forward.1}
  #allocation0 [shape = 'u32[]', space=smem, size = 0x4, offset = 0x4, fixed_abs, tag = 'smem constant byte address 0x4 - core index']
  #allocation1 [shape = 'u32[144,128]{1,0:T(1,128)}', space=vmem, size = 0x12000, scoped, tag = 'internal scratch']
  %s0 = inlined_call_operand.hbm [shape: f32[200,100], index: 0, kind: input, shape index: {}]
  %s1 = inlined_call_operand.hbm [shape: f32[100,128], index: 1, kind: input, shape index: {}]
  %s2 = inlined_call_operand.vmem [shape: f32[1,128], index: 2, kind: input, shape index: {}]
  %s3 = inlined_call_operand.hbm [shape: f32[128,128], index: 3, kind: input, shape index: {}]
  %s4 = inlined_call_operand.vmem [shape: f32[1,128], index: 4, kind: input, shape index: {}]
  %s5 = inlined_call_operand.hbm [shape: f32[128,128], index: 5, kind: input, shape index: {}]
  %s6 = inlined_call_operand.vmem [shape: f32[1,128], index: 6, kind: input, shape index: {}]
  %s7 = inlined_call_operand.hbm [shape: f32[128,128], index: 7, kind: input, shape index: {}]
  %s8 = inlined_call_operand.vmem [shape: f32[1,128], index: 8, kind: input, shape index: {}]
  %s9 = inlined_call_operand.vmem [shape: f32[200,128], index: 9, kind: output, shape index: {}]
  %s10 = sld [smem:[#allocation0]]
  $region137: #{mlp_forward.1} parent=0
    _
  %s12 = ssub.s32 1, %s10
  %s13 = scalar_select 0, %s12, %s10
  $region1: #{mlp_forward.1} parent=0
    #allocation2 [shape = 'u8[131072]{0}', space=vmem, size = 0x20000, scoped, tag = 'input window, operand 0']
    #allocation3 [shape = 's32[2]{0}', space=sflag, size = 0x8, scoped, tag = 'scoped memory for mlp_forward.1']
    #allocation4 [shape = 'u8[53248]{0}', space=vmem, size = 0xd000, scoped, tag = 'input window, operand 1, single buffered']
    #allocation5 [shape = 's32[1]{0}', space=sflag, size = 0x4, scoped, tag = 'scoped memory for mlp_forward.1']
    #allocation6 [shape = 'u8[65536]{0}', space=vmem, size = 0x10000, scoped, tag = 'input window, operand 3, single buffered']
    #allocation7 [shape = 'u8[65536]{0}', space=vmem, size = 0x10000, scoped, tag = 'input window, operand 5, single buffered']
    #allocation8 [shape = 's32[1]{0}', space=sflag, size = 0x4, scoped, tag = 'scoped memory for mlp_forward.1']
    #allocation9 [shape = 'u8[65536]{0}', space=vmem, size = 0x10000, scoped, tag = 'input window, operand 7, single buffered']
    #allocation10 [shape = 'u8[131072]{0}', space=vmem, size = 0x20000, scoped, tag = 'output window, operand 0']
    %14 = vsyncpa [#allocation3], 0
    %s15 = scalar_lea.sflag [#allocation3], 1
    %16 = vsyncpa %s15, 0
    %17 = vsyncpa [#allocation5], 0
    %18 = vsyncpa [#allocation8], 0
    loop: start=0, step=1, limit=4
    $region2: #{mlp_forward.1} parent=1 // loop_pre_header
      _
    $region3: #{mlp_forward.1} parent=1 // loop_header
      %s20 = sphi 0, %s24
      %p21 = scmp.ge.s32.totalorder %s20, 4
      %s30 = sphi 0, %s32
      %s33 = sphi 0, %s30
      %s34 = sphi 0, %s33
      %s50 = sphi 0, %s34
      %s54 = sphi 0, %s54
      %s56 = sphi 0, %s54
      %s57 = sphi 0, %s56
      %s71 = sphi 0, %s57
      %s75 = sphi 0, %s75
      %s77 = sphi 0, %s75
      %s78 = sphi 0, %s77
      %s92 = sphi 0, %s78
      %s96 = sphi 0, %s96
      %s98 = sphi 0, %s96
      %s99 = sphi 0, %s98
      %s113 = sphi 0, %s99
      %s117 = sphi 0, %s117
      %s119 = sphi 0, %s117
      %s120 = sphi 0, %s119
      %s134 = sphi 0, %s120
      %s138 = sphi 0, %s138
      %s140 = sphi 0, %s138
      %s141 = sphi 0, %s140
      %s155 = sphi 0, %s141
      %s159 = sphi 0, %s159
      %s161 = sphi 0, %s159
      %s162 = sphi 0, %s161
      %s176 = sphi 0, %s162
      %s180 = sphi 0, %s180
      %s182 = sphi 0, %s180
      %s183 = sphi 0, %s182
      %s197 = sphi 0, %s183
      %s201 = sphi 0, %s201
      %s203 = sphi 0, %s201
      %s204 = sphi 0, %s203
      %s218 = sphi 0, %s204
      %s224 = sphi 0, %s226
      %s227 = sphi 0, %s224
      %s228 = sphi 0, %s227
      %s244 = sphi 0, %s228
    $region4: #{mlp_forward.1} parent=1 // loop_header_branch
      %23 = sbr.rel (%p21) target = $region8
    $region5: #{mlp_forward.1} parent=1 // loop_body
      %s25 = ssub.s32 %s20, 1
      %s26 = ssub.s32 %s20, 2
      %s27 = sadd.s32 %s20, 1
      %s28 = ssub.s32 %s20, %s27
      %p29 = scmp.eq.s32.totalorder %s28, 0
      %s31 = sadd.s32 %s30, 1
      %s32 = scalar_select %p29, %s30, %s31
      %p35 = pneg %p29
      %p36 = scmp.eq.s32.totalorder %s20, 1
      %p37 = por %p35, %p36
      %p38 = scmp.ne.s32.totalorder %s30, %s33
      %p39 = scmp.eq.s32.totalorder %s20, 0
      %p40 = por %p38, %p39
      %p41 = scmp.ne.s32.totalorder %s30, %s33
      %p42 = scmp.eq.s32.totalorder %s25, 1
      %p43 = por %p41, %p42
      %p44 = scmp.ne.s32.totalorder %s33, %s34
      %p45 = scmp.eq.s32.totalorder %s25, 0
      %p46 = por %p44, %p45
      %p47 = scmp.ne.s32.totalorder %s33, %s34
      %p48 = scmp.eq.s32.totalorder %s26, 1
      %p49 = por %p47, %p48
      %p51 = scmp.ne.s32.totalorder %s34, %s50
      %p52 = scmp.eq.s32.totalorder %s26, 0
      %p53 = por %p51, %p52
      %s55 = sadd.s32 %s54, 1
      %p58 = scmp.eq.s32.totalorder %s20, 1
      %p59 = scmp.ne.s32.totalorder %s54, %s56
      %p60 = scmp.eq.s32.totalorder %s20, 0
      %p61 = por %p59, %p60
      %p62 = scmp.ne.s32.totalorder %s54, %s56
      %p63 = scmp.eq.s32.totalorder %s25, 1
      %p64 = por %p62, %p63
      %p65 = scmp.ne.s32.totalorder %s56, %s57
      %p66 = scmp.eq.s32.totalorder %s25, 0
      %p67 = por %p65, %p66
      %p68 = scmp.ne.s32.totalorder %s56, %s57
      %p69 = scmp.eq.s32.totalorder %s26, 1
      %p70 = por %p68, %p69
      %p72 = scmp.ne.s32.totalorder %s57, %s71
      %p73 = scmp.eq.s32.totalorder %s26, 0
      %p74 = por %p72, %p73
      %s76 = sadd.s32 %s75, 1
      %p79 = scmp.eq.s32.totalorder %s20, 1
      %p80 = scmp.ne.s32.totalorder %s75, %s77
      %p81 = scmp.eq.s32.totalorder %s20, 0
      %p82 = por %p80, %p81
      %p83 = scmp.ne.s32.totalorder %s75, %s77
      %p84 = scmp.eq.s32.totalorder %s25, 1
      %p85 = por %p83, %p84
      %p86 = scmp.ne.s32.totalorder %s77, %s78
      %p87 = scmp.eq.s32.totalorder %s25, 0
      %p88 = por %p86, %p87
      %p89 = scmp.ne.s32.totalorder %s77, %s78
      %p90 = scmp.eq.s32.totalorder %s26, 1
      %p91 = por %p89, %p90
      %p93 = scmp.ne.s32.totalorder %s78, %s92
      %p94 = scmp.eq.s32.totalorder %s26, 0
      %p95 = por %p93, %p94
      %s97 = sadd.s32 %s96, 1
      %p100 = scmp.eq.s32.totalorder %s20, 1
      %p101 = scmp.ne.s32.totalorder %s96, %s98
      %p102 = scmp.eq.s32.totalorder %s20, 0
      %p103 = por %p101, %p102
      %p104 = scmp.ne.s32.totalorder %s96, %s98
      %p105 = scmp.eq.s32.totalorder %s25, 1
      %p106 = por %p104, %p105
      %p107 = scmp.ne.s32.totalorder %s98, %s99
      %p108 = scmp.eq.s32.totalorder %s25, 0
      %p109 = por %p107, %p108
      %p110 = scmp.ne.s32.totalorder %s98, %s99
      %p111 = scmp.eq.s32.totalorder %s26, 1
      %p112 = por %p110, %p111
      %p114 = scmp.ne.s32.totalorder %s99, %s113
      %p115 = scmp.eq.s32.totalorder %s26, 0
      %p116 = por %p114, %p115
      %s118 = sadd.s32 %s117, 1
      %p121 = scmp.eq.s32.totalorder %s20, 1
      %p122 = scmp.ne.s32.totalorder %s117, %s119
      %p123 = scmp.eq.s32.totalorder %s20, 0
      %p124 = por %p122, %p123
      %p125 = scmp.ne.s32.totalorder %s117, %s119
      %p126 = scmp.eq.s32.totalorder %s25, 1
      %p127 = por %p125, %p126
      %p128 = scmp.ne.s32.totalorder %s119, %s120
      %p129 = scmp.eq.s32.totalorder %s25, 0
      %p130 = por %p128, %p129
      %p131 = scmp.ne.s32.totalorder %s119, %s120
      %p132 = scmp.eq.s32.totalorder %s26, 1
      %p133 = por %p131, %p132
      %p135 = scmp.ne.s32.totalorder %s120, %s134
      %p136 = scmp.eq.s32.totalorder %s26, 0
      %p137 = por %p135, %p136
      %s139 = sadd.s32 %s138, 1
      %p142 = scmp.eq.s32.totalorder %s20, 1
      %p143 = scmp.ne.s32.totalorder %s138, %s140
      %p144 = scmp.eq.s32.totalorder %s20, 0
      %p145 = por %p143, %p144
      %p146 = scmp.ne.s32.totalorder %s138, %s140
      %p147 = scmp.eq.s32.totalorder %s25, 1
      %p148 = por %p146, %p147
      %p149 = scmp.ne.s32.totalorder %s140, %s141
      %p150 = scmp.eq.s32.totalorder %s25, 0
      %p151 = por %p149, %p150
      %p152 = scmp.ne.s32.totalorder %s140, %s141
      %p153 = scmp.eq.s32.totalorder %s26, 1
      %p154 = por %p152, %p153
      %p156 = scmp.ne.s32.totalorder %s141, %s155
      %p157 = scmp.eq.s32.totalorder %s26, 0
      %p158 = por %p156, %p157
      %s160 = sadd.s32 %s159, 1
      %p163 = scmp.eq.s32.totalorder %s20, 1
      %p164 = scmp.ne.s32.totalorder %s159, %s161
      %p165 = scmp.eq.s32.totalorder %s20, 0
      %p166 = por %p164, %p165
      %p167 = scmp.ne.s32.totalorder %s159, %s161
      %p168 = scmp.eq.s32.totalorder %s25, 1
      %p169 = por %p167, %p168
      %p170 = scmp.ne.s32.totalorder %s161, %s162
      %p171 = scmp.eq.s32.totalorder %s25, 0
      %p172 = por %p170, %p171
      %p173 = scmp.ne.s32.totalorder %s161, %s162
      %p174 = scmp.eq.s32.totalorder %s26, 1
      %p175 = por %p173, %p174
      %p177 = scmp.ne.s32.totalorder %s162, %s176
      %p178 = scmp.eq.s32.totalorder %s26, 0
      %p179 = por %p177, %p178
      %s181 = sadd.s32 %s180, 1
      %p184 = scmp.eq.s32.totalorder %s20, 1
      %p185 = scmp.ne.s32.totalorder %s180, %s182
      %p186 = scmp.eq.s32.totalorder %s20, 0
      %p187 = por %p185, %p186
      %p188 = scmp.ne.s32.totalorder %s180, %s182
      %p189 = scmp.eq.s32.totalorder %s25, 1
      %p190 = por %p188, %p189
      %p191 = scmp.ne.s32.totalorder %s182, %s183
      %p192 = scmp.eq.s32.totalorder %s25, 0
      %p193 = por %p191, %p192
      %p194 = scmp.ne.s32.totalorder %s182, %s183
      %p195 = scmp.eq.s32.totalorder %s26, 1
      %p196 = por %p194, %p195
      %p198 = scmp.ne.s32.totalorder %s183, %s197
      %p199 = scmp.eq.s32.totalorder %s26, 0
      %p200 = por %p198, %p199
      %s202 = sadd.s32 %s201, 1
      %p205 = scmp.eq.s32.totalorder %s20, 1
      %p206 = scmp.ne.s32.totalorder %s201, %s203
      %p207 = scmp.eq.s32.totalorder %s20, 0
      %p208 = por %p206, %p207
      %p209 = scmp.ne.s32.totalorder %s201, %s203
      %p210 = scmp.eq.s32.totalorder %s25, 1
      %p211 = por %p209, %p210
      %p212 = scmp.ne.s32.totalorder %s203, %s204
      %p213 = scmp.eq.s32.totalorder %s25, 0
      %p214 = por %p212, %p213
      %p215 = scmp.ne.s32.totalorder %s203, %s204
      %p216 = scmp.eq.s32.totalorder %s26, 1
      %p217 = por %p215, %p216
      %p219 = scmp.ne.s32.totalorder %s204, %s218
      %p220 = scmp.eq.s32.totalorder %s26, 0
      %p221 = por %p219, %p220
      %s222 = ssub.s32 %s20, %s27
      %p223 = scmp.eq.s32.totalorder %s222, 0
      %s225 = sadd.s32 %s224, 1
      %s226 = scalar_select %p223, %s224, %s225
      %p229 = pneg %p223
      %p230 = scmp.eq.s32.totalorder %s20, 1
      %p231 = por %p229, %p230
      %p232 = scmp.ne.s32.totalorder %s224, %s227
      %p233 = scmp.eq.s32.totalorder %s20, 0
      %p234 = por %p232, %p233
      %p235 = scmp.ne.s32.totalorder %s224, %s227
      %p236 = scmp.eq.s32.totalorder %s25, 1
      %p237 = por %p235, %p236
      %p238 = scmp.ne.s32.totalorder %s227, %s228
      %p239 = scmp.eq.s32.totalorder %s25, 0
      %p240 = por %p238, %p239
      %p241 = scmp.ne.s32.totalorder %s227, %s228
      %p242 = scmp.eq.s32.totalorder %s26, 1
      %p243 = por %p241, %p242
      %p245 = scmp.ne.s32.totalorder %s228, %s244
      %p246 = scmp.eq.s32.totalorder %s26, 0
      %p247 = por %p245, %p246
      %p248 = scmp.le.s32.totalorder 1, %s20
      %p249 = scmp.lt.s32.totalorder %s20, 3
      %p250 = pnand %p248, %p249
      %p251 = pneg %p250
      // Predicated region
      $region9: #{mlp_forward.1} parent=5 // pred_check
        _
      $region10: #{mlp_forward.1} parent=5 // pred_check_branch
        %253 = sbr.rel (%p250) target = $region12
      $region11: #{mlp_forward.1} parent=5 // pred_region
        %s254 = ssub.s32 %s20, 1
        // Predicated region
        $region13: #{mlp_forward.1} parent=11 // pred_check
          %p255 = pneg %p67
        $region14: #{mlp_forward.1} parent=11 // pred_check_branch
          %257 = sbr.rel (%p255) target = $region16
        $region15: #{mlp_forward.1} parent=11 // pred_region
          %s259 = ssub.s32 1664, 1664
          %260 = vsyncadd [#allocation5], %s259
          %s261 = sshll.u32 [#allocation4], 4
          %s262 = int_to_ptr.vmem [resolvable:$true] %s261
          %267 = dma.hbm_to_vmem [thread:$0]  %s1, 1664, %s262, [#allocation5], 128, 128, 8
        $region16: #{mlp_forward.1} parent=11 // pred_fallthru
          _
        // Predicated region
        $region17: #{mlp_forward.1} parent=11 // pred_check
          %p268 = pneg %p88
        $region18: #{mlp_forward.1} parent=11 // pred_check_branch
          %270 = sbr.rel (%p268) target = $region20
        $region19: #{mlp_forward.1} parent=11 // pred_region
          _
        $region20: #{mlp_forward.1} parent=11 // pred_fallthru
          _
        // Predicated region
        $region21: #{mlp_forward.1} parent=11 // pred_check
          %p271 = pneg %p109
        $region22: #{mlp_forward.1} parent=11 // pred_check_branch
          %273 = sbr.rel (%p271) target = $region24
        $region23: #{mlp_forward.1} parent=11 // pred_region
          %s275 = ssub.s32 2048, 2048
          %276 = vsyncadd [#allocation5], %s275
          %s277 = sshll.u32 [#allocation6], 4
          %s278 = int_to_ptr.vmem [resolvable:$true] %s277
          %283 = dma.hbm_to_vmem [thread:$0]  %s3, 2048, %s278, [#allocation5], 128, 128, 8
        $region24: #{mlp_forward.1} parent=11 // pred_fallthru
          _
        // Predicated region
        $region25: #{mlp_forward.1} parent=11 // pred_check
          %p284 = pneg %p130
        $region26: #{mlp_forward.1} parent=11 // pred_check_branch
          %286 = sbr.rel (%p284) target = $region28
        $region27: #{mlp_forward.1} parent=11 // pred_region
          _
        $region28: #{mlp_forward.1} parent=11 // pred_fallthru
          _
        // Predicated region
        $region29: #{mlp_forward.1} parent=11 // pred_check
          %p287 = pneg %p151
        $region30: #{mlp_forward.1} parent=11 // pred_check_branch
          %289 = sbr.rel (%p287) target = $region32
        $region31: #{mlp_forward.1} parent=11 // pred_region
          %s291 = ssub.s32 2048, 2048
          %292 = vsyncadd [#allocation8], %s291
          %s293 = sshll.u32 [#allocation7], 4
          %s294 = int_to_ptr.vmem [resolvable:$true] %s293
          %299 = dma.hbm_to_vmem [thread:$0]  %s5, 2048, %s294, [#allocation8], 128, 128, 8
        $region32: #{mlp_forward.1} parent=11 // pred_fallthru
          _
        // Predicated region
        $region33: #{mlp_forward.1} parent=11 // pred_check
          %p300 = pneg %p172
        $region34: #{mlp_forward.1} parent=11 // pred_check_branch
          %302 = sbr.rel (%p300) target = $region36
        $region35: #{mlp_forward.1} parent=11 // pred_region
          _
        $region36: #{mlp_forward.1} parent=11 // pred_fallthru
          _
        // Predicated region
        $region37: #{mlp_forward.1} parent=11 // pred_check
          %p303 = pneg %p193
        $region38: #{mlp_forward.1} parent=11 // pred_check_branch
          %305 = sbr.rel (%p303) target = $region40
        $region39: #{mlp_forward.1} parent=11 // pred_region
          %s307 = ssub.s32 2048, 2048
          %308 = vsyncadd [#allocation8], %s307
          %s309 = sshll.u32 [#allocation9], 4
          %s310 = int_to_ptr.vmem [resolvable:$true] %s309
          %315 = dma.hbm_to_vmem [thread:$0]  %s7, 2048, %s310, [#allocation8], 128, 128, 8
        $region40: #{mlp_forward.1} parent=11 // pred_fallthru
          _
        // Predicated region
        $region41: #{mlp_forward.1} parent=11 // pred_check
          %p316 = pneg %p214
        $region42: #{mlp_forward.1} parent=11 // pred_check_branch
          %318 = sbr.rel (%p316) target = $region44
        $region43: #{mlp_forward.1} parent=11 // pred_region
          _
        $region44: #{mlp_forward.1} parent=11 // pred_fallthru
          _
      $region12: #{mlp_forward.1} parent=5 // pred_fallthru
        _
      %p319 = scmp.lt.s32.totalorder %s20, 2
      // Predicated region
      $region45: #{mlp_forward.1} parent=5 // pred_check
        %p320 = pneg %p319
      $region46: #{mlp_forward.1} parent=5 // pred_check_branch
        %322 = sbr.rel (%p320) target = $region48
      $region47: #{mlp_forward.1} parent=5 // pred_region
        // Predicated region
        $region49: #{mlp_forward.1} parent=47 // pred_check
          %p323 = pneg %p40
        $region50: #{mlp_forward.1} parent=47 // pred_check_branch
          %325 = sbr.rel (%p323) target = $region52
        $region51: #{mlp_forward.1} parent=47 // pred_region
          %s326 = sand.u32 %s30, 1
          %s327 = scalar_lea.sflag [#allocation3], %s326
          %s328 = sand.u32 %s30, 1
          %s329 = smul.addr %s328, 128
          %s330 = scalar_lea.vmem [#allocation2], %s329
          %s331 = smul.u32 16, %s20
          %s332 = ssub.s32 25, %s331
          %p333 = scmp.lt.s32.totalorder %s332, 16
          %s334 = scalar_select %p333, %s332, 16
          %s335 = smul.u32 128, %s334
          %s337 = ssub.s32 2048, %s335
          %338 = vsyncadd %s327, %s337
          %p339 = scmp.ne.s32.totalorder 0, %s335
          %s340 = smul.addr %s331, 128
          %s341 = scalar_lea.hbm %s0, %s340
          %s342 = smul.u32 8, %s334
          %s343 = sshll.u32 %s330, 4
          %s344 = int_to_ptr.vmem [resolvable:$true] %s343
          %s345 = sshll.u32 %s342, 4
          %349 = dma.hbm_to_vmem [thread:$0]  (%p339), %s341, %s345, %s344, %s327, 128, 128, 8
        $region52: #{mlp_forward.1} parent=47 // pred_fallthru
          _
      $region48: #{mlp_forward.1} parent=5 // pred_fallthru
        _
      %p350 = scmp.le.s32.totalorder 1, %s20
      %p351 = scmp.lt.s32.totalorder %s20, 3
      %p352 = pnand %p350, %p351
      %p353 = pneg %p352
      // Predicated region
      $region53: #{mlp_forward.1} parent=5 // pred_check
        _
      $region54: #{mlp_forward.1} parent=5 // pred_check_branch
        %355 = sbr.rel (%p352) target = $region56
      $region55: #{mlp_forward.1} parent=5 // pred_region
        %s356 = ssub.s32 %s20, 1
        %s357 = sand.u32 %s33, 1
        %s358 = scalar_lea.sflag [#allocation3], %s357
        %s359 = sand.u32 %s33, 1
        %s360 = smul.addr %s359, 128
        %s361 = scalar_lea.vmem [#allocation2], %s360
        // Predicated region
        $region57: #{mlp_forward.1} parent=55 // pred_check
          %p362 = pneg %p46
        $region58: #{mlp_forward.1} parent=55 // pred_check_branch
          %364 = sbr.rel (%p362) target = $region60
        $region59: #{mlp_forward.1} parent=55 // pred_region
          %365 = dma.done %s358, 2048
        $region60: #{mlp_forward.1} parent=55 // pred_fallthru
          _
        // Predicated region
        $region61: #{mlp_forward.1} parent=55 // pred_check
          %p366 = pneg %p67
        $region62: #{mlp_forward.1} parent=55 // pred_check_branch
          %368 = sbr.rel (%p366) target = $region64
        $region63: #{mlp_forward.1} parent=55 // pred_region
          %369 = dma.done [#allocation5], 1664
        $region64: #{mlp_forward.1} parent=55 // pred_fallthru
          _
        // Predicated region
        $region65: #{mlp_forward.1} parent=55 // pred_check
          %p370 = pneg %p109
        $region66: #{mlp_forward.1} parent=55 // pred_check_branch
          %372 = sbr.rel (%p370) target = $region68
        $region67: #{mlp_forward.1} parent=55 // pred_region
          %373 = dma.done [#allocation5], 2048
        $region68: #{mlp_forward.1} parent=55 // pred_fallthru
          _
        // Predicated region
        $region69: #{mlp_forward.1} parent=55 // pred_check
          %p374 = pneg %p151
        $region70: #{mlp_forward.1} parent=55 // pred_check_branch
          %376 = sbr.rel (%p374) target = $region72
        $region71: #{mlp_forward.1} parent=55 // pred_region
          %377 = dma.done [#allocation8], 2048
        $region72: #{mlp_forward.1} parent=55 // pred_fallthru
          _
        // Predicated region
        $region73: #{mlp_forward.1} parent=55 // pred_check
          %p378 = pneg %p193
        $region74: #{mlp_forward.1} parent=55 // pred_check_branch
          %380 = sbr.rel (%p378) target = $region76
        $region75: #{mlp_forward.1} parent=55 // pred_region
          %381 = dma.done [#allocation8], 2048
        $region76: #{mlp_forward.1} parent=55 // pred_fallthru
          _
        %s382 = sand.u32 %s33, 1
        %s383 = scalar_lea.sflag [#allocation3], %s382
        %s384 = sand.u32 %s33, 1
        %s385 = smul.addr %s384, 128
        %s386 = scalar_lea.vmem [#allocation2], %s385
        %p387 = pneg %p46
        %p388 = pneg %p43
        %p389 = pneg %p67
        %p390 = pneg %p64
        %p391 = pneg %p88
        %p392 = pneg %p85
        %p393 = pneg %p109
        %p394 = pneg %p106
        %p395 = pneg %p130
        %p396 = pneg %p127
        %p397 = pneg %p151
        %p398 = pneg %p148
        %p399 = pneg %p172
        %p400 = pneg %p169
        %p401 = pneg %p193
        %p402 = pneg %p190
        %p403 = pneg %p214
        %p404 = pneg %p211
        %p405 = pneg %p240
        %p406 = pneg %p237
        %s407 = sand.u32 %s227, 1
        %s408 = sand.u32 %s227, 1
        %s409 = smul.addr %s408, 128
        %s410 = scalar_lea.vmem [#allocation10], %s409
        %s411 = smul.u32 16, %s25
        %s412 = ssub.s32 25, %s411
        %p413 = scmp.lt.s32.totalorder %s412, 16
        %s414 = scalar_select %p413, %s412, 16
        %s415 = smul.u32 128, %s414
        %s416 = smul.u32 16, %s25
        %s417 = ssub.s32 25, %s416
        %p418 = scmp.lt.s32.totalorder %s417, 16
        %s419 = scalar_select %p418, %s417, 16
        %s420 = smul.u32 128, %s419
        %v421 = vld [vmem:[%s361] sm:$0xff]
        %v422 = vld [vmem:[%s361 + $0x8] sm:$0xff]
        %v423 = vld [vmem:[%s361 + $0x10] sm:$0xff]
        %v424 = vld [vmem:[%s361 + $0x18] sm:$0xff]
        %v425 = vld [vmem:[%s361 + $0x20] sm:$0xff]
        %v426 = vld [vmem:[%s361 + $0x28] sm:$0xff]
        %v427 = vld [vmem:[%s361 + $0x30] sm:$0xff]
        %v428 = vld [vmem:[%s361 + $0x38] sm:$0xff]
        %v429 = vld [vmem:[%s361 + $0x40] sm:$0xff]
        %v430 = vld [vmem:[%s361 + $0x48] sm:$0xff]
        %v431 = vld [vmem:[%s361 + $0x50] sm:$0xff]
        %v432 = vld [vmem:[%s361 + $0x58] sm:$0xff]
        %v433 = vld [vmem:[%s361 + $0x60] sm:$0xff]
        %v434 = vld [vmem:[%s361 + $0x68] sm:$0xff]
        %v435 = vld [vmem:[%s361 + $0x70] sm:$0xff]
        %v436 = vld [vmem:[%s361 + $0x78] sm:$0xff]
        %v437 = vld [vmem:[#allocation4] sm:$0xff]
        %v438 = vld [vmem:[#allocation4 + $0x8] sm:$0xff]
        %v439 = vld [vmem:[#allocation4 + $0x10] sm:$0xff]
        %v440 = vld [vmem:[#allocation4 + $0x18] sm:$0xff]
        %v441 = vld [vmem:[#allocation4 + $0x20] sm:$0xff]
        %v442 = vld [vmem:[#allocation4 + $0x28] sm:$0xff]
        %v443 = vld [vmem:[#allocation4 + $0x30] sm:$0xff]
        %v444 = vld [vmem:[#allocation4 + $0x38] sm:$0xff]
        %v445 = vld [vmem:[#allocation4 + $0x40] sm:$0xff]
        %v446 = vld [vmem:[#allocation4 + $0x48] sm:$0xff]
        %v447 = vld [vmem:[#allocation4 + $0x50] sm:$0xff]
        %v448 = vld [vmem:[#allocation4 + $0x58] sm:$0xff]
        %v449 = vld [vmem:[#allocation4 + $0x60] sm:$0xf]
        %v450 = vld [vmem:[%s2] sm:$0x1]
        %v452 = vlaneseq
        %v453 = vshrl.u32 %v452, 7
        %v454 = vsub.s32 0, %v453
        %v455 = vrot.slane %v450, %v454
        %vm457 = vcmask 818176
        %v459 = vsel %vm457, %v421, 0
        %v462 = vsel %vm457, %v422, 0
        %v465 = vsel %vm457, %v423, 0
        %v468 = vsel %vm457, %v424, 0
        %v471 = vsel %vm457, %v425, 0
        %v474 = vsel %vm457, %v426, 0
        %v477 = vsel %vm457, %v427, 0
        %v480 = vsel %vm457, %v428, 0
        %v483 = vsel %vm457, %v429, 0
        %v486 = vsel %vm457, %v430, 0
        %v489 = vsel %vm457, %v431, 0
        %v492 = vsel %vm457, %v432, 0
        %v495 = vsel %vm457, %v433, 0
        %v498 = vsel %vm457, %v434, 0
        %v501 = vsel %vm457, %v435, 0
        %v504 = vsel %vm457, %v436, 0
        %vm506 = vcmask 1043456
        %v508 = vsel %vm506, %v449, 0
        %510 = vmatprep.subr.mxu0 0.0
        %511 = vmatpush1.msra.mxu0 0.0
        %512 = vmatprep.subr.mxu0 0.0
        %513 = vmatpush1.msra.mxu0 0.0
        %514 = vmatprep.subr.mxu0 0.0
        %515 = vmatpush1.msra.mxu0 0.0
        %516 = vmatprep.subr.mxu0 0.0
        %v517 = vand.u32 %v508, 4294901760
        %518 = vmatpush1.msra.mxu0 %v517
        %519 = vmatprep.subr.mxu0 0.0
        %v520 = vand.u32 %v448, 4294901760
        %521 = vmatpush1.msra.mxu0 %v520
        %522 = vmatprep.subr.mxu0 0.0
        %v523 = vand.u32 %v447, 4294901760
        %524 = vmatpush1.msra.mxu0 %v523
        %525 = vmatprep.subr.mxu0 0.0
        %v526 = vand.u32 %v446, 4294901760
        %527 = vmatpush1.msra.mxu0 %v526
        %528 = vmatprep.subr.mxu0 0.0
        %v529 = vand.u32 %v445, 4294901760
        %530 = vmatpush1.msra.mxu0 %v529
        %531 = vmatprep.subr.mxu0 0.0
        %v532 = vand.u32 %v444, 4294901760
        %533 = vmatpush1.msra.mxu0 %v532
        %534 = vmatprep.subr.mxu0 0.0
        %v535 = vand.u32 %v443, 4294901760
        %536 = vmatpush1.msra.mxu0 %v535
        %537 = vmatprep.subr.mxu0 0.0
        %v538 = vand.u32 %v442, 4294901760
        %539 = vmatpush1.msra.mxu0 %v538
        %540 = vmatprep.subr.mxu0 0.0
        %v541 = vand.u32 %v441, 4294901760
        %542 = vmatpush1.msra.mxu0 %v541
        %543 = vmatprep.subr.mxu0 0.0
        %v544 = vand.u32 %v440, 4294901760
        %545 = vmatpush1.msra.mxu0 %v544
        %546 = vmatprep.subr.mxu0 0.0
        %v547 = vand.u32 %v439, 4294901760
        %548 = vmatpush1.msra.mxu0 %v547
        %549 = vmatprep.subr.mxu0 0.0
        %v550 = vand.u32 %v438, 4294901760
        %551 = vmatpush1.msra.mxu0 %v550
        %552 = vmatprep.subr.mxu0 0.0
        %v553 = vand.u32 %v437, 4294901760
        %554 = vmatpush1.msra.mxu0 %v553
        %555 = vmatprep.subr.mxu0 0.0
        %556 = vmatpush2.msra.mxu0 0.0
        %557 = vmatprep.subr.mxu0 0.0
        %558 = vmatpush2.msra.mxu0 0.0
        %559 = vmatprep.subr.mxu0 0.0
        %560 = vmatpush2.msra.mxu0 0.0
        %561 = vmatprep.subr.mxu0 0.0
        %562 = vmatpush2.msra.mxu0 0.0
        %563 = vmatprep.subr.mxu0 0.0
        %564 = vmatpush2.msra.mxu0 0.0
        %565 = vmatprep.subr.mxu0 0.0
        %566 = vmatpush2.msra.mxu0 0.0
        %567 = vmatprep.subr.mxu0 0.0
        %568 = vmatpush2.msra.mxu0 0.0
        %569 = vmatprep.subr.mxu0 0.0
        %570 = vmatpush2.msra.mxu0 0.0
        %571 = vmatprep.subr.mxu0 0.0
        %572 = vmatpush2.msra.mxu0 0.0
        %573 = vmatprep.subr.mxu0 0.0
        %574 = vmatpush2.msra.mxu0 0.0
        %575 = vmatprep.subr.mxu0 0.0
        %576 = vmatpush2.msra.mxu0 0.0
        %577 = vmatprep.subr.mxu0 0.0
        %578 = vmatpush2.msra.mxu0 0.0
        %579 = vmatprep.subr.mxu0 0.0
        %580 = vmatpush2.msra.mxu0 0.0
        %581 = vmatprep.subr.mxu0 0.0
        %582 = vmatpush2.msra.mxu0 0.0
        %583 = vmatprep.subr.mxu0 0.0
        %584 = vmatpush2.msra.mxu0 0.0
        %585 = vmatprep.subr.mxu0 0.0
        %586 = vmatpush2.msra.mxu0 0.0
        %587 = vmatprep.mubr.f32.mxu0 0.0
        %v588 = vand.u32 %v459, 4294901760
        %v589 = vsub.f32 %v459, %v588
        %v590 = vand.u32 %v589, 4294901760
        %v591 = vsub.f32 %v589, %v590
        %v592 = vand.u32 %v591, 4294901760
        %593 = vmatmul.mubr.f32.gmra.mxu0 %v592
        %v594 = vpop.f32.mrf.mxu0
        %v595 = vadd.f32 %v455, %v594
        %v596 = vpop.f32.mrf.mxu0
        %597 = vmatprep.mubr.f32.mxu0 0.0
        %v598 = vand.u32 %v462, 4294901760
        %v599 = vsub.f32 %v462, %v598
        %v600 = vand.u32 %v599, 4294901760
        %v601 = vsub.f32 %v599, %v600
        %v602 = vand.u32 %v601, 4294901760
        %603 = vmatmul.mubr.f32.gmra.mxu0 %v602
        %v604 = vpop.f32.mrf.mxu0
        %v605 = vadd.f32 %v455, %v604
        %v606 = vpop.f32.mrf.mxu0
        %607 = vmatprep.mubr.f32.mxu0 0.0
        %v608 = vand.u32 %v465, 4294901760
        %v609 = vsub.f32 %v465, %v608
        %v610 = vand.u32 %v609, 4294901760
        %v611 = vsub.f32 %v609, %v610
        %v612 = vand.u32 %v611, 4294901760
        %613 = vmatmul.mubr.f32.gmra.mxu0 %v612
        %v614 = vpop.f32.mrf.mxu0
        %v615 = vadd.f32 %v455, %v614
        %v616 = vpop.f32.mrf.mxu0
        %617 = vmatprep.mubr.f32.mxu0 0.0
        %v618 = vand.u32 %v468, 4294901760
        %v619 = vsub.f32 %v468, %v618
        %v620 = vand.u32 %v619, 4294901760
        %v621 = vsub.f32 %v619, %v620
        %v622 = vand.u32 %v621, 4294901760
        %623 = vmatmul.mubr.f32.gmra.mxu0 %v622
        %v624 = vpop.f32.mrf.mxu0
        %v625 = vadd.f32 %v455, %v624
        %v626 = vpop.f32.mrf.mxu0
        %627 = vmatprep.mubr.f32.mxu0 0.0
        %v628 = vand.u32 %v471, 4294901760
        %v629 = vsub.f32 %v471, %v628
        %v630 = vand.u32 %v629, 4294901760
        %v631 = vsub.f32 %v629, %v630
        %v632 = vand.u32 %v631, 4294901760
        %633 = vmatmul.mubr.f32.gmra.mxu0 %v632
        %v634 = vpop.f32.mrf.mxu0
        %v635 = vadd.f32 %v455, %v634
        %v636 = vpop.f32.mrf.mxu0
        %637 = vmatprep.mubr.f32.mxu0 0.0
        %v638 = vand.u32 %v474, 4294901760
        %v639 = vsub.f32 %v474, %v638
        %v640 = vand.u32 %v639, 4294901760
        %v641 = vsub.f32 %v639, %v640
        %v642 = vand.u32 %v641, 4294901760
        %643 = vmatmul.mubr.f32.gmra.mxu0 %v642
        %v644 = vpop.f32.mrf.mxu0
        %v645 = vadd.f32 %v455, %v644
        %v646 = vpop.f32.mrf.mxu0
        %647 = vmatprep.mubr.f32.mxu0 0.0
        %v648 = vand.u32 %v477, 4294901760
        %v649 = vsub.f32 %v477, %v648
        %v650 = vand.u32 %v649, 4294901760
        %v651 = vsub.f32 %v649, %v650
        %v652 = vand.u32 %v651, 4294901760
        %653 = vmatmul.mubr.f32.gmra.mxu0 %v652
        %v654 = vpop.f32.mrf.mxu0
        %v655 = vadd.f32 %v455, %v654
        %v656 = vpop.f32.mrf.mxu0
        %657 = vmatprep.mubr.f32.mxu0 0.0
        %v658 = vand.u32 %v480, 4294901760
        %v659 = vsub.f32 %v480, %v658
        %v660 = vand.u32 %v659, 4294901760
        %v661 = vsub.f32 %v659, %v660
        %v662 = vand.u32 %v661, 4294901760
        %663 = vmatmul.mubr.f32.gmra.mxu0 %v662
        %v664 = vpop.f32.mrf.mxu0
        %v665 = vadd.f32 %v455, %v664
        %v666 = vpop.f32.mrf.mxu0
        %667 = vmatprep.mubr.f32.mxu0 0.0
        %v668 = vand.u32 %v483, 4294901760
        %v669 = vsub.f32 %v483, %v668
        %v670 = vand.u32 %v669, 4294901760
        %v671 = vsub.f32 %v669, %v670
        %v672 = vand.u32 %v671, 4294901760
        %673 = vmatmul.mubr.f32.gmra.mxu0 %v672
        %v674 = vpop.f32.mrf.mxu0
        %v675 = vadd.f32 %v455, %v674
        %v676 = vpop.f32.mrf.mxu0
        %677 = vmatprep.mubr.f32.mxu0 0.0
        %v678 = vand.u32 %v486, 4294901760
        %v679 = vsub.f32 %v486, %v678
        %v680 = vand.u32 %v679, 4294901760
        %v681 = vsub.f32 %v679, %v680
        %v682 = vand.u32 %v681, 4294901760
        %683 = vmatmul.mubr.f32.gmra.mxu0 %v682
        %v684 = vpop.f32.mrf.mxu0
        %v685 = vadd.f32 %v455, %v684
        %v686 = vpop.f32.mrf.mxu0
        %687 = vmatprep.mubr.f32.mxu0 0.0
        %v688 = vand.u32 %v489, 4294901760
        %v689 = vsub.f32 %v489, %v688
        %v690 = vand.u32 %v689, 4294901760
        %v691 = vsub.f32 %v689, %v690
        %v692 = vand.u32 %v691, 4294901760
        %693 = vmatmul.mubr.f32.gmra.mxu0 %v692
        %v694 = vpop.f32.mrf.mxu0
        %v695 = vadd.f32 %v455, %v694
        %v696 = vpop.f32.mrf.mxu0
        %697 = vmatprep.mubr.f32.mxu0 0.0
        %v698 = vand.u32 %v492, 4294901760
        %v699 = vsub.f32 %v492, %v698
        %v700 = vand.u32 %v699, 4294901760
        %v701 = vsub.f32 %v699, %v700
        %v702 = vand.u32 %v701, 4294901760
        %703 = vmatmul.mubr.f32.gmra.mxu0 %v702
        %v704 = vpop.f32.mrf.mxu0
        %v705 = vadd.f32 %v455, %v704
        %v706 = vpop.f32.mrf.mxu0
        %707 = vmatprep.mubr.f32.mxu0 0.0
        %v708 = vand.u32 %v495, 4294901760
        %v709 = vsub.f32 %v495, %v708
        %v710 = vand.u32 %v709, 4294901760
        %v711 = vsub.f32 %v709, %v710
        %v712 = vand.u32 %v711, 4294901760
        %713 = vmatmul.mubr.f32.gmra.mxu0 %v712
        %v714 = vpop.f32.mrf.mxu0
        %v715 = vadd.f32 %v455, %v714
        %v716 = vpop.f32.mrf.mxu0
        %717 = vmatprep.mubr.f32.mxu0 0.0
        %v718 = vand.u32 %v498, 4294901760
        %v719 = vsub.f32 %v498, %v718
        %v720 = vand.u32 %v719, 4294901760
        %v721 = vsub.f32 %v719, %v720
        %v722 = vand.u32 %v721, 4294901760
        %723 = vmatmul.mubr.f32.gmra.mxu0 %v722
        %v724 = vpop.f32.mrf.mxu0
        %v725 = vadd.f32 %v455, %v724
        %v726 = vpop.f32.mrf.mxu0
        %727 = vmatprep.mubr.f32.mxu0 0.0
        %v728 = vand.u32 %v501, 4294901760
        %v729 = vsub.f32 %v501, %v728
        %v730 = vand.u32 %v729, 4294901760
        %v731 = vsub.f32 %v729, %v730
        %v732 = vand.u32 %v731, 4294901760
        %733 = vmatmul.mubr.f32.gmra.mxu0 %v732
        %v734 = vpop.f32.mrf.mxu0
        %v735 = vadd.f32 %v455, %v734
        %v736 = vpop.f32.mrf.mxu0
        %737 = vmatprep.mubr.f32.mxu0 0.0
        %v738 = vand.u32 %v504, 4294901760
        %v739 = vsub.f32 %v504, %v738
        %v740 = vand.u32 %v739, 4294901760
        %v741 = vsub.f32 %v739, %v740
        %v742 = vand.u32 %v741, 4294901760
        %743 = vmatmul.mubr.f32.gmra.mxu0 %v742
        %v744 = vpop.f32.mrf.mxu0
        %v745 = vadd.f32 %v455, %v744
        %v746 = vpop.f32.mrf.mxu0
        %747 = vdwg.mxu0
        %748 = vmatprep.subr.mxu0 0.0
        %749 = vmatpush1.msra.mxu0 0.0
        %750 = vmatprep.subr.mxu0 0.0
        %751 = vmatpush1.msra.mxu0 0.0
        %752 = vmatprep.subr.mxu0 0.0
        %753 = vmatpush1.msra.mxu0 0.0
        %754 = vmatprep.subr.mxu0 0.0
        %v755 = vand.u32 %v508, 4294901760
        %v756 = vsub.f32 %v508, %v755
        %v757 = vand.u32 %v756, 4294901760
        %v758 = vsub.f32 %v756, %v757
        %v759 = vand.u32 %v758, 4294901760
        %760 = vmatpush1.msra.mxu0 %v759
        %761 = vmatprep.subr.mxu0 0.0
        %v762 = vand.u32 %v448, 4294901760
        %v763 = vsub.f32 %v448, %v762
        %v764 = vand.u32 %v763, 4294901760
        %v765 = vsub.f32 %v763, %v764
        %v766 = vand.u32 %v765, 4294901760
        %767 = vmatpush1.msra.mxu0 %v766
        %768 = vmatprep.subr.mxu0 0.0
        %v769 = vand.u32 %v447, 4294901760
        %v770 = vsub.f32 %v447, %v769
        %v771 = vand.u32 %v770, 4294901760
        %v772 = vsub.f32 %v770, %v771
        %v773 = vand.u32 %v772, 4294901760
        %774 = vmatpush1.msra.mxu0 %v773
        %775 = vmatprep.subr.mxu0 0.0
        %v776 = vand.u32 %v446, 4294901760
        %v777 = vsub.f32 %v446, %v776
        %v778 = vand.u32 %v777, 4294901760
        %v779 = vsub.f32 %v777, %v778
        %v780 = vand.u32 %v779, 4294901760
        %781 = vmatpush1.msra.mxu0 %v780
        %782 = vmatprep.subr.mxu0 0.0
        %v783 = vand.u32 %v445, 4294901760
        %v784 = vsub.f32 %v445, %v783
        %v785 = vand.u32 %v784, 4294901760
        %v786 = vsub.f32 %v784, %v785
        %v787 = vand.u32 %v786, 4294901760
        %788 = vmatpush1.msra.mxu0 %v787
        %789 = vmatprep.subr.mxu0 0.0
        %v790 = vand.u32 %v444, 4294901760
        %v791 = vsub.f32 %v444, %v790
        %v792 = vand.u32 %v791, 4294901760
        %v793 = vsub.f32 %v791, %v792
        %v794 = vand.u32 %v793, 4294901760
        %795 = vmatpush1.msra.mxu0 %v794
        %796 = vmatprep.subr.mxu0 0.0
        %v797 = vand.u32 %v443, 4294901760
        %v798 = vsub.f32 %v443, %v797
        %v799 = vand.u32 %v798, 4294901760
        %v800 = vsub.f32 %v798, %v799
        %v801 = vand.u32 %v800, 4294901760
        %802 = vmatpush1.msra.mxu0 %v801
        %803 = vmatprep.subr.mxu0 0.0
        %v804 = vand.u32 %v442, 4294901760
        %v805 = vsub.f32 %v442, %v804
        %v806 = vand.u32 %v805, 4294901760
        %v807 = vsub.f32 %v805, %v806
        %v808 = vand.u32 %v807, 4294901760
        %809 = vmatpush1.msra.mxu0 %v808
        %810 = vmatprep.subr.mxu0 0.0
        %v811 = vand.u32 %v441, 4294901760
        %v812 = vsub.f32 %v441, %v811
        %v813 = vand.u32 %v812, 4294901760
        %v814 = vsub.f32 %v812, %v813
        %v815 = vand.u32 %v814, 4294901760
        %816 = vmatpush1.msra.mxu0 %v815
        %817 = vmatprep.subr.mxu0 0.0
        %v818 = vand.u32 %v440, 4294901760
        %v819 = vsub.f32 %v440, %v818
        %v820 = vand.u32 %v819, 4294901760
        %v821 = vsub.f32 %v819, %v820
        %v822 = vand.u32 %v821, 4294901760
        %823 = vmatpush1.msra.mxu0 %v822
        %824 = vmatprep.subr.mxu0 0.0
        %v825 = vand.u32 %v439, 4294901760
        %v826 = vsub.f32 %v439, %v825
        %v827 = vand.u32 %v826, 4294901760
        %v828 = vsub.f32 %v826, %v827
        %v829 = vand.u32 %v828, 4294901760
        %830 = vmatpush1.msra.mxu0 %v829
        %831 = vmatprep.subr.mxu0 0.0
        %v832 = vand.u32 %v438, 4294901760
        %v833 = vsub.f32 %v438, %v832
        %v834 = vand.u32 %v833, 4294901760
        %v835 = vsub.f32 %v833, %v834
        %v836 = vand.u32 %v835, 4294901760
        %837 = vmatpush1.msra.mxu0 %v836
        %838 = vmatprep.subr.mxu0 0.0
        %v839 = vand.u32 %v437, 4294901760
        %v840 = vsub.f32 %v437, %v839
        %v841 = vand.u32 %v840, 4294901760
        %v842 = vsub.f32 %v840, %v841
        %v843 = vand.u32 %v842, 4294901760
        %844 = vmatpush1.msra.mxu0 %v843
        %845 = vmatprep.subr.mxu0 0.0
        %846 = vmatpush2.msra.mxu0 0.0
        %847 = vmatprep.subr.mxu0 0.0
        %848 = vmatpush2.msra.mxu0 0.0
        %849 = vmatprep.subr.mxu0 0.0
        %850 = vmatpush2.msra.mxu0 0.0
        %851 = vmatprep.subr.mxu0 0.0
        %852 = vmatpush2.msra.mxu0 0.0
        %853 = vmatprep.subr.mxu0 0.0
        %854 = vmatpush2.msra.mxu0 0.0
        %855 = vmatprep.subr.mxu0 0.0
        %856 = vmatpush2.msra.mxu0 0.0
        %857 = vmatprep.subr.mxu0 0.0
        %858 = vmatpush2.msra.mxu0 0.0
        %859 = vmatprep.subr.mxu0 0.0
        %860 = vmatpush2.msra.mxu0 0.0
        %861 = vmatprep.subr.mxu0 0.0
        %862 = vmatpush2.msra.mxu0 0.0
        %863 = vmatprep.subr.mxu0 0.0
        %864 = vmatpush2.msra.mxu0 0.0
        %865 = vmatprep.subr.mxu0 0.0
        %866 = vmatpush2.msra.mxu0 0.0
        %867 = vmatprep.subr.mxu0 0.0
        %868 = vmatpush2.msra.mxu0 0.0
        %869 = vmatprep.subr.mxu0 0.0
        %870 = vmatpush2.msra.mxu0 0.0
        %871 = vmatprep.subr.mxu0 0.0
        %872 = vmatpush2.msra.mxu0 0.0
        %873 = vmatprep.subr.mxu0 0.0
        %874 = vmatpush2.msra.mxu0 0.0
        %875 = vmatprep.subr.mxu0 0.0
        %876 = vmatpush2.msra.mxu0 0.0
        %877 = vmatprep.mubr.f32.mxu0 0.0
        %v878 = vand.u32 %v459, 4294901760
        %879 = vmatmul.mubr.f32.gmra.mxu0 %v878
        %v880 = vpop.f32.mrf.mxu0
        %v881 = vadd.f32 %v595, %v880
        %v882 = vpop.f32.mrf.mxu0
        %883 = vmatprep.mubr.f32.mxu0 0.0
        %v884 = vand.u32 %v462, 4294901760
        %885 = vmatmul.mubr.f32.gmra.mxu0 %v884
        %v886 = vpop.f32.mrf.mxu0
        %v887 = vadd.f32 %v605, %v886
        %v888 = vpop.f32.mrf.mxu0
        %889 = vmatprep.mubr.f32.mxu0 0.0
        %v890 = vand.u32 %v465, 4294901760
        %891 = vmatmul.mubr.f32.gmra.mxu0 %v890
        %v892 = vpop.f32.mrf.mxu0
        %v893 = vadd.f32 %v615, %v892
        %v894 = vpop.f32.mrf.mxu0
        %895 = vmatprep.mubr.f32.mxu0 0.0
        %v896 = vand.u32 %v468, 4294901760
        %897 = vmatmul.mubr.f32.gmra.mxu0 %v896
        %v898 = vpop.f32.mrf.mxu0
        %v899 = vadd.f32 %v625, %v898
        %v900 = vpop.f32.mrf.mxu0
        %901 = vmatprep.mubr.f32.mxu0 0.0
        %v902 = vand.u32 %v471, 4294901760
        %903 = vmatmul.mubr.f32.gmra.mxu0 %v902
        %v904 = vpop.f32.mrf.mxu0
        %v905 = vadd.f32 %v635, %v904
        %v906 = vpop.f32.mrf.mxu0
        %907 = vmatprep.mubr.f32.mxu0 0.0
        %v908 = vand.u32 %v474, 4294901760
        %909 = vmatmul.mubr.f32.gmra.mxu0 %v908
        %v910 = vpop.f32.mrf.mxu0
        %v911 = vadd.f32 %v645, %v910
        %v912 = vpop.f32.mrf.mxu0
        %913 = vmatprep.mubr.f32.mxu0 0.0
        %v914 = vand.u32 %v477, 4294901760
        %915 = vmatmul.mubr.f32.gmra.mxu0 %v914
        %v916 = vpop.f32.mrf.mxu0
        %v917 = vadd.f32 %v655, %v916
        %v918 = vpop.f32.mrf.mxu0
        %919 = vmatprep.mubr.f32.mxu0 0.0
        %v920 = vand.u32 %v480, 4294901760
        %921 = vmatmul.mubr.f32.gmra.mxu0 %v920
        %v922 = vpop.f32.mrf.mxu0
        %v923 = vadd.f32 %v665, %v922
        %v924 = vpop.f32.mrf.mxu0
        %925 = vmatprep.mubr.f32.mxu0 0.0
        %v926 = vand.u32 %v483, 4294901760
        %927 = vmatmul.mubr.f32.gmra.mxu0 %v926
        %v928 = vpop.f32.mrf.mxu0
        %v929 = vadd.f32 %v675, %v928
        %v930 = vpop.f32.mrf.mxu0
        %931 = vmatprep.mubr.f32.mxu0 0.0
        %v932 = vand.u32 %v486, 4294901760
        %933 = vmatmul.mubr.f32.gmra.mxu0 %v932
        %v934 = vpop.f32.mrf.mxu0
        %v935 = vadd.f32 %v685, %v934
        %v936 = vpop.f32.mrf.mxu0
        %937 = vmatprep.mubr.f32.mxu0 0.0
        %v938 = vand.u32 %v489, 4294901760
        %939 = vmatmul.mubr.f32.gmra.mxu0 %v938
        %v940 = vpop.f32.mrf.mxu0
        %v941 = vadd.f32 %v695, %v940
        %v942 = vpop.f32.mrf.mxu0
        %943 = vmatprep.mubr.f32.mxu0 0.0
        %v944 = vand.u32 %v492, 4294901760
        %945 = vmatmul.mubr.f32.gmra.mxu0 %v944
        %v946 = vpop.f32.mrf.mxu0
        %v947 = vadd.f32 %v705, %v946
        %v948 = vpop.f32.mrf.mxu0
        %949 = vmatprep.mubr.f32.mxu0 0.0
        %v950 = vand.u32 %v495, 4294901760
        %951 = vmatmul.mubr.f32.gmra.mxu0 %v950
        %v952 = vpop.f32.mrf.mxu0
        %v953 = vadd.f32 %v715, %v952
        %v954 = vpop.f32.mrf.mxu0
        %955 = vmatprep.mubr.f32.mxu0 0.0
        %v956 = vand.u32 %v498, 4294901760
        %957 = vmatmul.mubr.f32.gmra.mxu0 %v956
        %v958 = vpop.f32.mrf.mxu0
        %v959 = vadd.f32 %v725, %v958
        %v960 = vpop.f32.mrf.mxu0
        %961 = vmatprep.mubr.f32.mxu0 0.0
        %v962 = vand.u32 %v501, 4294901760
        %963 = vmatmul.mubr.f32.gmra.mxu0 %v962
        %v964 = vpop.f32.mrf.mxu0
        %v965 = vadd.f32 %v735, %v964
        %v966 = vpop.f32.mrf.mxu0
        %967 = vmatprep.mubr.f32.mxu0 0.0
        %v968 = vand.u32 %v504, 4294901760
        %969 = vmatmul.mubr.f32.gmra.mxu0 %v968
        %v970 = vpop.f32.mrf.mxu0
        %v971 = vadd.f32 %v745, %v970
        %v972 = vpop.f32.mrf.mxu0
        %973 = vdwg.mxu0
        %974 = vmatprep.subr.mxu0 0.0
        %975 = vmatpush1.msra.mxu0 0.0
        %976 = vmatprep.subr.mxu0 0.0
        %977 = vmatpush1.msra.mxu0 0.0
        %978 = vmatprep.subr.mxu0 0.0
        %979 = vmatpush1.msra.mxu0 0.0
        %980 = vmatprep.subr.mxu0 0.0
        %v981 = vand.u32 %v508, 4294901760
        %v982 = vsub.f32 %v508, %v981
        %983 = vmatpush1.msra.mxu0 %v982
        %984 = vmatprep.subr.mxu0 0.0
        %v985 = vand.u32 %v448, 4294901760
        %v986 = vsub.f32 %v448, %v985
        %987 = vmatpush1.msra.mxu0 %v986
        %988 = vmatprep.subr.mxu0 0.0
        %v989 = vand.u32 %v447, 4294901760
        %v990 = vsub.f32 %v447, %v989
        %991 = vmatpush1.msra.mxu0 %v990
        %992 = vmatprep.subr.mxu0 0.0
        %v993 = vand.u32 %v446, 4294901760
        %v994 = vsub.f32 %v446, %v993
        %995 = vmatpush1.msra.mxu0 %v994
        %996 = vmatprep.subr.mxu0 0.0
        %v997 = vand.u32 %v445, 4294901760
        %v998 = vsub.f32 %v445, %v997
        %999 = vmatpush1.msra.mxu0 %v998
        %1000 = vmatprep.subr.mxu0 0.0
        %v1001 = vand.u32 %v444, 4294901760
        %v1002 = vsub.f32 %v444, %v1001
        %1003 = vmatpush1.msra.mxu0 %v1002
        %1004 = vmatprep.subr.mxu0 0.0
        %v1005 = vand.u32 %v443, 4294901760
        %v1006 = vsub.f32 %v443, %v1005
        %1007 = vmatpush1.msra.mxu0 %v1006
        %1008 = vmatprep.subr.mxu0 0.0
        %v1009 = vand.u32 %v442, 4294901760
        %v1010 = vsub.f32 %v442, %v1009
        %1011 = vmatpush1.msra.mxu0 %v1010
        %1012 = vmatprep.subr.mxu0 0.0
        %v1013 = vand.u32 %v441, 4294901760
        %v1014 = vsub.f32 %v441, %v1013
        %1015 = vmatpush1.msra.mxu0 %v1014
        %1016 = vmatprep.subr.mxu0 0.0
        %v1017 = vand.u32 %v440, 4294901760
        %v1018 = vsub.f32 %v440, %v1017
        %1019 = vmatpush1.msra.mxu0 %v1018
        %1020 = vmatprep.subr.mxu0 0.0
        %v1021 = vand.u32 %v439, 4294901760
        %v1022 = vsub.f32 %v439, %v1021
        %1023 = vmatpush1.msra.mxu0 %v1022
        %1024 = vmatprep.subr.mxu0 0.0
        %v1025 = vand.u32 %v438, 4294901760
        %v1026 = vsub.f32 %v438, %v1025
        %1027 = vmatpush1.msra.mxu0 %v1026
        %1028 = vmatprep.subr.mxu0 0.0
        %v1029 = vand.u32 %v437, 4294901760
        %v1030 = vsub.f32 %v437, %v1029
        %1031 = vmatpush1.msra.mxu0 %v1030
        %1032 = vmatprep.subr.mxu0 0.0
        %1033 = vmatpush2.msra.mxu0 0.0
        %1034 = vmatprep.subr.mxu0 0.0
        %1035 = vmatpush2.msra.mxu0 0.0
        %1036 = vmatprep.subr.mxu0 0.0
        %1037 = vmatpush2.msra.mxu0 0.0
        %1038 = vmatprep.subr.mxu0 0.0
        %1039 = vmatpush2.msra.mxu0 0.0
        %1040 = vmatprep.subr.mxu0 0.0
        %1041 = vmatpush2.msra.mxu0 0.0
        %1042 = vmatprep.subr.mxu0 0.0
        %1043 = vmatpush2.msra.mxu0 0.0
        %1044 = vmatprep.subr.mxu0 0.0
        %1045 = vmatpush2.msra.mxu0 0.0
        %1046 = vmatprep.subr.mxu0 0.0
        %1047 = vmatpush2.msra.mxu0 0.0
        %1048 = vmatprep.subr.mxu0 0.0
        %1049 = vmatpush2.msra.mxu0 0.0
        %1050 = vmatprep.subr.mxu0 0.0
        %1051 = vmatpush2.msra.mxu0 0.0
        %1052 = vmatprep.subr.mxu0 0.0
        %1053 = vmatpush2.msra.mxu0 0.0
        %1054 = vmatprep.subr.mxu0 0.0
        %1055 = vmatpush2.msra.mxu0 0.0
        %1056 = vmatprep.subr.mxu0 0.0
        %1057 = vmatpush2.msra.mxu0 0.0
        %1058 = vmatprep.subr.mxu0 0.0
        %1059 = vmatpush2.msra.mxu0 0.0
        %1060 = vmatprep.subr.mxu0 0.0
        %1061 = vmatpush2.msra.mxu0 0.0
        %1062 = vmatprep.subr.mxu0 0.0
        %1063 = vmatpush2.msra.mxu0 0.0
        %1064 = vmatprep.mubr.f32.mxu0 0.0
        %v1065 = vand.u32 %v459, 4294901760
        %v1066 = vsub.f32 %v459, %v1065
        %1067 = vmatmul.mubr.f32.gmra.mxu0 %v1066
        %v1068 = vpop.f32.mrf.mxu0
        %v1069 = vadd.f32 %v881, %v1068
        %v1070 = vpop.f32.mrf.mxu0
        %1071 = vmatprep.mubr.f32.mxu0 0.0
        %v1072 = vand.u32 %v462, 4294901760
        %v1073 = vsub.f32 %v462, %v1072
        %1074 = vmatmul.mubr.f32.gmra.mxu0 %v1073
        %v1075 = vpop.f32.mrf.mxu0
        %v1076 = vadd.f32 %v887, %v1075
        %v1077 = vpop.f32.mrf.mxu0
        %1078 = vmatprep.mubr.f32.mxu0 0.0
        %v1079 = vand.u32 %v465, 4294901760
        %v1080 = vsub.f32 %v465, %v1079
        %1081 = vmatmul.mubr.f32.gmra.mxu0 %v1080
        %v1082 = vpop.f32.mrf.mxu0
        %v1083 = vadd.f32 %v893, %v1082
        %v1084 = vpop.f32.mrf.mxu0
        %1085 = vmatprep.mubr.f32.mxu0 0.0
        %v1086 = vand.u32 %v468, 4294901760
        %v1087 = vsub.f32 %v468, %v1086
        %1088 = vmatmul.mubr.f32.gmra.mxu0 %v1087
        %v1089 = vpop.f32.mrf.mxu0
        %v1090 = vadd.f32 %v899, %v1089
        %v1091 = vpop.f32.mrf.mxu0
        %1092 = vmatprep.mubr.f32.mxu0 0.0
        %v1093 = vand.u32 %v471, 4294901760
        %v1094 = vsub.f32 %v471, %v1093
        %1095 = vmatmul.mubr.f32.gmra.mxu0 %v1094
        %v1096 = vpop.f32.mrf.mxu0
        %v1097 = vadd.f32 %v905, %v1096
        %v1098 = vpop.f32.mrf.mxu0
        %1099 = vmatprep.mubr.f32.mxu0 0.0
        %v1100 = vand.u32 %v474, 4294901760
        %v1101 = vsub.f32 %v474, %v1100
        %1102 = vmatmul.mubr.f32.gmra.mxu0 %v1101
        %v1103 = vpop.f32.mrf.mxu0
        %v1104 = vadd.f32 %v911, %v1103
        %v1105 = vpop.f32.mrf.mxu0
        %1106 = vmatprep.mubr.f32.mxu0 0.0
        %v1107 = vand.u32 %v477, 4294901760
        %v1108 = vsub.f32 %v477, %v1107
        %1109 = vmatmul.mubr.f32.gmra.mxu0 %v1108
        %v1110 = vpop.f32.mrf.mxu0
        %v1111 = vadd.f32 %v917, %v1110
        %v1112 = vpop.f32.mrf.mxu0
        %1113 = vmatprep.mubr.f32.mxu0 0.0
        %v1114 = vand.u32 %v480, 4294901760
        %v1115 = vsub.f32 %v480, %v1114
        %1116 = vmatmul.mubr.f32.gmra.mxu0 %v1115
        %v1117 = vpop.f32.mrf.mxu0
        %v1118 = vadd.f32 %v923, %v1117
        %v1119 = vpop.f32.mrf.mxu0
        %1120 = vmatprep.mubr.f32.mxu0 0.0
        %v1121 = vand.u32 %v483, 4294901760
        %v1122 = vsub.f32 %v483, %v1121
        %1123 = vmatmul.mubr.f32.gmra.mxu0 %v1122
        %v1124 = vpop.f32.mrf.mxu0
        %v1125 = vadd.f32 %v929, %v1124
        %v1126 = vpop.f32.mrf.mxu0
        %1127 = vmatprep.mubr.f32.mxu0 0.0
        %v1128 = vand.u32 %v486, 4294901760
        %v1129 = vsub.f32 %v486, %v1128
        %1130 = vmatmul.mubr.f32.gmra.mxu0 %v1129
        %v1131 = vpop.f32.mrf.mxu0
        %v1132 = vadd.f32 %v935, %v1131
        %v1133 = vpop.f32.mrf.mxu0
        %1134 = vmatprep.mubr.f32.mxu0 0.0
        %v1135 = vand.u32 %v489, 4294901760
        %v1136 = vsub.f32 %v489, %v1135
        %1137 = vmatmul.mubr.f32.gmra.mxu0 %v1136
        %v1138 = vpop.f32.mrf.mxu0
        %v1139 = vadd.f32 %v941, %v1138
        %v1140 = vpop.f32.mrf.mxu0
        %1141 = vmatprep.mubr.f32.mxu0 0.0
        %v1142 = vand.u32 %v492, 4294901760
        %v1143 = vsub.f32 %v492, %v1142
        %1144 = vmatmul.mubr.f32.gmra.mxu0 %v1143
        %v1145 = vpop.f32.mrf.mxu0
        %v1146 = vadd.f32 %v947, %v1145
        %v1147 = vpop.f32.mrf.mxu0
        %1148 = vmatprep.mubr.f32.mxu0 0.0
        %v1149 = vand.u32 %v495, 4294901760
        %v1150 = vsub.f32 %v495, %v1149
        %1151 = vmatmul.mubr.f32.gmra.mxu0 %v1150
        %v1152 = vpop.f32.mrf.mxu0
        %v1153 = vadd.f32 %v953, %v1152
        %v1154 = vpop.f32.mrf.mxu0
        %1155 = vmatprep.mubr.f32.mxu0 0.0
        %v1156 = vand.u32 %v498, 4294901760
        %v1157 = vsub.f32 %v498, %v1156
        %1158 = vmatmul.mubr.f32.gmra.mxu0 %v1157
        %v1159 = vpop.f32.mrf.mxu0
        %v1160 = vadd.f32 %v959, %v1159
        %v1161 = vpop.f32.mrf.mxu0
        %1162 = vmatprep.mubr.f32.mxu0 0.0
        %v1163 = vand.u32 %v501, 4294901760
        %v1164 = vsub.f32 %v501, %v1163
        %1165 = vmatmul.mubr.f32.gmra.mxu0 %v1164
        %v1166 = vpop.f32.mrf.mxu0
        %v1167 = vadd.f32 %v965, %v1166
        %v1168 = vpop.f32.mrf.mxu0
        %1169 = vmatprep.mubr.f32.mxu0 0.0
        %v1170 = vand.u32 %v504, 4294901760
        %v1171 = vsub.f32 %v504, %v1170
        %1172 = vmatmul.mubr.f32.gmra.mxu0 %v1171
        %v1173 = vpop.f32.mrf.mxu0
        %v1174 = vadd.f32 %v971, %v1173
        %v1175 = vpop.f32.mrf.mxu0
        %1176 = vdwg.mxu0
        %1177 = vmatprep.subr.mxu0 0.0
        %1178 = vmatpush1.msra.mxu0 0.0
        %1179 = vmatprep.subr.mxu0 0.0
        %1180 = vmatpush1.msra.mxu0 0.0
        %1181 = vmatprep.subr.mxu0 0.0
        %1182 = vmatpush1.msra.mxu0 0.0
        %1183 = vmatprep.subr.mxu0 0.0
        %v1184 = vand.u32 %v508, 4294901760
        %1185 = vmatpush1.msra.mxu0 %v1184
        %1186 = vmatprep.subr.mxu0 0.0
        %v1187 = vand.u32 %v448, 4294901760
        %1188 = vmatpush1.msra.mxu0 %v1187
        %1189 = vmatprep.subr.mxu0 0.0
        %v1190 = vand.u32 %v447, 4294901760
        %1191 = vmatpush1.msra.mxu0 %v1190
        %1192 = vmatprep.subr.mxu0 0.0
        %v1193 = vand.u32 %v446, 4294901760
        %1194 = vmatpush1.msra.mxu0 %v1193
        %1195 = vmatprep.subr.mxu0 0.0
        %v1196 = vand.u32 %v445, 4294901760
        %1197 = vmatpush1.msra.mxu0 %v1196
        %1198 = vmatprep.subr.mxu0 0.0
        %v1199 = vand.u32 %v444, 4294901760
        %1200 = vmatpush1.msra.mxu0 %v1199
        %1201 = vmatprep.subr.mxu0 0.0
        %v1202 = vand.u32 %v443, 4294901760
        %1203 = vmatpush1.msra.mxu0 %v1202
        %1204 = vmatprep.subr.mxu0 0.0
        %v1205 = vand.u32 %v442, 4294901760
        %1206 = vmatpush1.msra.mxu0 %v1205
        %1207 = vmatprep.subr.mxu0 0.0
        %v1208 = vand.u32 %v441, 4294901760
        %1209 = vmatpush1.msra.mxu0 %v1208
        %1210 = vmatprep.subr.mxu0 0.0
        %v1211 = vand.u32 %v440, 4294901760
        %1212 = vmatpush1.msra.mxu0 %v1211
        %1213 = vmatprep.subr.mxu0 0.0
        %v1214 = vand.u32 %v439, 4294901760
        %1215 = vmatpush1.msra.mxu0 %v1214
        %1216 = vmatprep.subr.mxu0 0.0
        %v1217 = vand.u32 %v438, 4294901760
        %1218 = vmatpush1.msra.mxu0 %v1217
        %1219 = vmatprep.subr.mxu0 0.0
        %v1220 = vand.u32 %v437, 4294901760
        %1221 = vmatpush1.msra.mxu0 %v1220
        %1222 = vmatprep.subr.mxu0 0.0
        %1223 = vmatpush2.msra.mxu0 0.0
        %1224 = vmatprep.subr.mxu0 0.0
        %1225 = vmatpush2.msra.mxu0 0.0
        %1226 = vmatprep.subr.mxu0 0.0
        %1227 = vmatpush2.msra.mxu0 0.0
        %1228 = vmatprep.subr.mxu0 0.0
        %1229 = vmatpush2.msra.mxu0 0.0
        %1230 = vmatprep.subr.mxu0 0.0
        %1231 = vmatpush2.msra.mxu0 0.0
        %1232 = vmatprep.subr.mxu0 0.0
        %1233 = vmatpush2.msra.mxu0 0.0
        %1234 = vmatprep.subr.mxu0 0.0
        %1235 = vmatpush2.msra.mxu0 0.0
        %1236 = vmatprep.subr.mxu0 0.0
        %1237 = vmatpush2.msra.mxu0 0.0
        %1238 = vmatprep.subr.mxu0 0.0
        %1239 = vmatpush2.msra.mxu0 0.0
        %1240 = vmatprep.subr.mxu0 0.0
        %1241 = vmatpush2.msra.mxu0 0.0
        %1242 = vmatprep.subr.mxu0 0.0
        %1243 = vmatpush2.msra.mxu0 0.0
        %1244 = vmatprep.subr.mxu0 0.0
        %1245 = vmatpush2.msra.mxu0 0.0
        %1246 = vmatprep.subr.mxu0 0.0
        %1247 = vmatpush2.msra.mxu0 0.0
        %1248 = vmatprep.subr.mxu0 0.0
        %1249 = vmatpush2.msra.mxu0 0.0
        %1250 = vmatprep.subr.mxu0 0.0
        %1251 = vmatpush2.msra.mxu0 0.0
        %1252 = vmatprep.subr.mxu0 0.0
        %1253 = vmatpush2.msra.mxu0 0.0
        %1254 = vmatprep.mubr.f32.mxu0 0.0
        %v1255 = vand.u32 %v459, 4294901760
        %v1256 = vsub.f32 %v459, %v1255
        %v1257 = vand.u32 %v1256, 4294901760
        %1258 = vmatmul.mubr.f32.gmra.mxu0 %v1257
        %v1259 = vpop.f32.mrf.mxu0
        %v1260 = vadd.f32 %v1069, %v1259
        %v1261 = vpop.f32.mrf.mxu0
        %1262 = vmatprep.mubr.f32.mxu0 0.0
        %v1263 = vand.u32 %v462, 4294901760
        %v1264 = vsub.f32 %v462, %v1263
        %v1265 = vand.u32 %v1264, 4294901760
        %1266 = vmatmul.mubr.f32.gmra.mxu0 %v1265
        %v1267 = vpop.f32.mrf.mxu0
        %v1268 = vadd.f32 %v1076, %v1267
        %v1269 = vpop.f32.mrf.mxu0
        %1270 = vmatprep.mubr.f32.mxu0 0.0
        %v1271 = vand.u32 %v465, 4294901760
        %v1272 = vsub.f32 %v465, %v1271
        %v1273 = vand.u32 %v1272, 4294901760
        %1274 = vmatmul.mubr.f32.gmra.mxu0 %v1273
        %v1275 = vpop.f32.mrf.mxu0
        %v1276 = vadd.f32 %v1083, %v1275
        %v1277 = vpop.f32.mrf.mxu0
        %1278 = vmatprep.mubr.f32.mxu0 0.0
        %v1279 = vand.u32 %v468, 4294901760
        %v1280 = vsub.f32 %v468, %v1279
        %v1281 = vand.u32 %v1280, 4294901760
        %1282 = vmatmul.mubr.f32.gmra.mxu0 %v1281
        %v1283 = vpop.f32.mrf.mxu0
        %v1284 = vadd.f32 %v1090, %v1283
        %v1285 = vpop.f32.mrf.mxu0
        %1286 = vmatprep.mubr.f32.mxu0 0.0
        %v1287 = vand.u32 %v471, 4294901760
        %v1288 = vsub.f32 %v471, %v1287
        %v1289 = vand.u32 %v1288, 4294901760
        %1290 = vmatmul.mubr.f32.gmra.mxu0 %v1289
        %v1291 = vpop.f32.mrf.mxu0
        %v1292 = vadd.f32 %v1097, %v1291
        %v1293 = vpop.f32.mrf.mxu0
        %1294 = vmatprep.mubr.f32.mxu0 0.0
        %v1295 = vand.u32 %v474, 4294901760
        %v1296 = vsub.f32 %v474, %v1295
        %v1297 = vand.u32 %v1296, 4294901760
        %1298 = vmatmul.mubr.f32.gmra.mxu0 %v1297
        %v1299 = vpop.f32.mrf.mxu0
        %v1300 = vadd.f32 %v1104, %v1299
        %v1301 = vpop.f32.mrf.mxu0
        %1302 = vmatprep.mubr.f32.mxu0 0.0
        %v1303 = vand.u32 %v477, 4294901760
        %v1304 = vsub.f32 %v477, %v1303
        %v1305 = vand.u32 %v1304, 4294901760
        %1306 = vmatmul.mubr.f32.gmra.mxu0 %v1305
        %v1307 = vpop.f32.mrf.mxu0
        %v1308 = vadd.f32 %v1111, %v1307
        %v1309 = vpop.f32.mrf.mxu0
        %1310 = vmatprep.mubr.f32.mxu0 0.0
        %v1311 = vand.u32 %v480, 4294901760
        %v1312 = vsub.f32 %v480, %v1311
        %v1313 = vand.u32 %v1312, 4294901760
        %1314 = vmatmul.mubr.f32.gmra.mxu0 %v1313
        %v1315 = vpop.f32.mrf.mxu0
        %v1316 = vadd.f32 %v1118, %v1315
        %v1317 = vpop.f32.mrf.mxu0
        %1318 = vmatprep.mubr.f32.mxu0 0.0
        %v1319 = vand.u32 %v483, 4294901760
        %v1320 = vsub.f32 %v483, %v1319
        %v1321 = vand.u32 %v1320, 4294901760
        %1322 = vmatmul.mubr.f32.gmra.mxu0 %v1321
        %v1323 = vpop.f32.mrf.mxu0
        %v1324 = vadd.f32 %v1125, %v1323
        %v1325 = vpop.f32.mrf.mxu0
        %1326 = vmatprep.mubr.f32.mxu0 0.0
        %v1327 = vand.u32 %v486, 4294901760
        %v1328 = vsub.f32 %v486, %v1327
        %v1329 = vand.u32 %v1328, 4294901760
        %1330 = vmatmul.mubr.f32.gmra.mxu0 %v1329
        %v1331 = vpop.f32.mrf.mxu0
        %v1332 = vadd.f32 %v1132, %v1331
        %v1333 = vpop.f32.mrf.mxu0
        %1334 = vmatprep.mubr.f32.mxu0 0.0
        %v1335 = vand.u32 %v489, 4294901760
        %v1336 = vsub.f32 %v489, %v1335
        %v1337 = vand.u32 %v1336, 4294901760
        %1338 = vmatmul.mubr.f32.gmra.mxu0 %v1337
        %v1339 = vpop.f32.mrf.mxu0
        %v1340 = vadd.f32 %v1139, %v1339
        %v1341 = vpop.f32.mrf.mxu0
        %1342 = vmatprep.mubr.f32.mxu0 0.0
        %v1343 = vand.u32 %v492, 4294901760
        %v1344 = vsub.f32 %v492, %v1343
        %v1345 = vand.u32 %v1344, 4294901760
        %1346 = vmatmul.mubr.f32.gmra.mxu0 %v1345
        %v1347 = vpop.f32.mrf.mxu0
        %v1348 = vadd.f32 %v1146, %v1347
        %v1349 = vpop.f32.mrf.mxu0
        %1350 = vmatprep.mubr.f32.mxu0 0.0
        %v1351 = vand.u32 %v495, 4294901760
        %v1352 = vsub.f32 %v495, %v1351
        %v1353 = vand.u32 %v1352, 4294901760
        %1354 = vmatmul.mubr.f32.gmra.mxu0 %v1353
        %v1355 = vpop.f32.mrf.mxu0
        %v1356 = vadd.f32 %v1153, %v1355
        %v1357 = vpop.f32.mrf.mxu0
        %1358 = vmatprep.mubr.f32.mxu0 0.0
        %v1359 = vand.u32 %v498, 4294901760
        %v1360 = vsub.f32 %v498, %v1359
        %v1361 = vand.u32 %v1360, 4294901760
        %1362 = vmatmul.mubr.f32.gmra.mxu0 %v1361
        %v1363 = vpop.f32.mrf.mxu0
        %v1364 = vadd.f32 %v1160, %v1363
        %v1365 = vpop.f32.mrf.mxu0
        %1366 = vmatprep.mubr.f32.mxu0 0.0
        %v1367 = vand.u32 %v501, 4294901760
        %v1368 = vsub.f32 %v501, %v1367
        %v1369 = vand.u32 %v1368, 4294901760
        %1370 = vmatmul.mubr.f32.gmra.mxu0 %v1369
        %v1371 = vpop.f32.mrf.mxu0
        %v1372 = vadd.f32 %v1167, %v1371
        %v1373 = vpop.f32.mrf.mxu0
        %1374 = vmatprep.mubr.f32.mxu0 0.0
        %v1375 = vand.u32 %v504, 4294901760
        %v1376 = vsub.f32 %v504, %v1375
        %v1377 = vand.u32 %v1376, 4294901760
        %1378 = vmatmul.mubr.f32.gmra.mxu0 %v1377
        %v1379 = vpop.f32.mrf.mxu0
        %v1380 = vadd.f32 %v1174, %v1379
        %v1381 = vpop.f32.mrf.mxu0
        %1382 = vdwg.mxu0
        %1383 = vmatprep.subr.mxu0 0.0
        %1384 = vmatpush1.msra.mxu0 0.0
        %1385 = vmatprep.subr.mxu0 0.0
        %1386 = vmatpush1.msra.mxu0 0.0
        %1387 = vmatprep.subr.mxu0 0.0
        %1388 = vmatpush1.msra.mxu0 0.0
        %1389 = vmatprep.subr.mxu0 0.0
        %v1390 = vand.u32 %v508, 4294901760
        %v1391 = vsub.f32 %v508, %v1390
        %v1392 = vand.u32 %v1391, 4294901760
        %1393 = vmatpush1.msra.mxu0 %v1392
        %1394 = vmatprep.subr.mxu0 0.0
        %v1395 = vand.u32 %v448, 4294901760
        %v1396 = vsub.f32 %v448, %v1395
        %v1397 = vand.u32 %v1396, 4294901760
        %1398 = vmatpush1.msra.mxu0 %v1397
        %1399 = vmatprep.subr.mxu0 0.0
        %v1400 = vand.u32 %v447, 4294901760
        %v1401 = vsub.f32 %v447, %v1400
        %v1402 = vand.u32 %v1401, 4294901760
        %1403 = vmatpush1.msra.mxu0 %v1402
        %1404 = vmatprep.subr.mxu0 0.0
        %v1405 = vand.u32 %v446, 4294901760
        %v1406 = vsub.f32 %v446, %v1405
        %v1407 = vand.u32 %v1406, 4294901760
        %1408 = vmatpush1.msra.mxu0 %v1407
        %1409 = vmatprep.subr.mxu0 0.0
        %v1410 = vand.u32 %v445, 4294901760
        %v1411 = vsub.f32 %v445, %v1410
        %v1412 = vand.u32 %v1411, 4294901760
        %1413 = vmatpush1.msra.mxu0 %v1412
        %1414 = vmatprep.subr.mxu0 0.0
        %v1415 = vand.u32 %v444, 4294901760
        %v1416 = vsub.f32 %v444, %v1415
        %v1417 = vand.u32 %v1416, 4294901760
        %1418 = vmatpush1.msra.mxu0 %v1417
        %1419 = vmatprep.subr.mxu0 0.0
        %v1420 = vand.u32 %v443, 4294901760
        %v1421 = vsub.f32 %v443, %v1420
        %v1422 = vand.u32 %v1421, 4294901760
        %1423 = vmatpush1.msra.mxu0 %v1422
        %1424 = vmatprep.subr.mxu0 0.0
        %v1425 = vand.u32 %v442, 4294901760
        %v1426 = vsub.f32 %v442, %v1425
        %v1427 = vand.u32 %v1426, 4294901760
        %1428 = vmatpush1.msra.mxu0 %v1427
        %1429 = vmatprep.subr.mxu0 0.0
        %v1430 = vand.u32 %v441, 4294901760
        %v1431 = vsub.f32 %v441, %v1430
        %v1432 = vand.u32 %v1431, 4294901760
        %1433 = vmatpush1.msra.mxu0 %v1432
        %1434 = vmatprep.subr.mxu0 0.0
        %v1435 = vand.u32 %v440, 4294901760
        %v1436 = vsub.f32 %v440, %v1435
        %v1437 = vand.u32 %v1436, 4294901760
        %1438 = vmatpush1.msra.mxu0 %v1437
        %1439 = vmatprep.subr.mxu0 0.0
        %v1440 = vand.u32 %v439, 4294901760
        %v1441 = vsub.f32 %v439, %v1440
        %v1442 = vand.u32 %v1441, 4294901760
        %1443 = vmatpush1.msra.mxu0 %v1442
        %1444 = vmatprep.subr.mxu0 0.0
        %v1445 = vand.u32 %v438, 4294901760
        %v1446 = vsub.f32 %v438, %v1445
        %v1447 = vand.u32 %v1446, 4294901760
        %1448 = vmatpush1.msra.mxu0 %v1447
        %1449 = vmatprep.subr.mxu0 0.0
        %v1450 = vand.u32 %v437, 4294901760
        %v1451 = vsub.f32 %v437, %v1450
        %v1452 = vand.u32 %v1451, 4294901760
        %1453 = vmatpush1.msra.mxu0 %v1452
        %1454 = vmatprep.subr.mxu0 0.0
        %1455 = vmatpush2.msra.mxu0 0.0
        %1456 = vmatprep.subr.mxu0 0.0
        %1457 = vmatpush2.msra.mxu0 0.0
        %1458 = vmatprep.subr.mxu0 0.0
        %1459 = vmatpush2.msra.mxu0 0.0
        %1460 = vmatprep.subr.mxu0 0.0
        %1461 = vmatpush2.msra.mxu0 0.0
        %1462 = vmatprep.subr.mxu0 0.0
        %1463 = vmatpush2.msra.mxu0 0.0
        %1464 = vmatprep.subr.mxu0 0.0
        %1465 = vmatpush2.msra.mxu0 0.0
        %1466 = vmatprep.subr.mxu0 0.0
        %1467 = vmatpush2.msra.mxu0 0.0
        %1468 = vmatprep.subr.mxu0 0.0
        %1469 = vmatpush2.msra.mxu0 0.0
        %1470 = vmatprep.subr.mxu0 0.0
        %1471 = vmatpush2.msra.mxu0 0.0
        %1472 = vmatprep.subr.mxu0 0.0
        %1473 = vmatpush2.msra.mxu0 0.0
        %1474 = vmatprep.subr.mxu0 0.0
        %1475 = vmatpush2.msra.mxu0 0.0
        %1476 = vmatprep.subr.mxu0 0.0
        %1477 = vmatpush2.msra.mxu0 0.0
        %1478 = vmatprep.subr.mxu0 0.0
        %1479 = vmatpush2.msra.mxu0 0.0
        %1480 = vmatprep.subr.mxu0 0.0
        %1481 = vmatpush2.msra.mxu0 0.0
        %1482 = vmatprep.subr.mxu0 0.0
        %1483 = vmatpush2.msra.mxu0 0.0
        %1484 = vmatprep.subr.mxu0 0.0
        %1485 = vmatpush2.msra.mxu0 0.0
        %1486 = vmatprep.mubr.f32.mxu0 0.0
        %v1487 = vand.u32 %v459, 4294901760
        %1488 = vmatmul.mubr.f32.gmra.mxu0 %v1487
        %v1489 = vpop.f32.mrf.mxu0
        %v1490 = vadd.f32 %v1260, %v1489
        %v1491 = vpop.f32.mrf.mxu0
        %1492 = vmatprep.mubr.f32.mxu0 0.0
        %v1493 = vand.u32 %v462, 4294901760
        %1494 = vmatmul.mubr.f32.gmra.mxu0 %v1493
        %v1495 = vpop.f32.mrf.mxu0
        %v1496 = vadd.f32 %v1268, %v1495
        %v1497 = vpop.f32.mrf.mxu0
        %1498 = vmatprep.mubr.f32.mxu0 0.0
        %v1499 = vand.u32 %v465, 4294901760
        %1500 = vmatmul.mubr.f32.gmra.mxu0 %v1499
        %v1501 = vpop.f32.mrf.mxu0
        %v1502 = vadd.f32 %v1276, %v1501
        %v1503 = vpop.f32.mrf.mxu0
        %1504 = vmatprep.mubr.f32.mxu0 0.0
        %v1505 = vand.u32 %v468, 4294901760
        %1506 = vmatmul.mubr.f32.gmra.mxu0 %v1505
        %v1507 = vpop.f32.mrf.mxu0
        %v1508 = vadd.f32 %v1284, %v1507
        %v1509 = vpop.f32.mrf.mxu0
        %1510 = vmatprep.mubr.f32.mxu0 0.0
        %v1511 = vand.u32 %v471, 4294901760
        %1512 = vmatmul.mubr.f32.gmra.mxu0 %v1511
        %v1513 = vpop.f32.mrf.mxu0
        %v1514 = vadd.f32 %v1292, %v1513
        %v1515 = vpop.f32.mrf.mxu0
        %1516 = vmatprep.mubr.f32.mxu0 0.0
        %v1517 = vand.u32 %v474, 4294901760
        %1518 = vmatmul.mubr.f32.gmra.mxu0 %v1517
        %v1519 = vpop.f32.mrf.mxu0
        %v1520 = vadd.f32 %v1300, %v1519
        %v1521 = vpop.f32.mrf.mxu0
        %1522 = vmatprep.mubr.f32.mxu0 0.0
        %v1523 = vand.u32 %v477, 4294901760
        %1524 = vmatmul.mubr.f32.gmra.mxu0 %v1523
        %v1525 = vpop.f32.mrf.mxu0
        %v1526 = vadd.f32 %v1308, %v1525
        %v1527 = vpop.f32.mrf.mxu0
        %1528 = vmatprep.mubr.f32.mxu0 0.0
        %v1529 = vand.u32 %v480, 4294901760
        %1530 = vmatmul.mubr.f32.gmra.mxu0 %v1529
        %v1531 = vpop.f32.mrf.mxu0
        %v1532 = vadd.f32 %v1316, %v1531
        %v1533 = vpop.f32.mrf.mxu0
        %1534 = vmatprep.mubr.f32.mxu0 0.0
        %v1535 = vand.u32 %v483, 4294901760
        %1536 = vmatmul.mubr.f32.gmra.mxu0 %v1535
        %v1537 = vpop.f32.mrf.mxu0
        %v1538 = vadd.f32 %v1324, %v1537
        %v1539 = vpop.f32.mrf.mxu0
        %1540 = vmatprep.mubr.f32.mxu0 0.0
        %v1541 = vand.u32 %v486, 4294901760
        %1542 = vmatmul.mubr.f32.gmra.mxu0 %v1541
        %v1543 = vpop.f32.mrf.mxu0
        %v1544 = vadd.f32 %v1332, %v1543
        %v1545 = vpop.f32.mrf.mxu0
        %1546 = vmatprep.mubr.f32.mxu0 0.0
        %v1547 = vand.u32 %v489, 4294901760
        %1548 = vmatmul.mubr.f32.gmra.mxu0 %v1547
        %v1549 = vpop.f32.mrf.mxu0
        %v1550 = vadd.f32 %v1340, %v1549
        %v1551 = vpop.f32.mrf.mxu0
        %1552 = vmatprep.mubr.f32.mxu0 0.0
        %v1553 = vand.u32 %v492, 4294901760
        %1554 = vmatmul.mubr.f32.gmra.mxu0 %v1553
        %v1555 = vpop.f32.mrf.mxu0
        %v1556 = vadd.f32 %v1348, %v1555
        %v1557 = vpop.f32.mrf.mxu0
        %1558 = vmatprep.mubr.f32.mxu0 0.0
        %v1559 = vand.u32 %v495, 4294901760
        %1560 = vmatmul.mubr.f32.gmra.mxu0 %v1559
        %v1561 = vpop.f32.mrf.mxu0
        %v1562 = vadd.f32 %v1356, %v1561
        %v1563 = vpop.f32.mrf.mxu0
        %1564 = vmatprep.mubr.f32.mxu0 0.0
        %v1565 = vand.u32 %v498, 4294901760
        %1566 = vmatmul.mubr.f32.gmra.mxu0 %v1565
        %v1567 = vpop.f32.mrf.mxu0
        %v1568 = vadd.f32 %v1364, %v1567
        %v1569 = vpop.f32.mrf.mxu0
        %1570 = vmatprep.mubr.f32.mxu0 0.0
        %v1571 = vand.u32 %v501, 4294901760
        %1572 = vmatmul.mubr.f32.gmra.mxu0 %v1571
        %v1573 = vpop.f32.mrf.mxu0
        %v1574 = vadd.f32 %v1372, %v1573
        %v1575 = vpop.f32.mrf.mxu0
        %1576 = vmatprep.mubr.f32.mxu0 0.0
        %v1577 = vand.u32 %v504, 4294901760
        %1578 = vmatmul.mubr.f32.gmra.mxu0 %v1577
        %v1579 = vpop.f32.mrf.mxu0
        %v1580 = vadd.f32 %v1380, %v1579
        %v1581 = vpop.f32.mrf.mxu0
        %1582 = vdwg.mxu0
        %1583 = vmatprep.subr.mxu0 0.0
        %1584 = vmatpush1.msra.mxu0 0.0
        %1585 = vmatprep.subr.mxu0 0.0
        %1586 = vmatpush1.msra.mxu0 0.0
        %1587 = vmatprep.subr.mxu0 0.0
        %1588 = vmatpush1.msra.mxu0 0.0
        %1589 = vmatprep.subr.mxu0 0.0
        %v1590 = vand.u32 %v508, 4294901760
        %1591 = vmatpush1.msra.mxu0 %v1590
        %1592 = vmatprep.subr.mxu0 0.0
        %v1593 = vand.u32 %v448, 4294901760
        %1594 = vmatpush1.msra.mxu0 %v1593
        %1595 = vmatprep.subr.mxu0 0.0
        %v1596 = vand.u32 %v447, 4294901760
        %1597 = vmatpush1.msra.mxu0 %v1596
        %1598 = vmatprep.subr.mxu0 0.0
        %v1599 = vand.u32 %v446, 4294901760
        %1600 = vmatpush1.msra.mxu0 %v1599
        %1601 = vmatprep.subr.mxu0 0.0
        %v1602 = vand.u32 %v445, 4294901760
        %1603 = vmatpush1.msra.mxu0 %v1602
        %1604 = vmatprep.subr.mxu0 0.0
        %v1605 = vand.u32 %v444, 4294901760
        %1606 = vmatpush1.msra.mxu0 %v1605
        %1607 = vmatprep.subr.mxu0 0.0
        %v1608 = vand.u32 %v443, 4294901760
        %1609 = vmatpush1.msra.mxu0 %v1608
        %1610 = vmatprep.subr.mxu0 0.0
        %v1611 = vand.u32 %v442, 4294901760
        %1612 = vmatpush1.msra.mxu0 %v1611
        %1613 = vmatprep.subr.mxu0 0.0
        %v1614 = vand.u32 %v441, 4294901760
        %1615 = vmatpush1.msra.mxu0 %v1614
        %1616 = vmatprep.subr.mxu0 0.0
        %v1617 = vand.u32 %v440, 4294901760
        %1618 = vmatpush1.msra.mxu0 %v1617
        %1619 = vmatprep.subr.mxu0 0.0
        %v1620 = vand.u32 %v439, 4294901760
        %1621 = vmatpush1.msra.mxu0 %v1620
        %1622 = vmatprep.subr.mxu0 0.0
        %v1623 = vand.u32 %v438, 4294901760
        %1624 = vmatpush1.msra.mxu0 %v1623
        %1625 = vmatprep.subr.mxu0 0.0
        %v1626 = vand.u32 %v437, 4294901760
        %1627 = vmatpush1.msra.mxu0 %v1626
        %1628 = vmatprep.subr.mxu0 0.0
        %1629 = vmatpush2.msra.mxu0 0.0
        %1630 = vmatprep.subr.mxu0 0.0
        %1631 = vmatpush2.msra.mxu0 0.0
        %1632 = vmatprep.subr.mxu0 0.0
        %1633 = vmatpush2.msra.mxu0 0.0
        %1634 = vmatprep.subr.mxu0 0.0
        %1635 = vmatpush2.msra.mxu0 0.0
        %1636 = vmatprep.subr.mxu0 0.0
        %1637 = vmatpush2.msra.mxu0 0.0
        %1638 = vmatprep.subr.mxu0 0.0
        %1639 = vmatpush2.msra.mxu0 0.0
        %1640 = vmatprep.subr.mxu0 0.0
        %1641 = vmatpush2.msra.mxu0 0.0
        %1642 = vmatprep.subr.mxu0 0.0
        %1643 = vmatpush2.msra.mxu0 0.0
        %1644 = vmatprep.subr.mxu0 0.0
        %1645 = vmatpush2.msra.mxu0 0.0
        %1646 = vmatprep.subr.mxu0 0.0
        %1647 = vmatpush2.msra.mxu0 0.0
        %1648 = vmatprep.subr.mxu0 0.0
        %1649 = vmatpush2.msra.mxu0 0.0
        %1650 = vmatprep.subr.mxu0 0.0
        %1651 = vmatpush2.msra.mxu0 0.0
        %1652 = vmatprep.subr.mxu0 0.0
        %1653 = vmatpush2.msra.mxu0 0.0
        %1654 = vmatprep.subr.mxu0 0.0
        %1655 = vmatpush2.msra.mxu0 0.0
        %1656 = vmatprep.subr.mxu0 0.0
        %1657 = vmatpush2.msra.mxu0 0.0
        %1658 = vmatprep.subr.mxu0 0.0
        %1659 = vmatpush2.msra.mxu0 0.0
        %1660 = vmatprep.mubr.f32.mxu0 0.0
        %v1661 = vand.u32 %v459, 4294901760
        %1662 = vmatmul.mubr.f32.gmra.mxu0 %v1661
        %v1663 = vpop.f32.mrf.mxu0
        %v1664 = vadd.f32 %v1490, %v1663
        %v1665 = vpop.f32.mrf.mxu0
        %1666 = vmatprep.mubr.f32.mxu0 0.0
        %v1667 = vand.u32 %v462, 4294901760
        %1668 = vmatmul.mubr.f32.gmra.mxu0 %v1667
        %v1669 = vpop.f32.mrf.mxu0
        %v1670 = vadd.f32 %v1496, %v1669
        %v1671 = vpop.f32.mrf.mxu0
        %1672 = vmatprep.mubr.f32.mxu0 0.0
        %v1673 = vand.u32 %v465, 4294901760
        %1674 = vmatmul.mubr.f32.gmra.mxu0 %v1673
        %v1675 = vpop.f32.mrf.mxu0
        %v1676 = vadd.f32 %v1502, %v1675
        %v1677 = vpop.f32.mrf.mxu0
        %1678 = vmatprep.mubr.f32.mxu0 0.0
        %v1679 = vand.u32 %v468, 4294901760
        %1680 = vmatmul.mubr.f32.gmra.mxu0 %v1679
        %v1681 = vpop.f32.mrf.mxu0
        %v1682 = vadd.f32 %v1508, %v1681
        %v1683 = vpop.f32.mrf.mxu0
        %1684 = vmatprep.mubr.f32.mxu0 0.0
        %v1685 = vand.u32 %v471, 4294901760
        %1686 = vmatmul.mubr.f32.gmra.mxu0 %v1685
        %v1687 = vpop.f32.mrf.mxu0
        %v1688 = vadd.f32 %v1514, %v1687
        %v1689 = vpop.f32.mrf.mxu0
        %1690 = vmatprep.mubr.f32.mxu0 0.0
        %v1691 = vand.u32 %v474, 4294901760
        %1692 = vmatmul.mubr.f32.gmra.mxu0 %v1691
        %v1693 = vpop.f32.mrf.mxu0
        %v1694 = vadd.f32 %v1520, %v1693
        %v1695 = vpop.f32.mrf.mxu0
        %1696 = vmatprep.mubr.f32.mxu0 0.0
        %v1697 = vand.u32 %v477, 4294901760
        %1698 = vmatmul.mubr.f32.gmra.mxu0 %v1697
        %v1699 = vpop.f32.mrf.mxu0
        %v1700 = vadd.f32 %v1526, %v1699
        %v1701 = vpop.f32.mrf.mxu0
        %1702 = vmatprep.mubr.f32.mxu0 0.0
        %v1703 = vand.u32 %v480, 4294901760
        %1704 = vmatmul.mubr.f32.gmra.mxu0 %v1703
        %v1705 = vpop.f32.mrf.mxu0
        %v1706 = vadd.f32 %v1532, %v1705
        %v1707 = vpop.f32.mrf.mxu0
        %1708 = vmatprep.mubr.f32.mxu0 0.0
        %v1709 = vand.u32 %v483, 4294901760
        %1710 = vmatmul.mubr.f32.gmra.mxu0 %v1709
        %v1711 = vpop.f32.mrf.mxu0
        %v1712 = vadd.f32 %v1538, %v1711
        %v1713 = vpop.f32.mrf.mxu0
        %1714 = vmatprep.mubr.f32.mxu0 0.0
        %v1715 = vand.u32 %v486, 4294901760
        %1716 = vmatmul.mubr.f32.gmra.mxu0 %v1715
        %v1717 = vpop.f32.mrf.mxu0
        %v1718 = vadd.f32 %v1544, %v1717
        %v1719 = vpop.f32.mrf.mxu0
        %1720 = vmatprep.mubr.f32.mxu0 0.0
        %v1721 = vand.u32 %v489, 4294901760
        %1722 = vmatmul.mubr.f32.gmra.mxu0 %v1721
        %v1723 = vpop.f32.mrf.mxu0
        %v1724 = vadd.f32 %v1550, %v1723
        %v1725 = vpop.f32.mrf.mxu0
        %1726 = vmatprep.mubr.f32.mxu0 0.0
        %v1727 = vand.u32 %v492, 4294901760
        %1728 = vmatmul.mubr.f32.gmra.mxu0 %v1727
        %v1729 = vpop.f32.mrf.mxu0
        %v1730 = vadd.f32 %v1556, %v1729
        %v1731 = vpop.f32.mrf.mxu0
        %1732 = vmatprep.mubr.f32.mxu0 0.0
        %v1733 = vand.u32 %v495, 4294901760
        %1734 = vmatmul.mubr.f32.gmra.mxu0 %v1733
        %v1735 = vpop.f32.mrf.mxu0
        %v1736 = vadd.f32 %v1562, %v1735
        %v1737 = vpop.f32.mrf.mxu0
        %1738 = vmatprep.mubr.f32.mxu0 0.0
        %v1739 = vand.u32 %v498, 4294901760
        %1740 = vmatmul.mubr.f32.gmra.mxu0 %v1739
        %v1741 = vpop.f32.mrf.mxu0
        %v1742 = vadd.f32 %v1568, %v1741
        %v1743 = vpop.f32.mrf.mxu0
        %1744 = vmatprep.mubr.f32.mxu0 0.0
        %v1745 = vand.u32 %v501, 4294901760
        %1746 = vmatmul.mubr.f32.gmra.mxu0 %v1745
        %v1747 = vpop.f32.mrf.mxu0
        %v1748 = vadd.f32 %v1574, %v1747
        %v1749 = vpop.f32.mrf.mxu0
        %1750 = vmatprep.mubr.f32.mxu0 0.0
        %v1751 = vand.u32 %v504, 4294901760
        %1752 = vmatmul.mubr.f32.gmra.mxu0 %v1751
        %v1753 = vpop.f32.mrf.mxu0
        %v1754 = vadd.f32 %v1580, %v1753
        %v1755 = vpop.f32.mrf.mxu0
        %1756 = vdwg.mxu0
        %v1757 = vmax.f32 %v1664, 0.0
        %v1758 = vmax.f32 %v1670, 0.0
        %v1759 = vmax.f32 %v1676, 0.0
        %v1760 = vmax.f32 %v1682, 0.0
        %v1761 = vmax.f32 %v1688, 0.0
        %v1762 = vmax.f32 %v1694, 0.0
        %v1763 = vmax.f32 %v1700, 0.0
        %v1764 = vmax.f32 %v1706, 0.0
        %v1765 = vmax.f32 %v1712, 0.0
        %v1766 = vmax.f32 %v1718, 0.0
        %v1767 = vmax.f32 %v1724, 0.0
        %v1768 = vmax.f32 %v1730, 0.0
        %v1769 = vmax.f32 %v1736, 0.0
        %v1770 = vmax.f32 %v1742, 0.0
        %v1771 = vmax.f32 %v1748, 0.0
        %v1772 = vmax.f32 %v1754, 0.0
        %v1773 = vld [vmem:[#allocation6] sm:$0xff]
        %v1774 = vld [vmem:[#allocation6 + $0x8] sm:$0xff]
        %v1775 = vld [vmem:[#allocation6 + $0x10] sm:$0xff]
        %v1776 = vld [vmem:[#allocation6 + $0x18] sm:$0xff]
        %v1777 = vld [vmem:[#allocation6 + $0x20] sm:$0xff]
        %v1778 = vld [vmem:[#allocation6 + $0x28] sm:$0xff]
        %v1779 = vld [vmem:[#allocation6 + $0x30] sm:$0xff]
        %v1780 = vld [vmem:[#allocation6 + $0x38] sm:$0xff]
        %v1781 = vld [vmem:[#allocation6 + $0x40] sm:$0xff]
        %v1782 = vld [vmem:[#allocation6 + $0x48] sm:$0xff]
        %v1783 = vld [vmem:[#allocation6 + $0x50] sm:$0xff]
        %v1784 = vld [vmem:[#allocation6 + $0x58] sm:$0xff]
        %v1785 = vld [vmem:[#allocation6 + $0x60] sm:$0xff]
        %v1786 = vld [vmem:[#allocation6 + $0x68] sm:$0xff]
        %v1787 = vld [vmem:[#allocation6 + $0x70] sm:$0xff]
        %v1788 = vld [vmem:[#allocation6 + $0x78] sm:$0xff]
        %v1789 = vld [vmem:[%s4] sm:$0x1]
        %v1791 = vlaneseq
        %v1792 = vshrl.u32 %v1791, 7
        %v1793 = vsub.s32 0, %v1792
        %v1794 = vrot.slane %v1789, %v1793
        %1796 = vmatprep.subr.mxu0 0.0
        %v1797 = vand.u32 %v1788, 4294901760
        %1798 = vmatpush1.msra.mxu0 %v1797
        %1799 = vmatprep.subr.mxu0 0.0
        %v1800 = vand.u32 %v1787, 4294901760
        %1801 = vmatpush1.msra.mxu0 %v1800
        %1802 = vmatprep.subr.mxu0 0.0
        %v1803 = vand.u32 %v1786, 4294901760
        %1804 = vmatpush1.msra.mxu0 %v1803
        %1805 = vmatprep.subr.mxu0 0.0
        %v1806 = vand.u32 %v1785, 4294901760
        %1807 = vmatpush1.msra.mxu0 %v1806
        %1808 = vmatprep.subr.mxu0 0.0
        %v1809 = vand.u32 %v1784, 4294901760
        %1810 = vmatpush1.msra.mxu0 %v1809
        %1811 = vmatprep.subr.mxu0 0.0
        %v1812 = vand.u32 %v1783, 4294901760
        %1813 = vmatpush1.msra.mxu0 %v1812
        %1814 = vmatprep.subr.mxu0 0.0
        %v1815 = vand.u32 %v1782, 4294901760
        %1816 = vmatpush1.msra.mxu0 %v1815
        %1817 = vmatprep.subr.mxu0 0.0
        %v1818 = vand.u32 %v1781, 4294901760
        %1819 = vmatpush1.msra.mxu0 %v1818
        %1820 = vmatprep.subr.mxu0 0.0
        %v1821 = vand.u32 %v1780, 4294901760
        %1822 = vmatpush1.msra.mxu0 %v1821
        %1823 = vmatprep.subr.mxu0 0.0
        %v1824 = vand.u32 %v1779, 4294901760
        %1825 = vmatpush1.msra.mxu0 %v1824
        %1826 = vmatprep.subr.mxu0 0.0
        %v1827 = vand.u32 %v1778, 4294901760
        %1828 = vmatpush1.msra.mxu0 %v1827
        %1829 = vmatprep.subr.mxu0 0.0
        %v1830 = vand.u32 %v1777, 4294901760
        %1831 = vmatpush1.msra.mxu0 %v1830
        %1832 = vmatprep.subr.mxu0 0.0
        %v1833 = vand.u32 %v1776, 4294901760
        %1834 = vmatpush1.msra.mxu0 %v1833
        %1835 = vmatprep.subr.mxu0 0.0
        %v1836 = vand.u32 %v1775, 4294901760
        %1837 = vmatpush1.msra.mxu0 %v1836
        %1838 = vmatprep.subr.mxu0 0.0
        %v1839 = vand.u32 %v1774, 4294901760
        %1840 = vmatpush1.msra.mxu0 %v1839
        %1841 = vmatprep.subr.mxu0 0.0
        %v1842 = vand.u32 %v1773, 4294901760
        %1843 = vmatpush1.msra.mxu0 %v1842
        %1844 = vmatprep.subr.mxu0 0.0
        %1845 = vmatpush2.msra.mxu0 0.0
        %1846 = vmatprep.subr.mxu0 0.0
        %1847 = vmatpush2.msra.mxu0 0.0
        %1848 = vmatprep.subr.mxu0 0.0
        %1849 = vmatpush2.msra.mxu0 0.0
        %1850 = vmatprep.subr.mxu0 0.0
        %1851 = vmatpush2.msra.mxu0 0.0
        %1852 = vmatprep.subr.mxu0 0.0
        %1853 = vmatpush2.msra.mxu0 0.0
        %1854 = vmatprep.subr.mxu0 0.0
        %1855 = vmatpush2.msra.mxu0 0.0
        %1856 = vmatprep.subr.mxu0 0.0
        %1857 = vmatpush2.msra.mxu0 0.0
        %1858 = vmatprep.subr.mxu0 0.0
        %1859 = vmatpush2.msra.mxu0 0.0
        %1860 = vmatprep.subr.mxu0 0.0
        %1861 = vmatpush2.msra.mxu0 0.0
        %1862 = vmatprep.subr.mxu0 0.0
        %1863 = vmatpush2.msra.mxu0 0.0
        %1864 = vmatprep.subr.mxu0 0.0
        %1865 = vmatpush2.msra.mxu0 0.0
        %1866 = vmatprep.subr.mxu0 0.0
        %1867 = vmatpush2.msra.mxu0 0.0
        %1868 = vmatprep.subr.mxu0 0.0
        %1869 = vmatpush2.msra.mxu0 0.0
        %1870 = vmatprep.subr.mxu0 0.0
        %1871 = vmatpush2.msra.mxu0 0.0
        %1872 = vmatprep.subr.mxu0 0.0
        %1873 = vmatpush2.msra.mxu0 0.0
        %1874 = vmatprep.subr.mxu0 0.0
        %1875 = vmatpush2.msra.mxu0 0.0
        %1876 = vmatprep.mubr.f32.mxu0 0.0
        %v1877 = vand.u32 %v1757, 4294901760
        %v1878 = vsub.f32 %v1757, %v1877
        %v1879 = vand.u32 %v1878, 4294901760
        %v1880 = vsub.f32 %v1878, %v1879
        %v1881 = vand.u32 %v1880, 4294901760
        %1882 = vmatmul.mubr.f32.gmra.mxu0 %v1881
        %v1883 = vpop.f32.mrf.mxu0
        %v1884 = vadd.f32 %v1794, %v1883
        %v1885 = vpop.f32.mrf.mxu0
        %1886 = vmatprep.mubr.f32.mxu0 0.0
        %v1887 = vand.u32 %v1758, 4294901760
        %v1888 = vsub.f32 %v1758, %v1887
        %v1889 = vand.u32 %v1888, 4294901760
        %v1890 = vsub.f32 %v1888, %v1889
        %v1891 = vand.u32 %v1890, 4294901760
        %1892 = vmatmul.mubr.f32.gmra.mxu0 %v1891
        %v1893 = vpop.f32.mrf.mxu0
        %v1894 = vadd.f32 %v1794, %v1893
        %v1895 = vpop.f32.mrf.mxu0
        %1896 = vmatprep.mubr.f32.mxu0 0.0
        %v1897 = vand.u32 %v1759, 4294901760
        %v1898 = vsub.f32 %v1759, %v1897
        %v1899 = vand.u32 %v1898, 4294901760
        %v1900 = vsub.f32 %v1898, %v1899
        %v1901 = vand.u32 %v1900, 4294901760
        %1902 = vmatmul.mubr.f32.gmra.mxu0 %v1901
        %v1903 = vpop.f32.mrf.mxu0
        %v1904 = vadd.f32 %v1794, %v1903
        %v1905 = vpop.f32.mrf.mxu0
        %1906 = vmatprep.mubr.f32.mxu0 0.0
        %v1907 = vand.u32 %v1760, 4294901760
        %v1908 = vsub.f32 %v1760, %v1907
        %v1909 = vand.u32 %v1908, 4294901760
        %v1910 = vsub.f32 %v1908, %v1909
        %v1911 = vand.u32 %v1910, 4294901760
        %1912 = vmatmul.mubr.f32.gmra.mxu0 %v1911
        %v1913 = vpop.f32.mrf.mxu0
        %v1914 = vadd.f32 %v1794, %v1913
        %v1915 = vpop.f32.mrf.mxu0
        %1916 = vmatprep.mubr.f32.mxu0 0.0
        %v1917 = vand.u32 %v1761, 4294901760
        %v1918 = vsub.f32 %v1761, %v1917
        %v1919 = vand.u32 %v1918, 4294901760
        %v1920 = vsub.f32 %v1918, %v1919
        %v1921 = vand.u32 %v1920, 4294901760
        %1922 = vmatmul.mubr.f32.gmra.mxu0 %v1921
        %v1923 = vpop.f32.mrf.mxu0
        %v1924 = vadd.f32 %v1794, %v1923
        %v1925 = vpop.f32.mrf.mxu0
        %1926 = vmatprep.mubr.f32.mxu0 0.0
        %v1927 = vand.u32 %v1762, 4294901760
        %v1928 = vsub.f32 %v1762, %v1927
        %v1929 = vand.u32 %v1928, 4294901760
        %v1930 = vsub.f32 %v1928, %v1929
        %v1931 = vand.u32 %v1930, 4294901760
        %1932 = vmatmul.mubr.f32.gmra.mxu0 %v1931
        %v1933 = vpop.f32.mrf.mxu0
        %v1934 = vadd.f32 %v1794, %v1933
        %v1935 = vpop.f32.mrf.mxu0
        %1936 = vmatprep.mubr.f32.mxu0 0.0
        %v1937 = vand.u32 %v1763, 4294901760
        %v1938 = vsub.f32 %v1763, %v1937
        %v1939 = vand.u32 %v1938, 4294901760
        %v1940 = vsub.f32 %v1938, %v1939
        %v1941 = vand.u32 %v1940, 4294901760
        %1942 = vmatmul.mubr.f32.gmra.mxu0 %v1941
        %v1943 = vpop.f32.mrf.mxu0
        %v1944 = vadd.f32 %v1794, %v1943
        %v1945 = vpop.f32.mrf.mxu0
        %1946 = vmatprep.mubr.f32.mxu0 0.0
        %v1947 = vand.u32 %v1764, 4294901760
        %v1948 = vsub.f32 %v1764, %v1947
        %v1949 = vand.u32 %v1948, 4294901760
        %v1950 = vsub.f32 %v1948, %v1949
        %v1951 = vand.u32 %v1950, 4294901760
        %1952 = vmatmul.mubr.f32.gmra.mxu0 %v1951
        %v1953 = vpop.f32.mrf.mxu0
        %v1954 = vadd.f32 %v1794, %v1953
        %v1955 = vpop.f32.mrf.mxu0
        %1956 = vmatprep.mubr.f32.mxu0 0.0
        %v1957 = vand.u32 %v1765, 4294901760
        %v1958 = vsub.f32 %v1765, %v1957
        %v1959 = vand.u32 %v1958, 4294901760
        %v1960 = vsub.f32 %v1958, %v1959
        %v1961 = vand.u32 %v1960, 4294901760
        %1962 = vmatmul.mubr.f32.gmra.mxu0 %v1961
        %v1963 = vpop.f32.mrf.mxu0
        %v1964 = vadd.f32 %v1794, %v1963
        %v1965 = vpop.f32.mrf.mxu0
        %1966 = vmatprep.mubr.f32.mxu0 0.0
        %v1967 = vand.u32 %v1766, 4294901760
        %v1968 = vsub.f32 %v1766, %v1967
        %v1969 = vand.u32 %v1968, 4294901760
        %v1970 = vsub.f32 %v1968, %v1969
        %v1971 = vand.u32 %v1970, 4294901760
        %1972 = vmatmul.mubr.f32.gmra.mxu0 %v1971
        %v1973 = vpop.f32.mrf.mxu0
        %v1974 = vadd.f32 %v1794, %v1973
        %v1975 = vpop.f32.mrf.mxu0
        %1976 = vmatprep.mubr.f32.mxu0 0.0
        %v1977 = vand.u32 %v1767, 4294901760
        %v1978 = vsub.f32 %v1767, %v1977
        %v1979 = vand.u32 %v1978, 4294901760
        %v1980 = vsub.f32 %v1978, %v1979
        %v1981 = vand.u32 %v1980, 4294901760
        %1982 = vmatmul.mubr.f32.gmra.mxu0 %v1981
        %v1983 = vpop.f32.mrf.mxu0
        %v1984 = vadd.f32 %v1794, %v1983
        %v1985 = vpop.f32.mrf.mxu0
        %1986 = vmatprep.mubr.f32.mxu0 0.0
        %v1987 = vand.u32 %v1768, 4294901760
        %v1988 = vsub.f32 %v1768, %v1987
        %v1989 = vand.u32 %v1988, 4294901760
        %v1990 = vsub.f32 %v1988, %v1989
        %v1991 = vand.u32 %v1990, 4294901760
        %1992 = vmatmul.mubr.f32.gmra.mxu0 %v1991
        %v1993 = vpop.f32.mrf.mxu0
        %v1994 = vadd.f32 %v1794, %v1993
        %v1995 = vpop.f32.mrf.mxu0
        %1996 = vmatprep.mubr.f32.mxu0 0.0
        %v1997 = vand.u32 %v1769, 4294901760
        %v1998 = vsub.f32 %v1769, %v1997
        %v1999 = vand.u32 %v1998, 4294901760
        %v2000 = vsub.f32 %v1998, %v1999
        %v2001 = vand.u32 %v2000, 4294901760
        %2002 = vmatmul.mubr.f32.gmra.mxu0 %v2001
        %v2003 = vpop.f32.mrf.mxu0
        %v2004 = vadd.f32 %v1794, %v2003
        %v2005 = vpop.f32.mrf.mxu0
        %2006 = vmatprep.mubr.f32.mxu0 0.0
        %v2007 = vand.u32 %v1770, 4294901760
        %v2008 = vsub.f32 %v1770, %v2007
        %v2009 = vand.u32 %v2008, 4294901760
        %v2010 = vsub.f32 %v2008, %v2009
        %v2011 = vand.u32 %v2010, 4294901760
        %2012 = vmatmul.mubr.f32.gmra.mxu0 %v2011
        %v2013 = vpop.f32.mrf.mxu0
        %v2014 = vadd.f32 %v1794, %v2013
        %v2015 = vpop.f32.mrf.mxu0
        %2016 = vmatprep.mubr.f32.mxu0 0.0
        %v2017 = vand.u32 %v1771, 4294901760
        %v2018 = vsub.f32 %v1771, %v2017
        %v2019 = vand.u32 %v2018, 4294901760
        %v2020 = vsub.f32 %v2018, %v2019
        %v2021 = vand.u32 %v2020, 4294901760
        %2022 = vmatmul.mubr.f32.gmra.mxu0 %v2021
        %v2023 = vpop.f32.mrf.mxu0
        %v2024 = vadd.f32 %v1794, %v2023
        %v2025 = vpop.f32.mrf.mxu0
        %2026 = vmatprep.mubr.f32.mxu0 0.0
        %v2027 = vand.u32 %v1772, 4294901760
        %v2028 = vsub.f32 %v1772, %v2027
        %v2029 = vand.u32 %v2028, 4294901760
        %v2030 = vsub.f32 %v2028, %v2029
        %v2031 = vand.u32 %v2030, 4294901760
        %2032 = vmatmul.mubr.f32.gmra.mxu0 %v2031
        %v2033 = vpop.f32.mrf.mxu0
        %v2034 = vadd.f32 %v1794, %v2033
        %v2035 = vpop.f32.mrf.mxu0
        %2036 = vdwg.mxu0
        %2037 = vmatprep.subr.mxu0 0.0
        %v2038 = vand.u32 %v1788, 4294901760
        %v2039 = vsub.f32 %v1788, %v2038
        %v2040 = vand.u32 %v2039, 4294901760
        %v2041 = vsub.f32 %v2039, %v2040
        %v2042 = vand.u32 %v2041, 4294901760
        %2043 = vmatpush1.msra.mxu0 %v2042
        %2044 = vmatprep.subr.mxu0 0.0
        %v2045 = vand.u32 %v1787, 4294901760
        %v2046 = vsub.f32 %v1787, %v2045
        %v2047 = vand.u32 %v2046, 4294901760
        %v2048 = vsub.f32 %v2046, %v2047
        %v2049 = vand.u32 %v2048, 4294901760
        %2050 = vmatpush1.msra.mxu0 %v2049
        %2051 = vmatprep.subr.mxu0 0.0
        %v2052 = vand.u32 %v1786, 4294901760
        %v2053 = vsub.f32 %v1786, %v2052
        %v2054 = vand.u32 %v2053, 4294901760
        %v2055 = vsub.f32 %v2053, %v2054
        %v2056 = vand.u32 %v2055, 4294901760
        %2057 = vmatpush1.msra.mxu0 %v2056
        %2058 = vmatprep.subr.mxu0 0.0
        %v2059 = vand.u32 %v1785, 4294901760
        %v2060 = vsub.f32 %v1785, %v2059
        %v2061 = vand.u32 %v2060, 4294901760
        %v2062 = vsub.f32 %v2060, %v2061
        %v2063 = vand.u32 %v2062, 4294901760
        %2064 = vmatpush1.msra.mxu0 %v2063
        %2065 = vmatprep.subr.mxu0 0.0
        %v2066 = vand.u32 %v1784, 4294901760
        %v2067 = vsub.f32 %v1784, %v2066
        %v2068 = vand.u32 %v2067, 4294901760
        %v2069 = vsub.f32 %v2067, %v2068
        %v2070 = vand.u32 %v2069, 4294901760
        %2071 = vmatpush1.msra.mxu0 %v2070
        %2072 = vmatprep.subr.mxu0 0.0
        %v2073 = vand.u32 %v1783, 4294901760
        %v2074 = vsub.f32 %v1783, %v2073
        %v2075 = vand.u32 %v2074, 4294901760
        %v2076 = vsub.f32 %v2074, %v2075
        %v2077 = vand.u32 %v2076, 4294901760
        %2078 = vmatpush1.msra.mxu0 %v2077
        %2079 = vmatprep.subr.mxu0 0.0
        %v2080 = vand.u32 %v1782, 4294901760
        %v2081 = vsub.f32 %v1782, %v2080
        %v2082 = vand.u32 %v2081, 4294901760
        %v2083 = vsub.f32 %v2081, %v2082
        %v2084 = vand.u32 %v2083, 4294901760
        %2085 = vmatpush1.msra.mxu0 %v2084
        %2086 = vmatprep.subr.mxu0 0.0
        %v2087 = vand.u32 %v1781, 4294901760
        %v2088 = vsub.f32 %v1781, %v2087
        %v2089 = vand.u32 %v2088, 4294901760
        %v2090 = vsub.f32 %v2088, %v2089
        %v2091 = vand.u32 %v2090, 4294901760
        %2092 = vmatpush1.msra.mxu0 %v2091
        %2093 = vmatprep.subr.mxu0 0.0
        %v2094 = vand.u32 %v1780, 4294901760
        %v2095 = vsub.f32 %v1780, %v2094
        %v2096 = vand.u32 %v2095, 4294901760
        %v2097 = vsub.f32 %v2095, %v2096
        %v2098 = vand.u32 %v2097, 4294901760
        %2099 = vmatpush1.msra.mxu0 %v2098
        %2100 = vmatprep.subr.mxu0 0.0
        %v2101 = vand.u32 %v1779, 4294901760
        %v2102 = vsub.f32 %v1779, %v2101
        %v2103 = vand.u32 %v2102, 4294901760
        %v2104 = vsub.f32 %v2102, %v2103
        %v2105 = vand.u32 %v2104, 4294901760
        %2106 = vmatpush1.msra.mxu0 %v2105
        %2107 = vmatprep.subr.mxu0 0.0
        %v2108 = vand.u32 %v1778, 4294901760
        %v2109 = vsub.f32 %v1778, %v2108
        %v2110 = vand.u32 %v2109, 4294901760
        %v2111 = vsub.f32 %v2109, %v2110
        %v2112 = vand.u32 %v2111, 4294901760
        %2113 = vmatpush1.msra.mxu0 %v2112
        %2114 = vmatprep.subr.mxu0 0.0
        %v2115 = vand.u32 %v1777, 4294901760
        %v2116 = vsub.f32 %v1777, %v2115
        %v2117 = vand.u32 %v2116, 4294901760
        %v2118 = vsub.f32 %v2116, %v2117
        %v2119 = vand.u32 %v2118, 4294901760
        %2120 = vmatpush1.msra.mxu0 %v2119
        %2121 = vmatprep.subr.mxu0 0.0
        %v2122 = vand.u32 %v1776, 4294901760
        %v2123 = vsub.f32 %v1776, %v2122
        %v2124 = vand.u32 %v2123, 4294901760
        %v2125 = vsub.f32 %v2123, %v2124
        %v2126 = vand.u32 %v2125, 4294901760
        %2127 = vmatpush1.msra.mxu0 %v2126
        %2128 = vmatprep.subr.mxu0 0.0
        %v2129 = vand.u32 %v1775, 4294901760
        %v2130 = vsub.f32 %v1775, %v2129
        %v2131 = vand.u32 %v2130, 4294901760
        %v2132 = vsub.f32 %v2130, %v2131
        %v2133 = vand.u32 %v2132, 4294901760
        %2134 = vmatpush1.msra.mxu0 %v2133
        %2135 = vmatprep.subr.mxu0 0.0
        %v2136 = vand.u32 %v1774, 4294901760
        %v2137 = vsub.f32 %v1774, %v2136
        %v2138 = vand.u32 %v2137, 4294901760
        %v2139 = vsub.f32 %v2137, %v2138
        %v2140 = vand.u32 %v2139, 4294901760
        %2141 = vmatpush1.msra.mxu0 %v2140
        %2142 = vmatprep.subr.mxu0 0.0
        %v2143 = vand.u32 %v1773, 4294901760
        %v2144 = vsub.f32 %v1773, %v2143
        %v2145 = vand.u32 %v2144, 4294901760
        %v2146 = vsub.f32 %v2144, %v2145
        %v2147 = vand.u32 %v2146, 4294901760
        %2148 = vmatpush1.msra.mxu0 %v2147
        %2149 = vmatprep.subr.mxu0 0.0
        %2150 = vmatpush2.msra.mxu0 0.0
        %2151 = vmatprep.subr.mxu0 0.0
        %2152 = vmatpush2.msra.mxu0 0.0
        %2153 = vmatprep.subr.mxu0 0.0
        %2154 = vmatpush2.msra.mxu0 0.0
        %2155 = vmatprep.subr.mxu0 0.0
        %2156 = vmatpush2.msra.mxu0 0.0
        %2157 = vmatprep.subr.mxu0 0.0
        %2158 = vmatpush2.msra.mxu0 0.0
        %2159 = vmatprep.subr.mxu0 0.0
        %2160 = vmatpush2.msra.mxu0 0.0
        %2161 = vmatprep.subr.mxu0 0.0
        %2162 = vmatpush2.msra.mxu0 0.0
        %2163 = vmatprep.subr.mxu0 0.0
        %2164 = vmatpush2.msra.mxu0 0.0
        %2165 = vmatprep.subr.mxu0 0.0
        %2166 = vmatpush2.msra.mxu0 0.0
        %2167 = vmatprep.subr.mxu0 0.0
        %2168 = vmatpush2.msra.mxu0 0.0
        %2169 = vmatprep.subr.mxu0 0.0
        %2170 = vmatpush2.msra.mxu0 0.0
        %2171 = vmatprep.subr.mxu0 0.0
        %2172 = vmatpush2.msra.mxu0 0.0
        %2173 = vmatprep.subr.mxu0 0.0
        %2174 = vmatpush2.msra.mxu0 0.0
        %2175 = vmatprep.subr.mxu0 0.0
        %2176 = vmatpush2.msra.mxu0 0.0
        %2177 = vmatprep.subr.mxu0 0.0
        %2178 = vmatpush2.msra.mxu0 0.0
        %2179 = vmatprep.subr.mxu0 0.0
        %2180 = vmatpush2.msra.mxu0 0.0
        %2181 = vmatprep.mubr.f32.mxu0 0.0
        %v2182 = vand.u32 %v1757, 4294901760
        %2183 = vmatmul.mubr.f32.gmra.mxu0 %v2182
        %v2184 = vpop.f32.mrf.mxu0
        %v2185 = vadd.f32 %v1884, %v2184
        %v2186 = vpop.f32.mrf.mxu0
        %2187 = vmatprep.mubr.f32.mxu0 0.0
        %v2188 = vand.u32 %v1758, 4294901760
        %2189 = vmatmul.mubr.f32.gmra.mxu0 %v2188
        %v2190 = vpop.f32.mrf.mxu0
        %v2191 = vadd.f32 %v1894, %v2190
        %v2192 = vpop.f32.mrf.mxu0
        %2193 = vmatprep.mubr.f32.mxu0 0.0
        %v2194 = vand.u32 %v1759, 4294901760
        %2195 = vmatmul.mubr.f32.gmra.mxu0 %v2194
        %v2196 = vpop.f32.mrf.mxu0
        %v2197 = vadd.f32 %v1904, %v2196
        %v2198 = vpop.f32.mrf.mxu0
        %2199 = vmatprep.mubr.f32.mxu0 0.0
        %v2200 = vand.u32 %v1760, 4294901760
        %2201 = vmatmul.mubr.f32.gmra.mxu0 %v2200
        %v2202 = vpop.f32.mrf.mxu0
        %v2203 = vadd.f32 %v1914, %v2202
        %v2204 = vpop.f32.mrf.mxu0
        %2205 = vmatprep.mubr.f32.mxu0 0.0
        %v2206 = vand.u32 %v1761, 4294901760
        %2207 = vmatmul.mubr.f32.gmra.mxu0 %v2206
        %v2208 = vpop.f32.mrf.mxu0
        %v2209 = vadd.f32 %v1924, %v2208
        %v2210 = vpop.f32.mrf.mxu0
        %2211 = vmatprep.mubr.f32.mxu0 0.0
        %v2212 = vand.u32 %v1762, 4294901760
        %2213 = vmatmul.mubr.f32.gmra.mxu0 %v2212
        %v2214 = vpop.f32.mrf.mxu0
        %v2215 = vadd.f32 %v1934, %v2214
        %v2216 = vpop.f32.mrf.mxu0
        %2217 = vmatprep.mubr.f32.mxu0 0.0
        %v2218 = vand.u32 %v1763, 4294901760
        %2219 = vmatmul.mubr.f32.gmra.mxu0 %v2218
        %v2220 = vpop.f32.mrf.mxu0
        %v2221 = vadd.f32 %v1944, %v2220
        %v2222 = vpop.f32.mrf.mxu0
        %2223 = vmatprep.mubr.f32.mxu0 0.0
        %v2224 = vand.u32 %v1764, 4294901760
        %2225 = vmatmul.mubr.f32.gmra.mxu0 %v2224
        %v2226 = vpop.f32.mrf.mxu0
        %v2227 = vadd.f32 %v1954, %v2226
        %v2228 = vpop.f32.mrf.mxu0
        %2229 = vmatprep.mubr.f32.mxu0 0.0
        %v2230 = vand.u32 %v1765, 4294901760
        %2231 = vmatmul.mubr.f32.gmra.mxu0 %v2230
        %v2232 = vpop.f32.mrf.mxu0
        %v2233 = vadd.f32 %v1964, %v2232
        %v2234 = vpop.f32.mrf.mxu0
        %2235 = vmatprep.mubr.f32.mxu0 0.0
        %v2236 = vand.u32 %v1766, 4294901760
        %2237 = vmatmul.mubr.f32.gmra.mxu0 %v2236
        %v2238 = vpop.f32.mrf.mxu0
        %v2239 = vadd.f32 %v1974, %v2238
        %v2240 = vpop.f32.mrf.mxu0
        %2241 = vmatprep.mubr.f32.mxu0 0.0
        %v2242 = vand.u32 %v1767, 4294901760
        %2243 = vmatmul.mubr.f32.gmra.mxu0 %v2242
        %v2244 = vpop.f32.mrf.mxu0
        %v2245 = vadd.f32 %v1984, %v2244
        %v2246 = vpop.f32.mrf.mxu0
        %2247 = vmatprep.mubr.f32.mxu0 0.0
        %v2248 = vand.u32 %v1768, 4294901760
        %2249 = vmatmul.mubr.f32.gmra.mxu0 %v2248
        %v2250 = vpop.f32.mrf.mxu0
        %v2251 = vadd.f32 %v1994, %v2250
        %v2252 = vpop.f32.mrf.mxu0
        %2253 = vmatprep.mubr.f32.mxu0 0.0
        %v2254 = vand.u32 %v1769, 4294901760
        %2255 = vmatmul.mubr.f32.gmra.mxu0 %v2254
        %v2256 = vpop.f32.mrf.mxu0
        %v2257 = vadd.f32 %v2004, %v2256
        %v2258 = vpop.f32.mrf.mxu0
        %2259 = vmatprep.mubr.f32.mxu0 0.0
        %v2260 = vand.u32 %v1770, 4294901760
        %2261 = vmatmul.mubr.f32.gmra.mxu0 %v2260
        %v2262 = vpop.f32.mrf.mxu0
        %v2263 = vadd.f32 %v2014, %v2262
        %v2264 = vpop.f32.mrf.mxu0
        %2265 = vmatprep.mubr.f32.mxu0 0.0
        %v2266 = vand.u32 %v1771, 4294901760
        %2267 = vmatmul.mubr.f32.gmra.mxu0 %v2266
        %v2268 = vpop.f32.mrf.mxu0
        %v2269 = vadd.f32 %v2024, %v2268
        %v2270 = vpop.f32.mrf.mxu0
        %2271 = vmatprep.mubr.f32.mxu0 0.0
        %v2272 = vand.u32 %v1772, 4294901760
        %2273 = vmatmul.mubr.f32.gmra.mxu0 %v2272
        %v2274 = vpop.f32.mrf.mxu0
        %v2275 = vadd.f32 %v2034, %v2274
        %v2276 = vpop.f32.mrf.mxu0
        %2277 = vdwg.mxu0
        %2278 = vmatprep.subr.mxu0 0.0
        %v2279 = vand.u32 %v1788, 4294901760
        %v2280 = vsub.f32 %v1788, %v2279
        %2281 = vmatpush1.msra.mxu0 %v2280
        %2282 = vmatprep.subr.mxu0 0.0
        %v2283 = vand.u32 %v1787, 4294901760
        %v2284 = vsub.f32 %v1787, %v2283
        %2285 = vmatpush1.msra.mxu0 %v2284
        %2286 = vmatprep.subr.mxu0 0.0
        %v2287 = vand.u32 %v1786, 4294901760
        %v2288 = vsub.f32 %v1786, %v2287
        %2289 = vmatpush1.msra.mxu0 %v2288
        %2290 = vmatprep.subr.mxu0 0.0
        %v2291 = vand.u32 %v1785, 4294901760
        %v2292 = vsub.f32 %v1785, %v2291
        %2293 = vmatpush1.msra.mxu0 %v2292
        %2294 = vmatprep.subr.mxu0 0.0
        %v2295 = vand.u32 %v1784, 4294901760
        %v2296 = vsub.f32 %v1784, %v2295
        %2297 = vmatpush1.msra.mxu0 %v2296
        %2298 = vmatprep.subr.mxu0 0.0
        %v2299 = vand.u32 %v1783, 4294901760
        %v2300 = vsub.f32 %v1783, %v2299
        %2301 = vmatpush1.msra.mxu0 %v2300
        %2302 = vmatprep.subr.mxu0 0.0
        %v2303 = vand.u32 %v1782, 4294901760
        %v2304 = vsub.f32 %v1782, %v2303
        %2305 = vmatpush1.msra.mxu0 %v2304
        %2306 = vmatprep.subr.mxu0 0.0
        %v2307 = vand.u32 %v1781, 4294901760
        %v2308 = vsub.f32 %v1781, %v2307
        %2309 = vmatpush1.msra.mxu0 %v2308
        %2310 = vmatprep.subr.mxu0 0.0
        %v2311 = vand.u32 %v1780, 4294901760
        %v2312 = vsub.f32 %v1780, %v2311
        %2313 = vmatpush1.msra.mxu0 %v2312
        %2314 = vmatprep.subr.mxu0 0.0
        %v2315 = vand.u32 %v1779, 4294901760
        %v2316 = vsub.f32 %v1779, %v2315
        %2317 = vmatpush1.msra.mxu0 %v2316
        %2318 = vmatprep.subr.mxu0 0.0
        %v2319 = vand.u32 %v1778, 4294901760
        %v2320 = vsub.f32 %v1778, %v2319
        %2321 = vmatpush1.msra.mxu0 %v2320
        %2322 = vmatprep.subr.mxu0 0.0
        %v2323 = vand.u32 %v1777, 4294901760
        %v2324 = vsub.f32 %v1777, %v2323
        %2325 = vmatpush1.msra.mxu0 %v2324
        %2326 = vmatprep.subr.mxu0 0.0
        %v2327 = vand.u32 %v1776, 4294901760
        %v2328 = vsub.f32 %v1776, %v2327
        %2329 = vmatpush1.msra.mxu0 %v2328
        %2330 = vmatprep.subr.mxu0 0.0
        %v2331 = vand.u32 %v1775, 4294901760
        %v2332 = vsub.f32 %v1775, %v2331
        %2333 = vmatpush1.msra.mxu0 %v2332
        %2334 = vmatprep.subr.mxu0 0.0
        %v2335 = vand.u32 %v1774, 4294901760
        %v2336 = vsub.f32 %v1774, %v2335
        %2337 = vmatpush1.msra.mxu0 %v2336
        %2338 = vmatprep.subr.mxu0 0.0
        %v2339 = vand.u32 %v1773, 4294901760
        %v2340 = vsub.f32 %v1773, %v2339
        %2341 = vmatpush1.msra.mxu0 %v2340
        %2342 = vmatprep.subr.mxu0 0.0
        %2343 = vmatpush2.msra.mxu0 0.0
        %2344 = vmatprep.subr.mxu0 0.0
        %2345 = vmatpush2.msra.mxu0 0.0
        %2346 = vmatprep.subr.mxu0 0.0
        %2347 = vmatpush2.msra.mxu0 0.0
        %2348 = vmatprep.subr.mxu0 0.0
        %2349 = vmatpush2.msra.mxu0 0.0
        %2350 = vmatprep.subr.mxu0 0.0
        %2351 = vmatpush2.msra.mxu0 0.0
        %2352 = vmatprep.subr.mxu0 0.0
        %2353 = vmatpush2.msra.mxu0 0.0
        %2354 = vmatprep.subr.mxu0 0.0
        %2355 = vmatpush2.msra.mxu0 0.0
        %2356 = vmatprep.subr.mxu0 0.0
        %2357 = vmatpush2.msra.mxu0 0.0
        %2358 = vmatprep.subr.mxu0 0.0
        %2359 = vmatpush2.msra.mxu0 0.0
        %2360 = vmatprep.subr.mxu0 0.0
        %2361 = vmatpush2.msra.mxu0 0.0
        %2362 = vmatprep.subr.mxu0 0.0
        %2363 = vmatpush2.msra.mxu0 0.0
        %2364 = vmatprep.subr.mxu0 0.0
        %2365 = vmatpush2.msra.mxu0 0.0
        %2366 = vmatprep.subr.mxu0 0.0
        %2367 = vmatpush2.msra.mxu0 0.0
        %2368 = vmatprep.subr.mxu0 0.0
        %2369 = vmatpush2.msra.mxu0 0.0
        %2370 = vmatprep.subr.mxu0 0.0
        %2371 = vmatpush2.msra.mxu0 0.0
        %2372 = vmatprep.subr.mxu0 0.0
        %2373 = vmatpush2.msra.mxu0 0.0
        %2374 = vmatprep.mubr.f32.mxu0 0.0
        %v2375 = vand.u32 %v1757, 4294901760
        %v2376 = vsub.f32 %v1757, %v2375
        %2377 = vmatmul.mubr.f32.gmra.mxu0 %v2376
        %v2378 = vpop.f32.mrf.mxu0
        %v2379 = vadd.f32 %v2185, %v2378
        %v2380 = vpop.f32.mrf.mxu0
        %2381 = vmatprep.mubr.f32.mxu0 0.0
        %v2382 = vand.u32 %v1758, 4294901760
        %v2383 = vsub.f32 %v1758, %v2382
        %2384 = vmatmul.mubr.f32.gmra.mxu0 %v2383
        %v2385 = vpop.f32.mrf.mxu0
        %v2386 = vadd.f32 %v2191, %v2385
        %v2387 = vpop.f32.mrf.mxu0
        %2388 = vmatprep.mubr.f32.mxu0 0.0
        %v2389 = vand.u32 %v1759, 4294901760
        %v2390 = vsub.f32 %v1759, %v2389
        %2391 = vmatmul.mubr.f32.gmra.mxu0 %v2390
        %v2392 = vpop.f32.mrf.mxu0
        %v2393 = vadd.f32 %v2197, %v2392
        %v2394 = vpop.f32.mrf.mxu0
        %2395 = vmatprep.mubr.f32.mxu0 0.0
        %v2396 = vand.u32 %v1760, 4294901760
        %v2397 = vsub.f32 %v1760, %v2396
        %2398 = vmatmul.mubr.f32.gmra.mxu0 %v2397
        %v2399 = vpop.f32.mrf.mxu0
        %v2400 = vadd.f32 %v2203, %v2399
        %v2401 = vpop.f32.mrf.mxu0
        %2402 = vmatprep.mubr.f32.mxu0 0.0
        %v2403 = vand.u32 %v1761, 4294901760
        %v2404 = vsub.f32 %v1761, %v2403
        %2405 = vmatmul.mubr.f32.gmra.mxu0 %v2404
        %v2406 = vpop.f32.mrf.mxu0
        %v2407 = vadd.f32 %v2209, %v2406
        %v2408 = vpop.f32.mrf.mxu0
        %2409 = vmatprep.mubr.f32.mxu0 0.0
        %v2410 = vand.u32 %v1762, 4294901760
        %v2411 = vsub.f32 %v1762, %v2410
        %2412 = vmatmul.mubr.f32.gmra.mxu0 %v2411
        %v2413 = vpop.f32.mrf.mxu0
        %v2414 = vadd.f32 %v2215, %v2413
        %v2415 = vpop.f32.mrf.mxu0
        %2416 = vmatprep.mubr.f32.mxu0 0.0
        %v2417 = vand.u32 %v1763, 4294901760
        %v2418 = vsub.f32 %v1763, %v2417
        %2419 = vmatmul.mubr.f32.gmra.mxu0 %v2418
        %v2420 = vpop.f32.mrf.mxu0
        %v2421 = vadd.f32 %v2221, %v2420
        %v2422 = vpop.f32.mrf.mxu0
        %2423 = vmatprep.mubr.f32.mxu0 0.0
        %v2424 = vand.u32 %v1764, 4294901760
        %v2425 = vsub.f32 %v1764, %v2424
        %2426 = vmatmul.mubr.f32.gmra.mxu0 %v2425
        %v2427 = vpop.f32.mrf.mxu0
        %v2428 = vadd.f32 %v2227, %v2427
        %v2429 = vpop.f32.mrf.mxu0
        %2430 = vmatprep.mubr.f32.mxu0 0.0
        %v2431 = vand.u32 %v1765, 4294901760
        %v2432 = vsub.f32 %v1765, %v2431
        %2433 = vmatmul.mubr.f32.gmra.mxu0 %v2432
        %v2434 = vpop.f32.mrf.mxu0
        %v2435 = vadd.f32 %v2233, %v2434
        %v2436 = vpop.f32.mrf.mxu0
        %2437 = vmatprep.mubr.f32.mxu0 0.0
        %v2438 = vand.u32 %v1766, 4294901760
        %v2439 = vsub.f32 %v1766, %v2438
        %2440 = vmatmul.mubr.f32.gmra.mxu0 %v2439
        %v2441 = vpop.f32.mrf.mxu0
        %v2442 = vadd.f32 %v2239, %v2441
        %v2443 = vpop.f32.mrf.mxu0
        %2444 = vmatprep.mubr.f32.mxu0 0.0
        %v2445 = vand.u32 %v1767, 4294901760
        %v2446 = vsub.f32 %v1767, %v2445
        %2447 = vmatmul.mubr.f32.gmra.mxu0 %v2446
        %v2448 = vpop.f32.mrf.mxu0
        %v2449 = vadd.f32 %v2245, %v2448
        %v2450 = vpop.f32.mrf.mxu0
        %2451 = vmatprep.mubr.f32.mxu0 0.0
        %v2452 = vand.u32 %v1768, 4294901760
        %v2453 = vsub.f32 %v1768, %v2452
        %2454 = vmatmul.mubr.f32.gmra.mxu0 %v2453
        %v2455 = vpop.f32.mrf.mxu0
        %v2456 = vadd.f32 %v2251, %v2455
        %v2457 = vpop.f32.mrf.mxu0
        %2458 = vmatprep.mubr.f32.mxu0 0.0
        %v2459 = vand.u32 %v1769, 4294901760
        %v2460 = vsub.f32 %v1769, %v2459
        %2461 = vmatmul.mubr.f32.gmra.mxu0 %v2460
        %v2462 = vpop.f32.mrf.mxu0
        %v2463 = vadd.f32 %v2257, %v2462
        %v2464 = vpop.f32.mrf.mxu0
        %2465 = vmatprep.mubr.f32.mxu0 0.0
        %v2466 = vand.u32 %v1770, 4294901760
        %v2467 = vsub.f32 %v1770, %v2466
        %2468 = vmatmul.mubr.f32.gmra.mxu0 %v2467
        %v2469 = vpop.f32.mrf.mxu0
        %v2470 = vadd.f32 %v2263, %v2469
        %v2471 = vpop.f32.mrf.mxu0
        %2472 = vmatprep.mubr.f32.mxu0 0.0
        %v2473 = vand.u32 %v1771, 4294901760
        %v2474 = vsub.f32 %v1771, %v2473
        %2475 = vmatmul.mubr.f32.gmra.mxu0 %v2474
        %v2476 = vpop.f32.mrf.mxu0
        %v2477 = vadd.f32 %v2269, %v2476
        %v2478 = vpop.f32.mrf.mxu0
        %2479 = vmatprep.mubr.f32.mxu0 0.0
        %v2480 = vand.u32 %v1772, 4294901760
        %v2481 = vsub.f32 %v1772, %v2480
        %2482 = vmatmul.mubr.f32.gmra.mxu0 %v2481
        %v2483 = vpop.f32.mrf.mxu0
        %v2484 = vadd.f32 %v2275, %v2483
        %v2485 = vpop.f32.mrf.mxu0
        %2486 = vdwg.mxu0
        %2487 = vmatprep.subr.mxu0 0.0
        %v2488 = vand.u32 %v1788, 4294901760
        %2489 = vmatpush1.msra.mxu0 %v2488
        %2490 = vmatprep.subr.mxu0 0.0
        %v2491 = vand.u32 %v1787, 4294901760
        %2492 = vmatpush1.msra.mxu0 %v2491
        %2493 = vmatprep.subr.mxu0 0.0
        %v2494 = vand.u32 %v1786, 4294901760
        %2495 = vmatpush1.msra.mxu0 %v2494
        %2496 = vmatprep.subr.mxu0 0.0
        %v2497 = vand.u32 %v1785, 4294901760
        %2498 = vmatpush1.msra.mxu0 %v2497
        %2499 = vmatprep.subr.mxu0 0.0
        %v2500 = vand.u32 %v1784, 4294901760
        %2501 = vmatpush1.msra.mxu0 %v2500
        %2502 = vmatprep.subr.mxu0 0.0
        %v2503 = vand.u32 %v1783, 4294901760
        %2504 = vmatpush1.msra.mxu0 %v2503
        %2505 = vmatprep.subr.mxu0 0.0
        %v2506 = vand.u32 %v1782, 4294901760
        %2507 = vmatpush1.msra.mxu0 %v2506
        %2508 = vmatprep.subr.mxu0 0.0
        %v2509 = vand.u32 %v1781, 4294901760
        %2510 = vmatpush1.msra.mxu0 %v2509
        %2511 = vmatprep.subr.mxu0 0.0
        %v2512 = vand.u32 %v1780, 4294901760
        %2513 = vmatpush1.msra.mxu0 %v2512
        %2514 = vmatprep.subr.mxu0 0.0
        %v2515 = vand.u32 %v1779, 4294901760
        %2516 = vmatpush1.msra.mxu0 %v2515
        %2517 = vmatprep.subr.mxu0 0.0
        %v2518 = vand.u32 %v1778, 4294901760
        %2519 = vmatpush1.msra.mxu0 %v2518
        %2520 = vmatprep.subr.mxu0 0.0
        %v2521 = vand.u32 %v1777, 4294901760
        %2522 = vmatpush1.msra.mxu0 %v2521
        %2523 = vmatprep.subr.mxu0 0.0
        %v2524 = vand.u32 %v1776, 4294901760
        %2525 = vmatpush1.msra.mxu0 %v2524
        %2526 = vmatprep.subr.mxu0 0.0
        %v2527 = vand.u32 %v1775, 4294901760
        %2528 = vmatpush1.msra.mxu0 %v2527
        %2529 = vmatprep.subr.mxu0 0.0
        %v2530 = vand.u32 %v1774, 4294901760
        %2531 = vmatpush1.msra.mxu0 %v2530
        %2532 = vmatprep.subr.mxu0 0.0
        %v2533 = vand.u32 %v1773, 4294901760
        %2534 = vmatpush1.msra.mxu0 %v2533
        %2535 = vmatprep.subr.mxu0 0.0
        %2536 = vmatpush2.msra.mxu0 0.0
        %2537 = vmatprep.subr.mxu0 0.0
        %2538 = vmatpush2.msra.mxu0 0.0
        %2539 = vmatprep.subr.mxu0 0.0
        %2540 = vmatpush2.msra.mxu0 0.0
        %2541 = vmatprep.subr.mxu0 0.0
        %2542 = vmatpush2.msra.mxu0 0.0
        %2543 = vmatprep.subr.mxu0 0.0
        %2544 = vmatpush2.msra.mxu0 0.0
        %2545 = vmatprep.subr.mxu0 0.0
        %2546 = vmatpush2.msra.mxu0 0.0
        %2547 = vmatprep.subr.mxu0 0.0
        %2548 = vmatpush2.msra.mxu0 0.0
        %2549 = vmatprep.subr.mxu0 0.0
        %2550 = vmatpush2.msra.mxu0 0.0
        %2551 = vmatprep.subr.mxu0 0.0
        %2552 = vmatpush2.msra.mxu0 0.0
        %2553 = vmatprep.subr.mxu0 0.0
        %2554 = vmatpush2.msra.mxu0 0.0
        %2555 = vmatprep.subr.mxu0 0.0
        %2556 = vmatpush2.msra.mxu0 0.0
        %2557 = vmatprep.subr.mxu0 0.0
        %2558 = vmatpush2.msra.mxu0 0.0
        %2559 = vmatprep.subr.mxu0 0.0
        %2560 = vmatpush2.msra.mxu0 0.0
        %2561 = vmatprep.subr.mxu0 0.0
        %2562 = vmatpush2.msra.mxu0 0.0
        %2563 = vmatprep.subr.mxu0 0.0
        %2564 = vmatpush2.msra.mxu0 0.0
        %2565 = vmatprep.subr.mxu0 0.0
        %2566 = vmatpush2.msra.mxu0 0.0
        %2567 = vmatprep.mubr.f32.mxu0 0.0
        %v2568 = vand.u32 %v1757, 4294901760
        %v2569 = vsub.f32 %v1757, %v2568
        %v2570 = vand.u32 %v2569, 4294901760
        %2571 = vmatmul.mubr.f32.gmra.mxu0 %v2570
        %v2572 = vpop.f32.mrf.mxu0
        %v2573 = vadd.f32 %v2379, %v2572
        %v2574 = vpop.f32.mrf.mxu0
        %2575 = vmatprep.mubr.f32.mxu0 0.0
        %v2576 = vand.u32 %v1758, 4294901760
        %v2577 = vsub.f32 %v1758, %v2576
        %v2578 = vand.u32 %v2577, 4294901760
        %2579 = vmatmul.mubr.f32.gmra.mxu0 %v2578
        %v2580 = vpop.f32.mrf.mxu0
        %v2581 = vadd.f32 %v2386, %v2580
        %v2582 = vpop.f32.mrf.mxu0
        %2583 = vmatprep.mubr.f32.mxu0 0.0
        %v2584 = vand.u32 %v1759, 4294901760
        %v2585 = vsub.f32 %v1759, %v2584
        %v2586 = vand.u32 %v2585, 4294901760
        %2587 = vmatmul.mubr.f32.gmra.mxu0 %v2586
        %v2588 = vpop.f32.mrf.mxu0
        %v2589 = vadd.f32 %v2393, %v2588
        %v2590 = vpop.f32.mrf.mxu0
        %2591 = vmatprep.mubr.f32.mxu0 0.0
        %v2592 = vand.u32 %v1760, 4294901760
        %v2593 = vsub.f32 %v1760, %v2592
        %v2594 = vand.u32 %v2593, 4294901760
        %2595 = vmatmul.mubr.f32.gmra.mxu0 %v2594
        %v2596 = vpop.f32.mrf.mxu0
        %v2597 = vadd.f32 %v2400, %v2596
        %v2598 = vpop.f32.mrf.mxu0
        %2599 = vmatprep.mubr.f32.mxu0 0.0
        %v2600 = vand.u32 %v1761, 4294901760
        %v2601 = vsub.f32 %v1761, %v2600
        %v2602 = vand.u32 %v2601, 4294901760
        %2603 = vmatmul.mubr.f32.gmra.mxu0 %v2602
        %v2604 = vpop.f32.mrf.mxu0
        %v2605 = vadd.f32 %v2407, %v2604
        %v2606 = vpop.f32.mrf.mxu0
        %2607 = vmatprep.mubr.f32.mxu0 0.0
        %v2608 = vand.u32 %v1762, 4294901760
        %v2609 = vsub.f32 %v1762, %v2608
        %v2610 = vand.u32 %v2609, 4294901760
        %2611 = vmatmul.mubr.f32.gmra.mxu0 %v2610
        %v2612 = vpop.f32.mrf.mxu0
        %v2613 = vadd.f32 %v2414, %v2612
        %v2614 = vpop.f32.mrf.mxu0
        %2615 = vmatprep.mubr.f32.mxu0 0.0
        %v2616 = vand.u32 %v1763, 4294901760
        %v2617 = vsub.f32 %v1763, %v2616
        %v2618 = vand.u32 %v2617, 4294901760
        %2619 = vmatmul.mubr.f32.gmra.mxu0 %v2618
        %v2620 = vpop.f32.mrf.mxu0
        %v2621 = vadd.f32 %v2421, %v2620
        %v2622 = vpop.f32.mrf.mxu0
        %2623 = vmatprep.mubr.f32.mxu0 0.0
        %v2624 = vand.u32 %v1764, 4294901760
        %v2625 = vsub.f32 %v1764, %v2624
        %v2626 = vand.u32 %v2625, 4294901760
        %2627 = vmatmul.mubr.f32.gmra.mxu0 %v2626
        %v2628 = vpop.f32.mrf.mxu0
        %v2629 = vadd.f32 %v2428, %v2628
        %v2630 = vpop.f32.mrf.mxu0
        %2631 = vmatprep.mubr.f32.mxu0 0.0
        %v2632 = vand.u32 %v1765, 4294901760
        %v2633 = vsub.f32 %v1765, %v2632
        %v2634 = vand.u32 %v2633, 4294901760
        %2635 = vmatmul.mubr.f32.gmra.mxu0 %v2634
        %v2636 = vpop.f32.mrf.mxu0
        %v2637 = vadd.f32 %v2435, %v2636
        %v2638 = vpop.f32.mrf.mxu0
        %2639 = vmatprep.mubr.f32.mxu0 0.0
        %v2640 = vand.u32 %v1766, 4294901760
        %v2641 = vsub.f32 %v1766, %v2640
        %v2642 = vand.u32 %v2641, 4294901760
        %2643 = vmatmul.mubr.f32.gmra.mxu0 %v2642
        %v2644 = vpop.f32.mrf.mxu0
        %v2645 = vadd.f32 %v2442, %v2644
        %v2646 = vpop.f32.mrf.mxu0
        %2647 = vmatprep.mubr.f32.mxu0 0.0
        %v2648 = vand.u32 %v1767, 4294901760
        %v2649 = vsub.f32 %v1767, %v2648
        %v2650 = vand.u32 %v2649, 4294901760
        %2651 = vmatmul.mubr.f32.gmra.mxu0 %v2650
        %v2652 = vpop.f32.mrf.mxu0
        %v2653 = vadd.f32 %v2449, %v2652
        %v2654 = vpop.f32.mrf.mxu0
        %2655 = vmatprep.mubr.f32.mxu0 0.0
        %v2656 = vand.u32 %v1768, 4294901760
        %v2657 = vsub.f32 %v1768, %v2656
        %v2658 = vand.u32 %v2657, 4294901760
        %2659 = vmatmul.mubr.f32.gmra.mxu0 %v2658
        %v2660 = vpop.f32.mrf.mxu0
        %v2661 = vadd.f32 %v2456, %v2660
        %v2662 = vpop.f32.mrf.mxu0
        %2663 = vmatprep.mubr.f32.mxu0 0.0
        %v2664 = vand.u32 %v1769, 4294901760
        %v2665 = vsub.f32 %v1769, %v2664
        %v2666 = vand.u32 %v2665, 4294901760
        %2667 = vmatmul.mubr.f32.gmra.mxu0 %v2666
        %v2668 = vpop.f32.mrf.mxu0
        %v2669 = vadd.f32 %v2463, %v2668
        %v2670 = vpop.f32.mrf.mxu0
        %2671 = vmatprep.mubr.f32.mxu0 0.0
        %v2672 = vand.u32 %v1770, 4294901760
        %v2673 = vsub.f32 %v1770, %v2672
        %v2674 = vand.u32 %v2673, 4294901760
        %2675 = vmatmul.mubr.f32.gmra.mxu0 %v2674
        %v2676 = vpop.f32.mrf.mxu0
        %v2677 = vadd.f32 %v2470, %v2676
        %v2678 = vpop.f32.mrf.mxu0
        %2679 = vmatprep.mubr.f32.mxu0 0.0
        %v2680 = vand.u32 %v1771, 4294901760
        %v2681 = vsub.f32 %v1771, %v2680
        %v2682 = vand.u32 %v2681, 4294901760
        %2683 = vmatmul.mubr.f32.gmra.mxu0 %v2682
        %v2684 = vpop.f32.mrf.mxu0
        %v2685 = vadd.f32 %v2477, %v2684
        %v2686 = vpop.f32.mrf.mxu0
        %2687 = vmatprep.mubr.f32.mxu0 0.0
        %v2688 = vand.u32 %v1772, 4294901760
        %v2689 = vsub.f32 %v1772, %v2688
        %v2690 = vand.u32 %v2689, 4294901760
        %2691 = vmatmul.mubr.f32.gmra.mxu0 %v2690
        %v2692 = vpop.f32.mrf.mxu0
        %v2693 = vadd.f32 %v2484, %v2692
        %v2694 = vpop.f32.mrf.mxu0
        %2695 = vdwg.mxu0
        %2696 = vmatprep.subr.mxu0 0.0
        %v2697 = vand.u32 %v1788, 4294901760
        %v2698 = vsub.f32 %v1788, %v2697
        %v2699 = vand.u32 %v2698, 4294901760
        %2700 = vmatpush1.msra.mxu0 %v2699
        %2701 = vmatprep.subr.mxu0 0.0
        %v2702 = vand.u32 %v1787, 4294901760
        %v2703 = vsub.f32 %v1787, %v2702
        %v2704 = vand.u32 %v2703, 4294901760
        %2705 = vmatpush1.msra.mxu0 %v2704
        %2706 = vmatprep.subr.mxu0 0.0
        %v2707 = vand.u32 %v1786, 4294901760
        %v2708 = vsub.f32 %v1786, %v2707
        %v2709 = vand.u32 %v2708, 4294901760
        %2710 = vmatpush1.msra.mxu0 %v2709
        %2711 = vmatprep.subr.mxu0 0.0
        %v2712 = vand.u32 %v1785, 4294901760
        %v2713 = vsub.f32 %v1785, %v2712
        %v2714 = vand.u32 %v2713, 4294901760
        %2715 = vmatpush1.msra.mxu0 %v2714
        %2716 = vmatprep.subr.mxu0 0.0
        %v2717 = vand.u32 %v1784, 4294901760
        %v2718 = vsub.f32 %v1784, %v2717
        %v2719 = vand.u32 %v2718, 4294901760
        %2720 = vmatpush1.msra.mxu0 %v2719
        %2721 = vmatprep.subr.mxu0 0.0
        %v2722 = vand.u32 %v1783, 4294901760
        %v2723 = vsub.f32 %v1783, %v2722
        %v2724 = vand.u32 %v2723, 4294901760
        %2725 = vmatpush1.msra.mxu0 %v2724
        %2726 = vmatprep.subr.mxu0 0.0
        %v2727 = vand.u32 %v1782, 4294901760
        %v2728 = vsub.f32 %v1782, %v2727
        %v2729 = vand.u32 %v2728, 4294901760
        %2730 = vmatpush1.msra.mxu0 %v2729
        %2731 = vmatprep.subr.mxu0 0.0
        %v2732 = vand.u32 %v1781, 4294901760
        %v2733 = vsub.f32 %v1781, %v2732
        %v2734 = vand.u32 %v2733, 4294901760
        %2735 = vmatpush1.msra.mxu0 %v2734
        %2736 = vmatprep.subr.mxu0 0.0
        %v2737 = vand.u32 %v1780, 4294901760
        %v2738 = vsub.f32 %v1780, %v2737
        %v2739 = vand.u32 %v2738, 4294901760
        %2740 = vmatpush1.msra.mxu0 %v2739
        %2741 = vmatprep.subr.mxu0 0.0
        %v2742 = vand.u32 %v1779, 4294901760
        %v2743 = vsub.f32 %v1779, %v2742
        %v2744 = vand.u32 %v2743, 4294901760
        %2745 = vmatpush1.msra.mxu0 %v2744
        %2746 = vmatprep.subr.mxu0 0.0
        %v2747 = vand.u32 %v1778, 4294901760
        %v2748 = vsub.f32 %v1778, %v2747
        %v2749 = vand.u32 %v2748, 4294901760
        %2750 = vmatpush1.msra.mxu0 %v2749
        %2751 = vmatprep.subr.mxu0 0.0
        %v2752 = vand.u32 %v1777, 4294901760
        %v2753 = vsub.f32 %v1777, %v2752
        %v2754 = vand.u32 %v2753, 4294901760
        %2755 = vmatpush1.msra.mxu0 %v2754
        %2756 = vmatprep.subr.mxu0 0.0
        %v2757 = vand.u32 %v1776, 4294901760
        %v2758 = vsub.f32 %v1776, %v2757
        %v2759 = vand.u32 %v2758, 4294901760
        %2760 = vmatpush1.msra.mxu0 %v2759
        %2761 = vmatprep.subr.mxu0 0.0
        %v2762 = vand.u32 %v1775, 4294901760
        %v2763 = vsub.f32 %v1775, %v2762
        %v2764 = vand.u32 %v2763, 4294901760
        %2765 = vmatpush1.msra.mxu0 %v2764
        %2766 = vmatprep.subr.mxu0 0.0
        %v2767 = vand.u32 %v1774, 4294901760
        %v2768 = vsub.f32 %v1774, %v2767
        %v2769 = vand.u32 %v2768, 4294901760
        %2770 = vmatpush1.msra.mxu0 %v2769
        %2771 = vmatprep.subr.mxu0 0.0
        %v2772 = vand.u32 %v1773, 4294901760
        %v2773 = vsub.f32 %v1773, %v2772
        %v2774 = vand.u32 %v2773, 4294901760
        %2775 = vmatpush1.msra.mxu0 %v2774
        %2776 = vmatprep.subr.mxu0 0.0
        %2777 = vmatpush2.msra.mxu0 0.0
        %2778 = vmatprep.subr.mxu0 0.0
        %2779 = vmatpush2.msra.mxu0 0.0
        %2780 = vmatprep.subr.mxu0 0.0
        %2781 = vmatpush2.msra.mxu0 0.0
        %2782 = vmatprep.subr.mxu0 0.0
        %2783 = vmatpush2.msra.mxu0 0.0
        %2784 = vmatprep.subr.mxu0 0.0
        %2785 = vmatpush2.msra.mxu0 0.0
        %2786 = vmatprep.subr.mxu0 0.0
        %2787 = vmatpush2.msra.mxu0 0.0
        %2788 = vmatprep.subr.mxu0 0.0
        %2789 = vmatpush2.msra.mxu0 0.0
        %2790 = vmatprep.subr.mxu0 0.0
        %2791 = vmatpush2.msra.mxu0 0.0
        %2792 = vmatprep.subr.mxu0 0.0
        %2793 = vmatpush2.msra.mxu0 0.0
        %2794 = vmatprep.subr.mxu0 0.0
        %2795 = vmatpush2.msra.mxu0 0.0
        %2796 = vmatprep.subr.mxu0 0.0
        %2797 = vmatpush2.msra.mxu0 0.0
        %2798 = vmatprep.subr.mxu0 0.0
        %2799 = vmatpush2.msra.mxu0 0.0
        %2800 = vmatprep.subr.mxu0 0.0
        %2801 = vmatpush2.msra.mxu0 0.0
        %2802 = vmatprep.subr.mxu0 0.0
        %2803 = vmatpush2.msra.mxu0 0.0
        %2804 = vmatprep.subr.mxu0 0.0
        %2805 = vmatpush2.msra.mxu0 0.0
        %2806 = vmatprep.subr.mxu0 0.0
        %2807 = vmatpush2.msra.mxu0 0.0
        %2808 = vmatprep.mubr.f32.mxu0 0.0
        %v2809 = vand.u32 %v1757, 4294901760
        %2810 = vmatmul.mubr.f32.gmra.mxu0 %v2809
        %v2811 = vpop.f32.mrf.mxu0
        %v2812 = vadd.f32 %v2573, %v2811
        %v2813 = vpop.f32.mrf.mxu0
        %2814 = vmatprep.mubr.f32.mxu0 0.0
        %v2815 = vand.u32 %v1758, 4294901760
        %2816 = vmatmul.mubr.f32.gmra.mxu0 %v2815
        %v2817 = vpop.f32.mrf.mxu0
        %v2818 = vadd.f32 %v2581, %v2817
        %v2819 = vpop.f32.mrf.mxu0
        %2820 = vmatprep.mubr.f32.mxu0 0.0
        %v2821 = vand.u32 %v1759, 4294901760
        %2822 = vmatmul.mubr.f32.gmra.mxu0 %v2821
        %v2823 = vpop.f32.mrf.mxu0
        %v2824 = vadd.f32 %v2589, %v2823
        %v2825 = vpop.f32.mrf.mxu0
        %2826 = vmatprep.mubr.f32.mxu0 0.0
        %v2827 = vand.u32 %v1760, 4294901760
        %2828 = vmatmul.mubr.f32.gmra.mxu0 %v2827
        %v2829 = vpop.f32.mrf.mxu0
        %v2830 = vadd.f32 %v2597, %v2829
        %v2831 = vpop.f32.mrf.mxu0
        %2832 = vmatprep.mubr.f32.mxu0 0.0
        %v2833 = vand.u32 %v1761, 4294901760
        %2834 = vmatmul.mubr.f32.gmra.mxu0 %v2833
        %v2835 = vpop.f32.mrf.mxu0
        %v2836 = vadd.f32 %v2605, %v2835
        %v2837 = vpop.f32.mrf.mxu0
        %2838 = vmatprep.mubr.f32.mxu0 0.0
        %v2839 = vand.u32 %v1762, 4294901760
        %2840 = vmatmul.mubr.f32.gmra.mxu0 %v2839
        %v2841 = vpop.f32.mrf.mxu0
        %v2842 = vadd.f32 %v2613, %v2841
        %v2843 = vpop.f32.mrf.mxu0
        %2844 = vmatprep.mubr.f32.mxu0 0.0
        %v2845 = vand.u32 %v1763, 4294901760
        %2846 = vmatmul.mubr.f32.gmra.mxu0 %v2845
        %v2847 = vpop.f32.mrf.mxu0
        %v2848 = vadd.f32 %v2621, %v2847
        %v2849 = vpop.f32.mrf.mxu0
        %2850 = vmatprep.mubr.f32.mxu0 0.0
        %v2851 = vand.u32 %v1764, 4294901760
        %2852 = vmatmul.mubr.f32.gmra.mxu0 %v2851
        %v2853 = vpop.f32.mrf.mxu0
        %v2854 = vadd.f32 %v2629, %v2853
        %v2855 = vpop.f32.mrf.mxu0
        %2856 = vmatprep.mubr.f32.mxu0 0.0
        %v2857 = vand.u32 %v1765, 4294901760
        %2858 = vmatmul.mubr.f32.gmra.mxu0 %v2857
        %v2859 = vpop.f32.mrf.mxu0
        %v2860 = vadd.f32 %v2637, %v2859
        %v2861 = vpop.f32.mrf.mxu0
        %2862 = vmatprep.mubr.f32.mxu0 0.0
        %v2863 = vand.u32 %v1766, 4294901760
        %2864 = vmatmul.mubr.f32.gmra.mxu0 %v2863
        %v2865 = vpop.f32.mrf.mxu0
        %v2866 = vadd.f32 %v2645, %v2865
        %v2867 = vpop.f32.mrf.mxu0
        %2868 = vmatprep.mubr.f32.mxu0 0.0
        %v2869 = vand.u32 %v1767, 4294901760
        %2870 = vmatmul.mubr.f32.gmra.mxu0 %v2869
        %v2871 = vpop.f32.mrf.mxu0
        %v2872 = vadd.f32 %v2653, %v2871
        %v2873 = vpop.f32.mrf.mxu0
        %2874 = vmatprep.mubr.f32.mxu0 0.0
        %v2875 = vand.u32 %v1768, 4294901760
        %2876 = vmatmul.mubr.f32.gmra.mxu0 %v2875
        %v2877 = vpop.f32.mrf.mxu0
        %v2878 = vadd.f32 %v2661, %v2877
        %v2879 = vpop.f32.mrf.mxu0
        %2880 = vmatprep.mubr.f32.mxu0 0.0
        %v2881 = vand.u32 %v1769, 4294901760
        %2882 = vmatmul.mubr.f32.gmra.mxu0 %v2881
        %v2883 = vpop.f32.mrf.mxu0
        %v2884 = vadd.f32 %v2669, %v2883
        %v2885 = vpop.f32.mrf.mxu0
        %2886 = vmatprep.mubr.f32.mxu0 0.0
        %v2887 = vand.u32 %v1770, 4294901760
        %2888 = vmatmul.mubr.f32.gmra.mxu0 %v2887
        %v2889 = vpop.f32.mrf.mxu0
        %v2890 = vadd.f32 %v2677, %v2889
        %v2891 = vpop.f32.mrf.mxu0
        %2892 = vmatprep.mubr.f32.mxu0 0.0
        %v2893 = vand.u32 %v1771, 4294901760
        %2894 = vmatmul.mubr.f32.gmra.mxu0 %v2893
        %v2895 = vpop.f32.mrf.mxu0
        %v2896 = vadd.f32 %v2685, %v2895
        %v2897 = vpop.f32.mrf.mxu0
        %2898 = vmatprep.mubr.f32.mxu0 0.0
        %v2899 = vand.u32 %v1772, 4294901760
        %2900 = vmatmul.mubr.f32.gmra.mxu0 %v2899
        %v2901 = vpop.f32.mrf.mxu0
        %v2902 = vadd.f32 %v2693, %v2901
        %v2903 = vpop.f32.mrf.mxu0
        %2904 = vdwg.mxu0
        %2905 = vmatprep.subr.mxu0 0.0
        %v2906 = vand.u32 %v1788, 4294901760
        %2907 = vmatpush1.msra.mxu0 %v2906
        %2908 = vmatprep.subr.mxu0 0.0
        %v2909 = vand.u32 %v1787, 4294901760
        %2910 = vmatpush1.msra.mxu0 %v2909
        %2911 = vmatprep.subr.mxu0 0.0
        %v2912 = vand.u32 %v1786, 4294901760
        %2913 = vmatpush1.msra.mxu0 %v2912
        %2914 = vmatprep.subr.mxu0 0.0
        %v2915 = vand.u32 %v1785, 4294901760
        %2916 = vmatpush1.msra.mxu0 %v2915
        %2917 = vmatprep.subr.mxu0 0.0
        %v2918 = vand.u32 %v1784, 4294901760
        %2919 = vmatpush1.msra.mxu0 %v2918
        %2920 = vmatprep.subr.mxu0 0.0
        %v2921 = vand.u32 %v1783, 4294901760
        %2922 = vmatpush1.msra.mxu0 %v2921
        %2923 = vmatprep.subr.mxu0 0.0
        %v2924 = vand.u32 %v1782, 4294901760
        %2925 = vmatpush1.msra.mxu0 %v2924
        %2926 = vmatprep.subr.mxu0 0.0
        %v2927 = vand.u32 %v1781, 4294901760
        %2928 = vmatpush1.msra.mxu0 %v2927
        %2929 = vmatprep.subr.mxu0 0.0
        %v2930 = vand.u32 %v1780, 4294901760
        %2931 = vmatpush1.msra.mxu0 %v2930
        %2932 = vmatprep.subr.mxu0 0.0
        %v2933 = vand.u32 %v1779, 4294901760
        %2934 = vmatpush1.msra.mxu0 %v2933
        %2935 = vmatprep.subr.mxu0 0.0
        %v2936 = vand.u32 %v1778, 4294901760
        %2937 = vmatpush1.msra.mxu0 %v2936
        %2938 = vmatprep.subr.mxu0 0.0
        %v2939 = vand.u32 %v1777, 4294901760
        %2940 = vmatpush1.msra.mxu0 %v2939
        %2941 = vmatprep.subr.mxu0 0.0
        %v2942 = vand.u32 %v1776, 4294901760
        %2943 = vmatpush1.msra.mxu0 %v2942
        %2944 = vmatprep.subr.mxu0 0.0
        %v2945 = vand.u32 %v1775, 4294901760
        %2946 = vmatpush1.msra.mxu0 %v2945
        %2947 = vmatprep.subr.mxu0 0.0
        %v2948 = vand.u32 %v1774, 4294901760
        %2949 = vmatpush1.msra.mxu0 %v2948
        %2950 = vmatprep.subr.mxu0 0.0
        %v2951 = vand.u32 %v1773, 4294901760
        %2952 = vmatpush1.msra.mxu0 %v2951
        %2953 = vmatprep.subr.mxu0 0.0
        %2954 = vmatpush2.msra.mxu0 0.0
        %2955 = vmatprep.subr.mxu0 0.0
        %2956 = vmatpush2.msra.mxu0 0.0
        %2957 = vmatprep.subr.mxu0 0.0
        %2958 = vmatpush2.msra.mxu0 0.0
        %2959 = vmatprep.subr.mxu0 0.0
        %2960 = vmatpush2.msra.mxu0 0.0
        %2961 = vmatprep.subr.mxu0 0.0
        %2962 = vmatpush2.msra.mxu0 0.0
        %2963 = vmatprep.subr.mxu0 0.0
        %2964 = vmatpush2.msra.mxu0 0.0
        %2965 = vmatprep.subr.mxu0 0.0
        %2966 = vmatpush2.msra.mxu0 0.0
        %2967 = vmatprep.subr.mxu0 0.0
        %2968 = vmatpush2.msra.mxu0 0.0
        %2969 = vmatprep.subr.mxu0 0.0
        %2970 = vmatpush2.msra.mxu0 0.0
        %2971 = vmatprep.subr.mxu0 0.0
        %2972 = vmatpush2.msra.mxu0 0.0
        %2973 = vmatprep.subr.mxu0 0.0
        %2974 = vmatpush2.msra.mxu0 0.0
        %2975 = vmatprep.subr.mxu0 0.0
        %2976 = vmatpush2.msra.mxu0 0.0
        %2977 = vmatprep.subr.mxu0 0.0
        %2978 = vmatpush2.msra.mxu0 0.0
        %2979 = vmatprep.subr.mxu0 0.0
        %2980 = vmatpush2.msra.mxu0 0.0
        %2981 = vmatprep.subr.mxu0 0.0
        %2982 = vmatpush2.msra.mxu0 0.0
        %2983 = vmatprep.subr.mxu0 0.0
        %2984 = vmatpush2.msra.mxu0 0.0
        %2985 = vmatprep.mubr.f32.mxu0 0.0
        %v2986 = vand.u32 %v1757, 4294901760
        %2987 = vmatmul.mubr.f32.gmra.mxu0 %v2986
        %v2988 = vpop.f32.mrf.mxu0
        %v2989 = vadd.f32 %v2812, %v2988
        %v2990 = vpop.f32.mrf.mxu0
        %2991 = vmatprep.mubr.f32.mxu0 0.0
        %v2992 = vand.u32 %v1758, 4294901760
        %2993 = vmatmul.mubr.f32.gmra.mxu0 %v2992
        %v2994 = vpop.f32.mrf.mxu0
        %v2995 = vadd.f32 %v2818, %v2994
        %v2996 = vpop.f32.mrf.mxu0
        %2997 = vmatprep.mubr.f32.mxu0 0.0
        %v2998 = vand.u32 %v1759, 4294901760
        %2999 = vmatmul.mubr.f32.gmra.mxu0 %v2998
        %v3000 = vpop.f32.mrf.mxu0
        %v3001 = vadd.f32 %v2824, %v3000
        %v3002 = vpop.f32.mrf.mxu0
        %3003 = vmatprep.mubr.f32.mxu0 0.0
        %v3004 = vand.u32 %v1760, 4294901760
        %3005 = vmatmul.mubr.f32.gmra.mxu0 %v3004
        %v3006 = vpop.f32.mrf.mxu0
        %v3007 = vadd.f32 %v2830, %v3006
        %v3008 = vpop.f32.mrf.mxu0
        %3009 = vmatprep.mubr.f32.mxu0 0.0
        %v3010 = vand.u32 %v1761, 4294901760
        %3011 = vmatmul.mubr.f32.gmra.mxu0 %v3010
        %v3012 = vpop.f32.mrf.mxu0
        %v3013 = vadd.f32 %v2836, %v3012
        %v3014 = vpop.f32.mrf.mxu0
        %3015 = vmatprep.mubr.f32.mxu0 0.0
        %v3016 = vand.u32 %v1762, 4294901760
        %3017 = vmatmul.mubr.f32.gmra.mxu0 %v3016
        %v3018 = vpop.f32.mrf.mxu0
        %v3019 = vadd.f32 %v2842, %v3018
        %v3020 = vpop.f32.mrf.mxu0
        %3021 = vmatprep.mubr.f32.mxu0 0.0
        %v3022 = vand.u32 %v1763, 4294901760
        %3023 = vmatmul.mubr.f32.gmra.mxu0 %v3022
        %v3024 = vpop.f32.mrf.mxu0
        %v3025 = vadd.f32 %v2848, %v3024
        %v3026 = vpop.f32.mrf.mxu0
        %3027 = vmatprep.mubr.f32.mxu0 0.0
        %v3028 = vand.u32 %v1764, 4294901760
        %3029 = vmatmul.mubr.f32.gmra.mxu0 %v3028
        %v3030 = vpop.f32.mrf.mxu0
        %v3031 = vadd.f32 %v2854, %v3030
        %v3032 = vpop.f32.mrf.mxu0
        %3033 = vmatprep.mubr.f32.mxu0 0.0
        %v3034 = vand.u32 %v1765, 4294901760
        %3035 = vmatmul.mubr.f32.gmra.mxu0 %v3034
        %v3036 = vpop.f32.mrf.mxu0
        %v3037 = vadd.f32 %v2860, %v3036
        %v3038 = vpop.f32.mrf.mxu0
        %3039 = vmatprep.mubr.f32.mxu0 0.0
        %v3040 = vand.u32 %v1766, 4294901760
        %3041 = vmatmul.mubr.f32.gmra.mxu0 %v3040
        %v3042 = vpop.f32.mrf.mxu0
        %v3043 = vadd.f32 %v2866, %v3042
        %v3044 = vpop.f32.mrf.mxu0
        %3045 = vmatprep.mubr.f32.mxu0 0.0
        %v3046 = vand.u32 %v1767, 4294901760
        %3047 = vmatmul.mubr.f32.gmra.mxu0 %v3046
        %v3048 = vpop.f32.mrf.mxu0
        %v3049 = vadd.f32 %v2872, %v3048
        %v3050 = vpop.f32.mrf.mxu0
        %3051 = vmatprep.mubr.f32.mxu0 0.0
        %v3052 = vand.u32 %v1768, 4294901760
        %3053 = vmatmul.mubr.f32.gmra.mxu0 %v3052
        %v3054 = vpop.f32.mrf.mxu0
        %v3055 = vadd.f32 %v2878, %v3054
        %v3056 = vpop.f32.mrf.mxu0
        %3057 = vmatprep.mubr.f32.mxu0 0.0
        %v3058 = vand.u32 %v1769, 4294901760
        %3059 = vmatmul.mubr.f32.gmra.mxu0 %v3058
        %v3060 = vpop.f32.mrf.mxu0
        %v3061 = vadd.f32 %v2884, %v3060
        %v3062 = vpop.f32.mrf.mxu0
        %3063 = vmatprep.mubr.f32.mxu0 0.0
        %v3064 = vand.u32 %v1770, 4294901760
        %3065 = vmatmul.mubr.f32.gmra.mxu0 %v3064
        %v3066 = vpop.f32.mrf.mxu0
        %v3067 = vadd.f32 %v2890, %v3066
        %v3068 = vpop.f32.mrf.mxu0
        %3069 = vmatprep.mubr.f32.mxu0 0.0
        %v3070 = vand.u32 %v1771, 4294901760
        %3071 = vmatmul.mubr.f32.gmra.mxu0 %v3070
        %v3072 = vpop.f32.mrf.mxu0
        %v3073 = vadd.f32 %v2896, %v3072
        %v3074 = vpop.f32.mrf.mxu0
        %3075 = vmatprep.mubr.f32.mxu0 0.0
        %v3076 = vand.u32 %v1772, 4294901760
        %3077 = vmatmul.mubr.f32.gmra.mxu0 %v3076
        %v3078 = vpop.f32.mrf.mxu0
        %v3079 = vadd.f32 %v2902, %v3078
        %v3080 = vpop.f32.mrf.mxu0
        %3081 = vdwg.mxu0
        %v3082 = vmax.f32 %v2989, 0.0
        %v3083 = vmax.f32 %v2995, 0.0
        %v3084 = vmax.f32 %v3001, 0.0
        %v3085 = vmax.f32 %v3007, 0.0
        %v3086 = vmax.f32 %v3013, 0.0
        %v3087 = vmax.f32 %v3019, 0.0
        %v3088 = vmax.f32 %v3025, 0.0
        %v3089 = vmax.f32 %v3031, 0.0
        %v3090 = vmax.f32 %v3037, 0.0
        %v3091 = vmax.f32 %v3043, 0.0
        %v3092 = vmax.f32 %v3049, 0.0
        %v3093 = vmax.f32 %v3055, 0.0
        %v3094 = vmax.f32 %v3061, 0.0
        %v3095 = vmax.f32 %v3067, 0.0
        %v3096 = vmax.f32 %v3073, 0.0
        %v3097 = vmax.f32 %v3079, 0.0
        %v3098 = vld [vmem:[#allocation7] sm:$0xff]
        %v3099 = vld [vmem:[#allocation7 + $0x8] sm:$0xff]
        %v3100 = vld [vmem:[#allocation7 + $0x10] sm:$0xff]
        %v3101 = vld [vmem:[#allocation7 + $0x18] sm:$0xff]
        %v3102 = vld [vmem:[#allocation7 + $0x20] sm:$0xff]
        %v3103 = vld [vmem:[#allocation7 + $0x28] sm:$0xff]
        %v3104 = vld [vmem:[#allocation7 + $0x30] sm:$0xff]
        %v3105 = vld [vmem:[#allocation7 + $0x38] sm:$0xff]
        %v3106 = vld [vmem:[#allocation7 + $0x40] sm:$0xff]
        %v3107 = vld [vmem:[#allocation7 + $0x48] sm:$0xff]
        %v3108 = vld [vmem:[#allocation7 + $0x50] sm:$0xff]
        %v3109 = vld [vmem:[#allocation7 + $0x58] sm:$0xff]
        %v3110 = vld [vmem:[#allocation7 + $0x60] sm:$0xff]
        %v3111 = vld [vmem:[#allocation7 + $0x68] sm:$0xff]
        %v3112 = vld [vmem:[#allocation7 + $0x70] sm:$0xff]
        %v3113 = vld [vmem:[#allocation7 + $0x78] sm:$0xff]
        %v3114 = vld [vmem:[%s6] sm:$0x1]
        %v3116 = vlaneseq
        %v3117 = vshrl.u32 %v3116, 7
        %v3118 = vsub.s32 0, %v3117
        %v3119 = vrot.slane %v3114, %v3118
        %3121 = vmatprep.subr.mxu0 0.0
        %v3122 = vand.u32 %v3113, 4294901760
        %3123 = vmatpush1.msra.mxu0 %v3122
        %3124 = vmatprep.subr.mxu0 0.0
        %v3125 = vand.u32 %v3112, 4294901760
        %3126 = vmatpush1.msra.mxu0 %v3125
        %3127 = vmatprep.subr.mxu0 0.0
        %v3128 = vand.u32 %v3111, 4294901760
        %3129 = vmatpush1.msra.mxu0 %v3128
        %3130 = vmatprep.subr.mxu0 0.0
        %v3131 = vand.u32 %v3110, 4294901760
        %3132 = vmatpush1.msra.mxu0 %v3131
        %3133 = vmatprep.subr.mxu0 0.0
        %v3134 = vand.u32 %v3109, 4294901760
        %3135 = vmatpush1.msra.mxu0 %v3134
        %3136 = vmatprep.subr.mxu0 0.0
        %v3137 = vand.u32 %v3108, 4294901760
        %3138 = vmatpush1.msra.mxu0 %v3137
        %3139 = vmatprep.subr.mxu0 0.0
        %v3140 = vand.u32 %v3107, 4294901760
        %3141 = vmatpush1.msra.mxu0 %v3140
        %3142 = vmatprep.subr.mxu0 0.0
        %v3143 = vand.u32 %v3106, 4294901760
        %3144 = vmatpush1.msra.mxu0 %v3143
        %3145 = vmatprep.subr.mxu0 0.0
        %v3146 = vand.u32 %v3105, 4294901760
        %3147 = vmatpush1.msra.mxu0 %v3146
        %3148 = vmatprep.subr.mxu0 0.0
        %v3149 = vand.u32 %v3104, 4294901760
        %3150 = vmatpush1.msra.mxu0 %v3149
        %3151 = vmatprep.subr.mxu0 0.0
        %v3152 = vand.u32 %v3103, 4294901760
        %3153 = vmatpush1.msra.mxu0 %v3152
        %3154 = vmatprep.subr.mxu0 0.0
        %v3155 = vand.u32 %v3102, 4294901760
        %3156 = vmatpush1.msra.mxu0 %v3155
        %3157 = vmatprep.subr.mxu0 0.0
        %v3158 = vand.u32 %v3101, 4294901760
        %3159 = vmatpush1.msra.mxu0 %v3158
        %3160 = vmatprep.subr.mxu0 0.0
        %v3161 = vand.u32 %v3100, 4294901760
        %3162 = vmatpush1.msra.mxu0 %v3161
        %3163 = vmatprep.subr.mxu0 0.0
        %v3164 = vand.u32 %v3099, 4294901760
        %3165 = vmatpush1.msra.mxu0 %v3164
        %3166 = vmatprep.subr.mxu0 0.0
        %v3167 = vand.u32 %v3098, 4294901760
        %3168 = vmatpush1.msra.mxu0 %v3167
        %3169 = vmatprep.subr.mxu0 0.0
        %3170 = vmatpush2.msra.mxu0 0.0
        %3171 = vmatprep.subr.mxu0 0.0
        %3172 = vmatpush2.msra.mxu0 0.0
        %3173 = vmatprep.subr.mxu0 0.0
        %3174 = vmatpush2.msra.mxu0 0.0
        %3175 = vmatprep.subr.mxu0 0.0
        %3176 = vmatpush2.msra.mxu0 0.0
        %3177 = vmatprep.subr.mxu0 0.0
        %3178 = vmatpush2.msra.mxu0 0.0
        %3179 = vmatprep.subr.mxu0 0.0
        %3180 = vmatpush2.msra.mxu0 0.0
        %3181 = vmatprep.subr.mxu0 0.0
        %3182 = vmatpush2.msra.mxu0 0.0
        %3183 = vmatprep.subr.mxu0 0.0
        %3184 = vmatpush2.msra.mxu0 0.0
        %3185 = vmatprep.subr.mxu0 0.0
        %3186 = vmatpush2.msra.mxu0 0.0
        %3187 = vmatprep.subr.mxu0 0.0
        %3188 = vmatpush2.msra.mxu0 0.0
        %3189 = vmatprep.subr.mxu0 0.0
        %3190 = vmatpush2.msra.mxu0 0.0
        %3191 = vmatprep.subr.mxu0 0.0
        %3192 = vmatpush2.msra.mxu0 0.0
        %3193 = vmatprep.subr.mxu0 0.0
        %3194 = vmatpush2.msra.mxu0 0.0
        %3195 = vmatprep.subr.mxu0 0.0
        %3196 = vmatpush2.msra.mxu0 0.0
        %3197 = vmatprep.subr.mxu0 0.0
        %3198 = vmatpush2.msra.mxu0 0.0
        %3199 = vmatprep.subr.mxu0 0.0
        %3200 = vmatpush2.msra.mxu0 0.0
        %3201 = vmatprep.mubr.f32.mxu0 0.0
        %v3202 = vand.u32 %v3082, 4294901760
        %v3203 = vsub.f32 %v3082, %v3202
        %v3204 = vand.u32 %v3203, 4294901760
        %v3205 = vsub.f32 %v3203, %v3204
        %v3206 = vand.u32 %v3205, 4294901760
        %3207 = vmatmul.mubr.f32.gmra.mxu0 %v3206
        %v3208 = vpop.f32.mrf.mxu0
        %v3209 = vadd.f32 %v3119, %v3208
        %v3210 = vpop.f32.mrf.mxu0
        %3211 = vmatprep.mubr.f32.mxu0 0.0
        %v3212 = vand.u32 %v3083, 4294901760
        %v3213 = vsub.f32 %v3083, %v3212
        %v3214 = vand.u32 %v3213, 4294901760
        %v3215 = vsub.f32 %v3213, %v3214
        %v3216 = vand.u32 %v3215, 4294901760
        %3217 = vmatmul.mubr.f32.gmra.mxu0 %v3216
        %v3218 = vpop.f32.mrf.mxu0
        %v3219 = vadd.f32 %v3119, %v3218
        %v3220 = vpop.f32.mrf.mxu0
        %3221 = vmatprep.mubr.f32.mxu0 0.0
        %v3222 = vand.u32 %v3084, 4294901760
        %v3223 = vsub.f32 %v3084, %v3222
        %v3224 = vand.u32 %v3223, 4294901760
        %v3225 = vsub.f32 %v3223, %v3224
        %v3226 = vand.u32 %v3225, 4294901760
        %3227 = vmatmul.mubr.f32.gmra.mxu0 %v3226
        %v3228 = vpop.f32.mrf.mxu0
        %v3229 = vadd.f32 %v3119, %v3228
        %v3230 = vpop.f32.mrf.mxu0
        %3231 = vmatprep.mubr.f32.mxu0 0.0
        %v3232 = vand.u32 %v3085, 4294901760
        %v3233 = vsub.f32 %v3085, %v3232
        %v3234 = vand.u32 %v3233, 4294901760
        %v3235 = vsub.f32 %v3233, %v3234
        %v3236 = vand.u32 %v3235, 4294901760
        %3237 = vmatmul.mubr.f32.gmra.mxu0 %v3236
        %v3238 = vpop.f32.mrf.mxu0
        %v3239 = vadd.f32 %v3119, %v3238
        %v3240 = vpop.f32.mrf.mxu0
        %3241 = vmatprep.mubr.f32.mxu0 0.0
        %v3242 = vand.u32 %v3086, 4294901760
        %v3243 = vsub.f32 %v3086, %v3242
        %v3244 = vand.u32 %v3243, 4294901760
        %v3245 = vsub.f32 %v3243, %v3244
        %v3246 = vand.u32 %v3245, 4294901760
        %3247 = vmatmul.mubr.f32.gmra.mxu0 %v3246
        %v3248 = vpop.f32.mrf.mxu0
        %v3249 = vadd.f32 %v3119, %v3248
        %v3250 = vpop.f32.mrf.mxu0
        %3251 = vmatprep.mubr.f32.mxu0 0.0
        %v3252 = vand.u32 %v3087, 4294901760
        %v3253 = vsub.f32 %v3087, %v3252
        %v3254 = vand.u32 %v3253, 4294901760
        %v3255 = vsub.f32 %v3253, %v3254
        %v3256 = vand.u32 %v3255, 4294901760
        %3257 = vmatmul.mubr.f32.gmra.mxu0 %v3256
        %v3258 = vpop.f32.mrf.mxu0
        %v3259 = vadd.f32 %v3119, %v3258
        %v3260 = vpop.f32.mrf.mxu0
        %3261 = vmatprep.mubr.f32.mxu0 0.0
        %v3262 = vand.u32 %v3088, 4294901760
        %v3263 = vsub.f32 %v3088, %v3262
        %v3264 = vand.u32 %v3263, 4294901760
        %v3265 = vsub.f32 %v3263, %v3264
        %v3266 = vand.u32 %v3265, 4294901760
        %3267 = vmatmul.mubr.f32.gmra.mxu0 %v3266
        %v3268 = vpop.f32.mrf.mxu0
        %v3269 = vadd.f32 %v3119, %v3268
        %v3270 = vpop.f32.mrf.mxu0
        %3271 = vmatprep.mubr.f32.mxu0 0.0
        %v3272 = vand.u32 %v3089, 4294901760
        %v3273 = vsub.f32 %v3089, %v3272
        %v3274 = vand.u32 %v3273, 4294901760
        %v3275 = vsub.f32 %v3273, %v3274
        %v3276 = vand.u32 %v3275, 4294901760
        %3277 = vmatmul.mubr.f32.gmra.mxu0 %v3276
        %v3278 = vpop.f32.mrf.mxu0
        %v3279 = vadd.f32 %v3119, %v3278
        %v3280 = vpop.f32.mrf.mxu0
        %3281 = vmatprep.mubr.f32.mxu0 0.0
        %v3282 = vand.u32 %v3090, 4294901760
        %v3283 = vsub.f32 %v3090, %v3282
        %v3284 = vand.u32 %v3283, 4294901760
        %v3285 = vsub.f32 %v3283, %v3284
        %v3286 = vand.u32 %v3285, 4294901760
        %3287 = vmatmul.mubr.f32.gmra.mxu0 %v3286
        %v3288 = vpop.f32.mrf.mxu0
        %v3289 = vadd.f32 %v3119, %v3288
        %v3290 = vpop.f32.mrf.mxu0
        %3291 = vmatprep.mubr.f32.mxu0 0.0
        %v3292 = vand.u32 %v3091, 4294901760
        %v3293 = vsub.f32 %v3091, %v3292
        %v3294 = vand.u32 %v3293, 4294901760
        %v3295 = vsub.f32 %v3293, %v3294
        %v3296 = vand.u32 %v3295, 4294901760
        %3297 = vmatmul.mubr.f32.gmra.mxu0 %v3296
        %v3298 = vpop.f32.mrf.mxu0
        %v3299 = vadd.f32 %v3119, %v3298
        %v3300 = vpop.f32.mrf.mxu0
        %3301 = vmatprep.mubr.f32.mxu0 0.0
        %v3302 = vand.u32 %v3092, 4294901760
        %v3303 = vsub.f32 %v3092, %v3302
        %v3304 = vand.u32 %v3303, 4294901760
        %v3305 = vsub.f32 %v3303, %v3304
        %v3306 = vand.u32 %v3305, 4294901760
        %3307 = vmatmul.mubr.f32.gmra.mxu0 %v3306
        %v3308 = vpop.f32.mrf.mxu0
        %v3309 = vadd.f32 %v3119, %v3308
        %v3310 = vpop.f32.mrf.mxu0
        %3311 = vmatprep.mubr.f32.mxu0 0.0
        %v3312 = vand.u32 %v3093, 4294901760
        %v3313 = vsub.f32 %v3093, %v3312
        %v3314 = vand.u32 %v3313, 4294901760
        %v3315 = vsub.f32 %v3313, %v3314
        %v3316 = vand.u32 %v3315, 4294901760
        %3317 = vmatmul.mubr.f32.gmra.mxu0 %v3316
        %v3318 = vpop.f32.mrf.mxu0
        %v3319 = vadd.f32 %v3119, %v3318
        %v3320 = vpop.f32.mrf.mxu0
        %3321 = vmatprep.mubr.f32.mxu0 0.0
        %v3322 = vand.u32 %v3094, 4294901760
        %v3323 = vsub.f32 %v3094, %v3322
        %v3324 = vand.u32 %v3323, 4294901760
        %v3325 = vsub.f32 %v3323, %v3324
        %v3326 = vand.u32 %v3325, 4294901760
        %3327 = vmatmul.mubr.f32.gmra.mxu0 %v3326
        %v3328 = vpop.f32.mrf.mxu0
        %v3329 = vadd.f32 %v3119, %v3328
        %v3330 = vpop.f32.mrf.mxu0
        %3331 = vmatprep.mubr.f32.mxu0 0.0
        %v3332 = vand.u32 %v3095, 4294901760
        %v3333 = vsub.f32 %v3095, %v3332
        %v3334 = vand.u32 %v3333, 4294901760
        %v3335 = vsub.f32 %v3333, %v3334
        %v3336 = vand.u32 %v3335, 4294901760
        %3337 = vmatmul.mubr.f32.gmra.mxu0 %v3336
        %v3338 = vpop.f32.mrf.mxu0
        %v3339 = vadd.f32 %v3119, %v3338
        %v3340 = vpop.f32.mrf.mxu0
        %3341 = vmatprep.mubr.f32.mxu0 0.0
        %v3342 = vand.u32 %v3096, 4294901760
        %v3343 = vsub.f32 %v3096, %v3342
        %v3344 = vand.u32 %v3343, 4294901760
        %v3345 = vsub.f32 %v3343, %v3344
        %v3346 = vand.u32 %v3345, 4294901760
        %3347 = vmatmul.mubr.f32.gmra.mxu0 %v3346
        %v3348 = vpop.f32.mrf.mxu0
        %v3349 = vadd.f32 %v3119, %v3348
        %v3350 = vpop.f32.mrf.mxu0
        %3351 = vmatprep.mubr.f32.mxu0 0.0
        %v3352 = vand.u32 %v3097, 4294901760
        %v3353 = vsub.f32 %v3097, %v3352
        %v3354 = vand.u32 %v3353, 4294901760
        %v3355 = vsub.f32 %v3353, %v3354
        %v3356 = vand.u32 %v3355, 4294901760
        %3357 = vmatmul.mubr.f32.gmra.mxu0 %v3356
        %v3358 = vpop.f32.mrf.mxu0
        %v3359 = vadd.f32 %v3119, %v3358
        %v3360 = vpop.f32.mrf.mxu0
        %3361 = vdwg.mxu0
        %3362 = vmatprep.subr.mxu0 0.0
        %v3363 = vand.u32 %v3113, 4294901760
        %v3364 = vsub.f32 %v3113, %v3363
        %v3365 = vand.u32 %v3364, 4294901760
        %v3366 = vsub.f32 %v3364, %v3365
        %v3367 = vand.u32 %v3366, 4294901760
        %3368 = vmatpush1.msra.mxu0 %v3367
        %3369 = vmatprep.subr.mxu0 0.0
        %v3370 = vand.u32 %v3112, 4294901760
        %v3371 = vsub.f32 %v3112, %v3370
        %v3372 = vand.u32 %v3371, 4294901760
        %v3373 = vsub.f32 %v3371, %v3372
        %v3374 = vand.u32 %v3373, 4294901760
        %3375 = vmatpush1.msra.mxu0 %v3374
        %3376 = vmatprep.subr.mxu0 0.0
        %v3377 = vand.u32 %v3111, 4294901760
        %v3378 = vsub.f32 %v3111, %v3377
        %v3379 = vand.u32 %v3378, 4294901760
        %v3380 = vsub.f32 %v3378, %v3379
        %v3381 = vand.u32 %v3380, 4294901760
        %3382 = vmatpush1.msra.mxu0 %v3381
        %3383 = vmatprep.subr.mxu0 0.0
        %v3384 = vand.u32 %v3110, 4294901760
        %v3385 = vsub.f32 %v3110, %v3384
        %v3386 = vand.u32 %v3385, 4294901760
        %v3387 = vsub.f32 %v3385, %v3386
        %v3388 = vand.u32 %v3387, 4294901760
        %3389 = vmatpush1.msra.mxu0 %v3388
        %3390 = vmatprep.subr.mxu0 0.0
        %v3391 = vand.u32 %v3109, 4294901760
        %v3392 = vsub.f32 %v3109, %v3391
        %v3393 = vand.u32 %v3392, 4294901760
        %v3394 = vsub.f32 %v3392, %v3393
        %v3395 = vand.u32 %v3394, 4294901760
        %3396 = vmatpush1.msra.mxu0 %v3395
        %3397 = vmatprep.subr.mxu0 0.0
        %v3398 = vand.u32 %v3108, 4294901760
        %v3399 = vsub.f32 %v3108, %v3398
        %v3400 = vand.u32 %v3399, 4294901760
        %v3401 = vsub.f32 %v3399, %v3400
        %v3402 = vand.u32 %v3401, 4294901760
        %3403 = vmatpush1.msra.mxu0 %v3402
        %3404 = vmatprep.subr.mxu0 0.0
        %v3405 = vand.u32 %v3107, 4294901760
        %v3406 = vsub.f32 %v3107, %v3405
        %v3407 = vand.u32 %v3406, 4294901760
        %v3408 = vsub.f32 %v3406, %v3407
        %v3409 = vand.u32 %v3408, 4294901760
        %3410 = vmatpush1.msra.mxu0 %v3409
        %3411 = vmatprep.subr.mxu0 0.0
        %v3412 = vand.u32 %v3106, 4294901760
        %v3413 = vsub.f32 %v3106, %v3412
        %v3414 = vand.u32 %v3413, 4294901760
        %v3415 = vsub.f32 %v3413, %v3414
        %v3416 = vand.u32 %v3415, 4294901760
        %3417 = vmatpush1.msra.mxu0 %v3416
        %3418 = vmatprep.subr.mxu0 0.0
        %v3419 = vand.u32 %v3105, 4294901760
        %v3420 = vsub.f32 %v3105, %v3419
        %v3421 = vand.u32 %v3420, 4294901760
        %v3422 = vsub.f32 %v3420, %v3421
        %v3423 = vand.u32 %v3422, 4294901760
        %3424 = vmatpush1.msra.mxu0 %v3423
        %3425 = vmatprep.subr.mxu0 0.0
        %v3426 = vand.u32 %v3104, 4294901760
        %v3427 = vsub.f32 %v3104, %v3426
        %v3428 = vand.u32 %v3427, 4294901760
        %v3429 = vsub.f32 %v3427, %v3428
        %v3430 = vand.u32 %v3429, 4294901760
        %3431 = vmatpush1.msra.mxu0 %v3430
        %3432 = vmatprep.subr.mxu0 0.0
        %v3433 = vand.u32 %v3103, 4294901760
        %v3434 = vsub.f32 %v3103, %v3433
        %v3435 = vand.u32 %v3434, 4294901760
        %v3436 = vsub.f32 %v3434, %v3435
        %v3437 = vand.u32 %v3436, 4294901760
        %3438 = vmatpush1.msra.mxu0 %v3437
        %3439 = vmatprep.subr.mxu0 0.0
        %v3440 = vand.u32 %v3102, 4294901760
        %v3441 = vsub.f32 %v3102, %v3440
        %v3442 = vand.u32 %v3441, 4294901760
        %v3443 = vsub.f32 %v3441, %v3442
        %v3444 = vand.u32 %v3443, 4294901760
        %3445 = vmatpush1.msra.mxu0 %v3444
        %3446 = vmatprep.subr.mxu0 0.0
        %v3447 = vand.u32 %v3101, 4294901760
        %v3448 = vsub.f32 %v3101, %v3447
        %v3449 = vand.u32 %v3448, 4294901760
        %v3450 = vsub.f32 %v3448, %v3449
        %v3451 = vand.u32 %v3450, 4294901760
        %3452 = vmatpush1.msra.mxu0 %v3451
        %3453 = vmatprep.subr.mxu0 0.0
        %v3454 = vand.u32 %v3100, 4294901760
        %v3455 = vsub.f32 %v3100, %v3454
        %v3456 = vand.u32 %v3455, 4294901760
        %v3457 = vsub.f32 %v3455, %v3456
        %v3458 = vand.u32 %v3457, 4294901760
        %3459 = vmatpush1.msra.mxu0 %v3458
        %3460 = vmatprep.subr.mxu0 0.0
        %v3461 = vand.u32 %v3099, 4294901760
        %v3462 = vsub.f32 %v3099, %v3461
        %v3463 = vand.u32 %v3462, 4294901760
        %v3464 = vsub.f32 %v3462, %v3463
        %v3465 = vand.u32 %v3464, 4294901760
        %3466 = vmatpush1.msra.mxu0 %v3465
        %3467 = vmatprep.subr.mxu0 0.0
        %v3468 = vand.u32 %v3098, 4294901760
        %v3469 = vsub.f32 %v3098, %v3468
        %v3470 = vand.u32 %v3469, 4294901760
        %v3471 = vsub.f32 %v3469, %v3470
        %v3472 = vand.u32 %v3471, 4294901760
        %3473 = vmatpush1.msra.mxu0 %v3472
        %3474 = vmatprep.subr.mxu0 0.0
        %3475 = vmatpush2.msra.mxu0 0.0
        %3476 = vmatprep.subr.mxu0 0.0
        %3477 = vmatpush2.msra.mxu0 0.0
        %3478 = vmatprep.subr.mxu0 0.0
        %3479 = vmatpush2.msra.mxu0 0.0
        %3480 = vmatprep.subr.mxu0 0.0
        %3481 = vmatpush2.msra.mxu0 0.0
        %3482 = vmatprep.subr.mxu0 0.0
        %3483 = vmatpush2.msra.mxu0 0.0
        %3484 = vmatprep.subr.mxu0 0.0
        %3485 = vmatpush2.msra.mxu0 0.0
        %3486 = vmatprep.subr.mxu0 0.0
        %3487 = vmatpush2.msra.mxu0 0.0
        %3488 = vmatprep.subr.mxu0 0.0
        %3489 = vmatpush2.msra.mxu0 0.0
        %3490 = vmatprep.subr.mxu0 0.0
        %3491 = vmatpush2.msra.mxu0 0.0
        %3492 = vmatprep.subr.mxu0 0.0
        %3493 = vmatpush2.msra.mxu0 0.0
        %3494 = vmatprep.subr.mxu0 0.0
        %3495 = vmatpush2.msra.mxu0 0.0
        %3496 = vmatprep.subr.mxu0 0.0
        %3497 = vmatpush2.msra.mxu0 0.0
        %3498 = vmatprep.subr.mxu0 0.0
        %3499 = vmatpush2.msra.mxu0 0.0
        %3500 = vmatprep.subr.mxu0 0.0
        %3501 = vmatpush2.msra.mxu0 0.0
        %3502 = vmatprep.subr.mxu0 0.0
        %3503 = vmatpush2.msra.mxu0 0.0
        %3504 = vmatprep.subr.mxu0 0.0
        %3505 = vmatpush2.msra.mxu0 0.0
        %3506 = vmatprep.mubr.f32.mxu0 0.0
        %v3507 = vand.u32 %v3082, 4294901760
        %3508 = vmatmul.mubr.f32.gmra.mxu0 %v3507
        %v3509 = vpop.f32.mrf.mxu0
        %v3510 = vadd.f32 %v3209, %v3509
        %v3511 = vpop.f32.mrf.mxu0
        %3512 = vmatprep.mubr.f32.mxu0 0.0
        %v3513 = vand.u32 %v3083, 4294901760
        %3514 = vmatmul.mubr.f32.gmra.mxu0 %v3513
        %v3515 = vpop.f32.mrf.mxu0
        %v3516 = vadd.f32 %v3219, %v3515
        %v3517 = vpop.f32.mrf.mxu0
        %3518 = vmatprep.mubr.f32.mxu0 0.0
        %v3519 = vand.u32 %v3084, 4294901760
        %3520 = vmatmul.mubr.f32.gmra.mxu0 %v3519
        %v3521 = vpop.f32.mrf.mxu0
        %v3522 = vadd.f32 %v3229, %v3521
        %v3523 = vpop.f32.mrf.mxu0
        %3524 = vmatprep.mubr.f32.mxu0 0.0
        %v3525 = vand.u32 %v3085, 4294901760
        %3526 = vmatmul.mubr.f32.gmra.mxu0 %v3525
        %v3527 = vpop.f32.mrf.mxu0
        %v3528 = vadd.f32 %v3239, %v3527
        %v3529 = vpop.f32.mrf.mxu0
        %3530 = vmatprep.mubr.f32.mxu0 0.0
        %v3531 = vand.u32 %v3086, 4294901760
        %3532 = vmatmul.mubr.f32.gmra.mxu0 %v3531
        %v3533 = vpop.f32.mrf.mxu0
        %v3534 = vadd.f32 %v3249, %v3533
        %v3535 = vpop.f32.mrf.mxu0
        %3536 = vmatprep.mubr.f32.mxu0 0.0
        %v3537 = vand.u32 %v3087, 4294901760
        %3538 = vmatmul.mubr.f32.gmra.mxu0 %v3537
        %v3539 = vpop.f32.mrf.mxu0
        %v3540 = vadd.f32 %v3259, %v3539
        %v3541 = vpop.f32.mrf.mxu0
        %3542 = vmatprep.mubr.f32.mxu0 0.0
        %v3543 = vand.u32 %v3088, 4294901760
        %3544 = vmatmul.mubr.f32.gmra.mxu0 %v3543
        %v3545 = vpop.f32.mrf.mxu0
        %v3546 = vadd.f32 %v3269, %v3545
        %v3547 = vpop.f32.mrf.mxu0
        %3548 = vmatprep.mubr.f32.mxu0 0.0
        %v3549 = vand.u32 %v3089, 4294901760
        %3550 = vmatmul.mubr.f32.gmra.mxu0 %v3549
        %v3551 = vpop.f32.mrf.mxu0
        %v3552 = vadd.f32 %v3279, %v3551
        %v3553 = vpop.f32.mrf.mxu0
        %3554 = vmatprep.mubr.f32.mxu0 0.0
        %v3555 = vand.u32 %v3090, 4294901760
        %3556 = vmatmul.mubr.f32.gmra.mxu0 %v3555
        %v3557 = vpop.f32.mrf.mxu0
        %v3558 = vadd.f32 %v3289, %v3557
        %v3559 = vpop.f32.mrf.mxu0
        %3560 = vmatprep.mubr.f32.mxu0 0.0
        %v3561 = vand.u32 %v3091, 4294901760
        %3562 = vmatmul.mubr.f32.gmra.mxu0 %v3561
        %v3563 = vpop.f32.mrf.mxu0
        %v3564 = vadd.f32 %v3299, %v3563
        %v3565 = vpop.f32.mrf.mxu0
        %3566 = vmatprep.mubr.f32.mxu0 0.0
        %v3567 = vand.u32 %v3092, 4294901760
        %3568 = vmatmul.mubr.f32.gmra.mxu0 %v3567
        %v3569 = vpop.f32.mrf.mxu0
        %v3570 = vadd.f32 %v3309, %v3569
        %v3571 = vpop.f32.mrf.mxu0
        %3572 = vmatprep.mubr.f32.mxu0 0.0
        %v3573 = vand.u32 %v3093, 4294901760
        %3574 = vmatmul.mubr.f32.gmra.mxu0 %v3573
        %v3575 = vpop.f32.mrf.mxu0
        %v3576 = vadd.f32 %v3319, %v3575
        %v3577 = vpop.f32.mrf.mxu0
        %3578 = vmatprep.mubr.f32.mxu0 0.0
        %v3579 = vand.u32 %v3094, 4294901760
        %3580 = vmatmul.mubr.f32.gmra.mxu0 %v3579
        %v3581 = vpop.f32.mrf.mxu0
        %v3582 = vadd.f32 %v3329, %v3581
        %v3583 = vpop.f32.mrf.mxu0
        %3584 = vmatprep.mubr.f32.mxu0 0.0
        %v3585 = vand.u32 %v3095, 4294901760
        %3586 = vmatmul.mubr.f32.gmra.mxu0 %v3585
        %v3587 = vpop.f32.mrf.mxu0
        %v3588 = vadd.f32 %v3339, %v3587
        %v3589 = vpop.f32.mrf.mxu0
        %3590 = vmatprep.mubr.f32.mxu0 0.0
        %v3591 = vand.u32 %v3096, 4294901760
        %3592 = vmatmul.mubr.f32.gmra.mxu0 %v3591
        %v3593 = vpop.f32.mrf.mxu0
        %v3594 = vadd.f32 %v3349, %v3593
        %v3595 = vpop.f32.mrf.mxu0
        %3596 = vmatprep.mubr.f32.mxu0 0.0
        %v3597 = vand.u32 %v3097, 4294901760
        %3598 = vmatmul.mubr.f32.gmra.mxu0 %v3597
        %v3599 = vpop.f32.mrf.mxu0
        %v3600 = vadd.f32 %v3359, %v3599
        %v3601 = vpop.f32.mrf.mxu0
        %3602 = vdwg.mxu0
        %3603 = vmatprep.subr.mxu0 0.0
        %v3604 = vand.u32 %v3113, 4294901760
        %v3605 = vsub.f32 %v3113, %v3604
        %3606 = vmatpush1.msra.mxu0 %v3605
        %3607 = vmatprep.subr.mxu0 0.0
        %v3608 = vand.u32 %v3112, 4294901760
        %v3609 = vsub.f32 %v3112, %v3608
        %3610 = vmatpush1.msra.mxu0 %v3609
        %3611 = vmatprep.subr.mxu0 0.0
        %v3612 = vand.u32 %v3111, 4294901760
        %v3613 = vsub.f32 %v3111, %v3612
        %3614 = vmatpush1.msra.mxu0 %v3613
        %3615 = vmatprep.subr.mxu0 0.0
        %v3616 = vand.u32 %v3110, 4294901760
        %v3617 = vsub.f32 %v3110, %v3616
        %3618 = vmatpush1.msra.mxu0 %v3617
        %3619 = vmatprep.subr.mxu0 0.0
        %v3620 = vand.u32 %v3109, 4294901760
        %v3621 = vsub.f32 %v3109, %v3620
        %3622 = vmatpush1.msra.mxu0 %v3621
        %3623 = vmatprep.subr.mxu0 0.0
        %v3624 = vand.u32 %v3108, 4294901760
        %v3625 = vsub.f32 %v3108, %v3624
        %3626 = vmatpush1.msra.mxu0 %v3625
        %3627 = vmatprep.subr.mxu0 0.0
        %v3628 = vand.u32 %v3107, 4294901760
        %v3629 = vsub.f32 %v3107, %v3628
        %3630 = vmatpush1.msra.mxu0 %v3629
        %3631 = vmatprep.subr.mxu0 0.0
        %v3632 = vand.u32 %v3106, 4294901760
        %v3633 = vsub.f32 %v3106, %v3632
        %3634 = vmatpush1.msra.mxu0 %v3633
        %3635 = vmatprep.subr.mxu0 0.0
        %v3636 = vand.u32 %v3105, 4294901760
        %v3637 = vsub.f32 %v3105, %v3636
        %3638 = vmatpush1.msra.mxu0 %v3637
        %3639 = vmatprep.subr.mxu0 0.0
        %v3640 = vand.u32 %v3104, 4294901760
        %v3641 = vsub.f32 %v3104, %v3640
        %3642 = vmatpush1.msra.mxu0 %v3641
        %3643 = vmatprep.subr.mxu0 0.0
        %v3644 = vand.u32 %v3103, 4294901760
        %v3645 = vsub.f32 %v3103, %v3644
        %3646 = vmatpush1.msra.mxu0 %v3645
        %3647 = vmatprep.subr.mxu0 0.0
        %v3648 = vand.u32 %v3102, 4294901760
        %v3649 = vsub.f32 %v3102, %v3648
        %3650 = vmatpush1.msra.mxu0 %v3649
        %3651 = vmatprep.subr.mxu0 0.0
        %v3652 = vand.u32 %v3101, 4294901760
        %v3653 = vsub.f32 %v3101, %v3652
        %3654 = vmatpush1.msra.mxu0 %v3653
        %3655 = vmatprep.subr.mxu0 0.0
        %v3656 = vand.u32 %v3100, 4294901760
        %v3657 = vsub.f32 %v3100, %v3656
        %3658 = vmatpush1.msra.mxu0 %v3657
        %3659 = vmatprep.subr.mxu0 0.0
        %v3660 = vand.u32 %v3099, 4294901760
        %v3661 = vsub.f32 %v3099, %v3660
        %3662 = vmatpush1.msra.mxu0 %v3661
        %3663 = vmatprep.subr.mxu0 0.0
        %v3664 = vand.u32 %v3098, 4294901760
        %v3665 = vsub.f32 %v3098, %v3664
        %3666 = vmatpush1.msra.mxu0 %v3665
        %3667 = vmatprep.subr.mxu0 0.0
        %3668 = vmatpush2.msra.mxu0 0.0
        %3669 = vmatprep.subr.mxu0 0.0
        %3670 = vmatpush2.msra.mxu0 0.0
        %3671 = vmatprep.subr.mxu0 0.0
        %3672 = vmatpush2.msra.mxu0 0.0
        %3673 = vmatprep.subr.mxu0 0.0
        %3674 = vmatpush2.msra.mxu0 0.0
        %3675 = vmatprep.subr.mxu0 0.0
        %3676 = vmatpush2.msra.mxu0 0.0
        %3677 = vmatprep.subr.mxu0 0.0
        %3678 = vmatpush2.msra.mxu0 0.0
        %3679 = vmatprep.subr.mxu0 0.0
        %3680 = vmatpush2.msra.mxu0 0.0
        %3681 = vmatprep.subr.mxu0 0.0
        %3682 = vmatpush2.msra.mxu0 0.0
        %3683 = vmatprep.subr.mxu0 0.0
        %3684 = vmatpush2.msra.mxu0 0.0
        %3685 = vmatprep.subr.mxu0 0.0
        %3686 = vmatpush2.msra.mxu0 0.0
        %3687 = vmatprep.subr.mxu0 0.0
        %3688 = vmatpush2.msra.mxu0 0.0
        %3689 = vmatprep.subr.mxu0 0.0
        %3690 = vmatpush2.msra.mxu0 0.0
        %3691 = vmatprep.subr.mxu0 0.0
        %3692 = vmatpush2.msra.mxu0 0.0
        %3693 = vmatprep.subr.mxu0 0.0
        %3694 = vmatpush2.msra.mxu0 0.0
        %3695 = vmatprep.subr.mxu0 0.0
        %3696 = vmatpush2.msra.mxu0 0.0
        %3697 = vmatprep.subr.mxu0 0.0
        %3698 = vmatpush2.msra.mxu0 0.0
        %3699 = vmatprep.mubr.f32.mxu0 0.0
        %v3700 = vand.u32 %v3082, 4294901760
        %v3701 = vsub.f32 %v3082, %v3700
        %3702 = vmatmul.mubr.f32.gmra.mxu0 %v3701
        %v3703 = vpop.f32.mrf.mxu0
        %v3704 = vadd.f32 %v3510, %v3703
        %v3705 = vpop.f32.mrf.mxu0
        %3706 = vmatprep.mubr.f32.mxu0 0.0
        %v3707 = vand.u32 %v3083, 4294901760
        %v3708 = vsub.f32 %v3083, %v3707
        %3709 = vmatmul.mubr.f32.gmra.mxu0 %v3708
        %v3710 = vpop.f32.mrf.mxu0
        %v3711 = vadd.f32 %v3516, %v3710
        %v3712 = vpop.f32.mrf.mxu0
        %3713 = vmatprep.mubr.f32.mxu0 0.0
        %v3714 = vand.u32 %v3084, 4294901760
        %v3715 = vsub.f32 %v3084, %v3714
        %3716 = vmatmul.mubr.f32.gmra.mxu0 %v3715
        %v3717 = vpop.f32.mrf.mxu0
        %v3718 = vadd.f32 %v3522, %v3717
        %v3719 = vpop.f32.mrf.mxu0
        %3720 = vmatprep.mubr.f32.mxu0 0.0
        %v3721 = vand.u32 %v3085, 4294901760
        %v3722 = vsub.f32 %v3085, %v3721
        %3723 = vmatmul.mubr.f32.gmra.mxu0 %v3722
        %v3724 = vpop.f32.mrf.mxu0
        %v3725 = vadd.f32 %v3528, %v3724
        %v3726 = vpop.f32.mrf.mxu0
        %3727 = vmatprep.mubr.f32.mxu0 0.0
        %v3728 = vand.u32 %v3086, 4294901760
        %v3729 = vsub.f32 %v3086, %v3728
        %3730 = vmatmul.mubr.f32.gmra.mxu0 %v3729
        %v3731 = vpop.f32.mrf.mxu0
        %v3732 = vadd.f32 %v3534, %v3731
        %v3733 = vpop.f32.mrf.mxu0
        %3734 = vmatprep.mubr.f32.mxu0 0.0
        %v3735 = vand.u32 %v3087, 4294901760
        %v3736 = vsub.f32 %v3087, %v3735
        %3737 = vmatmul.mubr.f32.gmra.mxu0 %v3736
        %v3738 = vpop.f32.mrf.mxu0
        %v3739 = vadd.f32 %v3540, %v3738
        %v3740 = vpop.f32.mrf.mxu0
        %3741 = vmatprep.mubr.f32.mxu0 0.0
        %v3742 = vand.u32 %v3088, 4294901760
        %v3743 = vsub.f32 %v3088, %v3742
        %3744 = vmatmul.mubr.f32.gmra.mxu0 %v3743
        %v3745 = vpop.f32.mrf.mxu0
        %v3746 = vadd.f32 %v3546, %v3745
        %v3747 = vpop.f32.mrf.mxu0
        %3748 = vmatprep.mubr.f32.mxu0 0.0
        %v3749 = vand.u32 %v3089, 4294901760
        %v3750 = vsub.f32 %v3089, %v3749
        %3751 = vmatmul.mubr.f32.gmra.mxu0 %v3750
        %v3752 = vpop.f32.mrf.mxu0
        %v3753 = vadd.f32 %v3552, %v3752
        %v3754 = vpop.f32.mrf.mxu0
        %3755 = vmatprep.mubr.f32.mxu0 0.0
        %v3756 = vand.u32 %v3090, 4294901760
        %v3757 = vsub.f32 %v3090, %v3756
        %3758 = vmatmul.mubr.f32.gmra.mxu0 %v3757
        %v3759 = vpop.f32.mrf.mxu0
        %v3760 = vadd.f32 %v3558, %v3759
        %v3761 = vpop.f32.mrf.mxu0
        %3762 = vmatprep.mubr.f32.mxu0 0.0
        %v3763 = vand.u32 %v3091, 4294901760
        %v3764 = vsub.f32 %v3091, %v3763
        %3765 = vmatmul.mubr.f32.gmra.mxu0 %v3764
        %v3766 = vpop.f32.mrf.mxu0
        %v3767 = vadd.f32 %v3564, %v3766
        %v3768 = vpop.f32.mrf.mxu0
        %3769 = vmatprep.mubr.f32.mxu0 0.0
        %v3770 = vand.u32 %v3092, 4294901760
        %v3771 = vsub.f32 %v3092, %v3770
        %3772 = vmatmul.mubr.f32.gmra.mxu0 %v3771
        %v3773 = vpop.f32.mrf.mxu0
        %v3774 = vadd.f32 %v3570, %v3773
        %v3775 = vpop.f32.mrf.mxu0
        %3776 = vmatprep.mubr.f32.mxu0 0.0
        %v3777 = vand.u32 %v3093, 4294901760
        %v3778 = vsub.f32 %v3093, %v3777
        %3779 = vmatmul.mubr.f32.gmra.mxu0 %v3778
        %v3780 = vpop.f32.mrf.mxu0
        %v3781 = vadd.f32 %v3576, %v3780
        %v3782 = vpop.f32.mrf.mxu0
        %3783 = vmatprep.mubr.f32.mxu0 0.0
        %v3784 = vand.u32 %v3094, 4294901760
        %v3785 = vsub.f32 %v3094, %v3784
        %3786 = vmatmul.mubr.f32.gmra.mxu0 %v3785
        %v3787 = vpop.f32.mrf.mxu0
        %v3788 = vadd.f32 %v3582, %v3787
        %v3789 = vpop.f32.mrf.mxu0
        %3790 = vmatprep.mubr.f32.mxu0 0.0
        %v3791 = vand.u32 %v3095, 4294901760
        %v3792 = vsub.f32 %v3095, %v3791
        %3793 = vmatmul.mubr.f32.gmra.mxu0 %v3792
        %v3794 = vpop.f32.mrf.mxu0
        %v3795 = vadd.f32 %v3588, %v3794
        %v3796 = vpop.f32.mrf.mxu0
        %3797 = vmatprep.mubr.f32.mxu0 0.0
        %v3798 = vand.u32 %v3096, 4294901760
        %v3799 = vsub.f32 %v3096, %v3798
        %3800 = vmatmul.mubr.f32.gmra.mxu0 %v3799
        %v3801 = vpop.f32.mrf.mxu0
        %v3802 = vadd.f32 %v3594, %v3801
        %v3803 = vpop.f32.mrf.mxu0
        %3804 = vmatprep.mubr.f32.mxu0 0.0
        %v3805 = vand.u32 %v3097, 4294901760
        %v3806 = vsub.f32 %v3097, %v3805
        %3807 = vmatmul.mubr.f32.gmra.mxu0 %v3806
        %v3808 = vpop.f32.mrf.mxu0
        %v3809 = vadd.f32 %v3600, %v3808
        %v3810 = vpop.f32.mrf.mxu0
        %3811 = vdwg.mxu0
        %3812 = vmatprep.subr.mxu0 0.0
        %v3813 = vand.u32 %v3113, 4294901760
        %3814 = vmatpush1.msra.mxu0 %v3813
        %3815 = vmatprep.subr.mxu0 0.0
        %v3816 = vand.u32 %v3112, 4294901760
        %3817 = vmatpush1.msra.mxu0 %v3816
        %3818 = vmatprep.subr.mxu0 0.0
        %v3819 = vand.u32 %v3111, 4294901760
        %3820 = vmatpush1.msra.mxu0 %v3819
        %3821 = vmatprep.subr.mxu0 0.0
        %v3822 = vand.u32 %v3110, 4294901760
        %3823 = vmatpush1.msra.mxu0 %v3822
        %3824 = vmatprep.subr.mxu0 0.0
        %v3825 = vand.u32 %v3109, 4294901760
        %3826 = vmatpush1.msra.mxu0 %v3825
        %3827 = vmatprep.subr.mxu0 0.0
        %v3828 = vand.u32 %v3108, 4294901760
        %3829 = vmatpush1.msra.mxu0 %v3828
        %3830 = vmatprep.subr.mxu0 0.0
        %v3831 = vand.u32 %v3107, 4294901760
        %3832 = vmatpush1.msra.mxu0 %v3831
        %3833 = vmatprep.subr.mxu0 0.0
        %v3834 = vand.u32 %v3106, 4294901760
        %3835 = vmatpush1.msra.mxu0 %v3834
        %3836 = vmatprep.subr.mxu0 0.0
        %v3837 = vand.u32 %v3105, 4294901760
        %3838 = vmatpush1.msra.mxu0 %v3837
        %3839 = vmatprep.subr.mxu0 0.0
        %v3840 = vand.u32 %v3104, 4294901760
        %3841 = vmatpush1.msra.mxu0 %v3840
        %3842 = vmatprep.subr.mxu0 0.0
        %v3843 = vand.u32 %v3103, 4294901760
        %3844 = vmatpush1.msra.mxu0 %v3843
        %3845 = vmatprep.subr.mxu0 0.0
        %v3846 = vand.u32 %v3102, 4294901760
        %3847 = vmatpush1.msra.mxu0 %v3846
        %3848 = vmatprep.subr.mxu0 0.0
        %v3849 = vand.u32 %v3101, 4294901760
        %3850 = vmatpush1.msra.mxu0 %v3849
        %3851 = vmatprep.subr.mxu0 0.0
        %v3852 = vand.u32 %v3100, 4294901760
        %3853 = vmatpush1.msra.mxu0 %v3852
        %3854 = vmatprep.subr.mxu0 0.0
        %v3855 = vand.u32 %v3099, 4294901760
        %3856 = vmatpush1.msra.mxu0 %v3855
        %3857 = vmatprep.subr.mxu0 0.0
        %v3858 = vand.u32 %v3098, 4294901760
        %3859 = vmatpush1.msra.mxu0 %v3858
        %3860 = vmatprep.subr.mxu0 0.0
        %3861 = vmatpush2.msra.mxu0 0.0
        %3862 = vmatprep.subr.mxu0 0.0
        %3863 = vmatpush2.msra.mxu0 0.0
        %3864 = vmatprep.subr.mxu0 0.0
        %3865 = vmatpush2.msra.mxu0 0.0
        %3866 = vmatprep.subr.mxu0 0.0
        %3867 = vmatpush2.msra.mxu0 0.0
        %3868 = vmatprep.subr.mxu0 0.0
        %3869 = vmatpush2.msra.mxu0 0.0
        %3870 = vmatprep.subr.mxu0 0.0
        %3871 = vmatpush2.msra.mxu0 0.0
        %3872 = vmatprep.subr.mxu0 0.0
        %3873 = vmatpush2.msra.mxu0 0.0
        %3874 = vmatprep.subr.mxu0 0.0
        %3875 = vmatpush2.msra.mxu0 0.0
        %3876 = vmatprep.subr.mxu0 0.0
        %3877 = vmatpush2.msra.mxu0 0.0
        %3878 = vmatprep.subr.mxu0 0.0
        %3879 = vmatpush2.msra.mxu0 0.0
        %3880 = vmatprep.subr.mxu0 0.0
        %3881 = vmatpush2.msra.mxu0 0.0
        %3882 = vmatprep.subr.mxu0 0.0
        %3883 = vmatpush2.msra.mxu0 0.0
        %3884 = vmatprep.subr.mxu0 0.0
        %3885 = vmatpush2.msra.mxu0 0.0
        %3886 = vmatprep.subr.mxu0 0.0
        %3887 = vmatpush2.msra.mxu0 0.0
        %3888 = vmatprep.subr.mxu0 0.0
        %3889 = vmatpush2.msra.mxu0 0.0
        %3890 = vmatprep.subr.mxu0 0.0
        %3891 = vmatpush2.msra.mxu0 0.0
        %3892 = vmatprep.mubr.f32.mxu0 0.0
        %v3893 = vand.u32 %v3082, 4294901760
        %v3894 = vsub.f32 %v3082, %v3893
        %v3895 = vand.u32 %v3894, 4294901760
        %3896 = vmatmul.mubr.f32.gmra.mxu0 %v3895
        %v3897 = vpop.f32.mrf.mxu0
        %v3898 = vadd.f32 %v3704, %v3897
        %v3899 = vpop.f32.mrf.mxu0
        %3900 = vmatprep.mubr.f32.mxu0 0.0
        %v3901 = vand.u32 %v3083, 4294901760
        %v3902 = vsub.f32 %v3083, %v3901
        %v3903 = vand.u32 %v3902, 4294901760
        %3904 = vmatmul.mubr.f32.gmra.mxu0 %v3903
        %v3905 = vpop.f32.mrf.mxu0
        %v3906 = vadd.f32 %v3711, %v3905
        %v3907 = vpop.f32.mrf.mxu0
        %3908 = vmatprep.mubr.f32.mxu0 0.0
        %v3909 = vand.u32 %v3084, 4294901760
        %v3910 = vsub.f32 %v3084, %v3909
        %v3911 = vand.u32 %v3910, 4294901760
        %3912 = vmatmul.mubr.f32.gmra.mxu0 %v3911
        %v3913 = vpop.f32.mrf.mxu0
        %v3914 = vadd.f32 %v3718, %v3913
        %v3915 = vpop.f32.mrf.mxu0
        %3916 = vmatprep.mubr.f32.mxu0 0.0
        %v3917 = vand.u32 %v3085, 4294901760
        %v3918 = vsub.f32 %v3085, %v3917
        %v3919 = vand.u32 %v3918, 4294901760
        %3920 = vmatmul.mubr.f32.gmra.mxu0 %v3919
        %v3921 = vpop.f32.mrf.mxu0
        %v3922 = vadd.f32 %v3725, %v3921
        %v3923 = vpop.f32.mrf.mxu0
        %3924 = vmatprep.mubr.f32.mxu0 0.0
        %v3925 = vand.u32 %v3086, 4294901760
        %v3926 = vsub.f32 %v3086, %v3925
        %v3927 = vand.u32 %v3926, 4294901760
        %3928 = vmatmul.mubr.f32.gmra.mxu0 %v3927
        %v3929 = vpop.f32.mrf.mxu0
        %v3930 = vadd.f32 %v3732, %v3929
        %v3931 = vpop.f32.mrf.mxu0
        %3932 = vmatprep.mubr.f32.mxu0 0.0
        %v3933 = vand.u32 %v3087, 4294901760
        %v3934 = vsub.f32 %v3087, %v3933
        %v3935 = vand.u32 %v3934, 4294901760
        %3936 = vmatmul.mubr.f32.gmra.mxu0 %v3935
        %v3937 = vpop.f32.mrf.mxu0
        %v3938 = vadd.f32 %v3739, %v3937
        %v3939 = vpop.f32.mrf.mxu0
        %3940 = vmatprep.mubr.f32.mxu0 0.0
        %v3941 = vand.u32 %v3088, 4294901760
        %v3942 = vsub.f32 %v3088, %v3941
        %v3943 = vand.u32 %v3942, 4294901760
        %3944 = vmatmul.mubr.f32.gmra.mxu0 %v3943
        %v3945 = vpop.f32.mrf.mxu0
        %v3946 = vadd.f32 %v3746, %v3945
        %v3947 = vpop.f32.mrf.mxu0
        %3948 = vmatprep.mubr.f32.mxu0 0.0
        %v3949 = vand.u32 %v3089, 4294901760
        %v3950 = vsub.f32 %v3089, %v3949
        %v3951 = vand.u32 %v3950, 4294901760
        %3952 = vmatmul.mubr.f32.gmra.mxu0 %v3951
        %v3953 = vpop.f32.mrf.mxu0
        %v3954 = vadd.f32 %v3753, %v3953
        %v3955 = vpop.f32.mrf.mxu0
        %3956 = vmatprep.mubr.f32.mxu0 0.0
        %v3957 = vand.u32 %v3090, 4294901760
        %v3958 = vsub.f32 %v3090, %v3957
        %v3959 = vand.u32 %v3958, 4294901760
        %3960 = vmatmul.mubr.f32.gmra.mxu0 %v3959
        %v3961 = vpop.f32.mrf.mxu0
        %v3962 = vadd.f32 %v3760, %v3961
        %v3963 = vpop.f32.mrf.mxu0
        %3964 = vmatprep.mubr.f32.mxu0 0.0
        %v3965 = vand.u32 %v3091, 4294901760
        %v3966 = vsub.f32 %v3091, %v3965
        %v3967 = vand.u32 %v3966, 4294901760
        %3968 = vmatmul.mubr.f32.gmra.mxu0 %v3967
        %v3969 = vpop.f32.mrf.mxu0
        %v3970 = vadd.f32 %v3767, %v3969
        %v3971 = vpop.f32.mrf.mxu0
        %3972 = vmatprep.mubr.f32.mxu0 0.0
        %v3973 = vand.u32 %v3092, 4294901760
        %v3974 = vsub.f32 %v3092, %v3973
        %v3975 = vand.u32 %v3974, 4294901760
        %3976 = vmatmul.mubr.f32.gmra.mxu0 %v3975
        %v3977 = vpop.f32.mrf.mxu0
        %v3978 = vadd.f32 %v3774, %v3977
        %v3979 = vpop.f32.mrf.mxu0
        %3980 = vmatprep.mubr.f32.mxu0 0.0
        %v3981 = vand.u32 %v3093, 4294901760
        %v3982 = vsub.f32 %v3093, %v3981
        %v3983 = vand.u32 %v3982, 4294901760
        %3984 = vmatmul.mubr.f32.gmra.mxu0 %v3983
        %v3985 = vpop.f32.mrf.mxu0
        %v3986 = vadd.f32 %v3781, %v3985
        %v3987 = vpop.f32.mrf.mxu0
        %3988 = vmatprep.mubr.f32.mxu0 0.0
        %v3989 = vand.u32 %v3094, 4294901760
        %v3990 = vsub.f32 %v3094, %v3989
        %v3991 = vand.u32 %v3990, 4294901760
        %3992 = vmatmul.mubr.f32.gmra.mxu0 %v3991
        %v3993 = vpop.f32.mrf.mxu0
        %v3994 = vadd.f32 %v3788, %v3993
        %v3995 = vpop.f32.mrf.mxu0
        %3996 = vmatprep.mubr.f32.mxu0 0.0
        %v3997 = vand.u32 %v3095, 4294901760
        %v3998 = vsub.f32 %v3095, %v3997
        %v3999 = vand.u32 %v3998, 4294901760
        %4000 = vmatmul.mubr.f32.gmra.mxu0 %v3999
        %v4001 = vpop.f32.mrf.mxu0
        %v4002 = vadd.f32 %v3795, %v4001
        %v4003 = vpop.f32.mrf.mxu0
        %4004 = vmatprep.mubr.f32.mxu0 0.0
        %v4005 = vand.u32 %v3096, 4294901760
        %v4006 = vsub.f32 %v3096, %v4005
        %v4007 = vand.u32 %v4006, 4294901760
        %4008 = vmatmul.mubr.f32.gmra.mxu0 %v4007
        %v4009 = vpop.f32.mrf.mxu0
        %v4010 = vadd.f32 %v3802, %v4009
        %v4011 = vpop.f32.mrf.mxu0
        %4012 = vmatprep.mubr.f32.mxu0 0.0
        %v4013 = vand.u32 %v3097, 4294901760
        %v4014 = vsub.f32 %v3097, %v4013
        %v4015 = vand.u32 %v4014, 4294901760
        %4016 = vmatmul.mubr.f32.gmra.mxu0 %v4015
        %v4017 = vpop.f32.mrf.mxu0
        %v4018 = vadd.f32 %v3809, %v4017
        %v4019 = vpop.f32.mrf.mxu0
        %4020 = vdwg.mxu0
        %4021 = vmatprep.subr.mxu0 0.0
        %v4022 = vand.u32 %v3113, 4294901760
        %v4023 = vsub.f32 %v3113, %v4022
        %v4024 = vand.u32 %v4023, 4294901760
        %4025 = vmatpush1.msra.mxu0 %v4024
        %4026 = vmatprep.subr.mxu0 0.0
        %v4027 = vand.u32 %v3112, 4294901760
        %v4028 = vsub.f32 %v3112, %v4027
        %v4029 = vand.u32 %v4028, 4294901760
        %4030 = vmatpush1.msra.mxu0 %v4029
        %4031 = vmatprep.subr.mxu0 0.0
        %v4032 = vand.u32 %v3111, 4294901760
        %v4033 = vsub.f32 %v3111, %v4032
        %v4034 = vand.u32 %v4033, 4294901760
        %4035 = vmatpush1.msra.mxu0 %v4034
        %4036 = vmatprep.subr.mxu0 0.0
        %v4037 = vand.u32 %v3110, 4294901760
        %v4038 = vsub.f32 %v3110, %v4037
        %v4039 = vand.u32 %v4038, 4294901760
        %4040 = vmatpush1.msra.mxu0 %v4039
        %4041 = vmatprep.subr.mxu0 0.0
        %v4042 = vand.u32 %v3109, 4294901760
        %v4043 = vsub.f32 %v3109, %v4042
        %v4044 = vand.u32 %v4043, 4294901760
        %4045 = vmatpush1.msra.mxu0 %v4044
        %4046 = vmatprep.subr.mxu0 0.0
        %v4047 = vand.u32 %v3108, 4294901760
        %v4048 = vsub.f32 %v3108, %v4047
        %v4049 = vand.u32 %v4048, 4294901760
        %4050 = vmatpush1.msra.mxu0 %v4049
        %4051 = vmatprep.subr.mxu0 0.0
        %v4052 = vand.u32 %v3107, 4294901760
        %v4053 = vsub.f32 %v3107, %v4052
        %v4054 = vand.u32 %v4053, 4294901760
        %4055 = vmatpush1.msra.mxu0 %v4054
        %4056 = vmatprep.subr.mxu0 0.0
        %v4057 = vand.u32 %v3106, 4294901760
        %v4058 = vsub.f32 %v3106, %v4057
        %v4059 = vand.u32 %v4058, 4294901760
        %4060 = vmatpush1.msra.mxu0 %v4059
        %4061 = vmatprep.subr.mxu0 0.0
        %v4062 = vand.u32 %v3105, 4294901760
        %v4063 = vsub.f32 %v3105, %v4062
        %v4064 = vand.u32 %v4063, 4294901760
        %4065 = vmatpush1.msra.mxu0 %v4064
        %4066 = vmatprep.subr.mxu0 0.0
        %v4067 = vand.u32 %v3104, 4294901760
        %v4068 = vsub.f32 %v3104, %v4067
        %v4069 = vand.u32 %v4068, 4294901760
        %4070 = vmatpush1.msra.mxu0 %v4069
        %4071 = vmatprep.subr.mxu0 0.0
        %v4072 = vand.u32 %v3103, 4294901760
        %v4073 = vsub.f32 %v3103, %v4072
        %v4074 = vand.u32 %v4073, 4294901760
        %4075 = vmatpush1.msra.mxu0 %v4074
        %4076 = vmatprep.subr.mxu0 0.0
        %v4077 = vand.u32 %v3102, 4294901760
        %v4078 = vsub.f32 %v3102, %v4077
        %v4079 = vand.u32 %v4078, 4294901760
        %4080 = vmatpush1.msra.mxu0 %v4079
        %4081 = vmatprep.subr.mxu0 0.0
        %v4082 = vand.u32 %v3101, 4294901760
        %v4083 = vsub.f32 %v3101, %v4082
        %v4084 = vand.u32 %v4083, 4294901760
        %4085 = vmatpush1.msra.mxu0 %v4084
        %4086 = vmatprep.subr.mxu0 0.0
        %v4087 = vand.u32 %v3100, 4294901760
        %v4088 = vsub.f32 %v3100, %v4087
        %v4089 = vand.u32 %v4088, 4294901760
        %4090 = vmatpush1.msra.mxu0 %v4089
        %4091 = vmatprep.subr.mxu0 0.0
        %v4092 = vand.u32 %v3099, 4294901760
        %v4093 = vsub.f32 %v3099, %v4092
        %v4094 = vand.u32 %v4093, 4294901760
        %4095 = vmatpush1.msra.mxu0 %v4094
        %4096 = vmatprep.subr.mxu0 0.0
        %v4097 = vand.u32 %v3098, 4294901760
        %v4098 = vsub.f32 %v3098, %v4097
        %v4099 = vand.u32 %v4098, 4294901760
        %4100 = vmatpush1.msra.mxu0 %v4099
        %4101 = vmatprep.subr.mxu0 0.0
        %4102 = vmatpush2.msra.mxu0 0.0
        %4103 = vmatprep.subr.mxu0 0.0
        %4104 = vmatpush2.msra.mxu0 0.0
        %4105 = vmatprep.subr.mxu0 0.0
        %4106 = vmatpush2.msra.mxu0 0.0
        %4107 = vmatprep.subr.mxu0 0.0
        %4108 = vmatpush2.msra.mxu0 0.0
        %4109 = vmatprep.subr.mxu0 0.0
        %4110 = vmatpush2.msra.mxu0 0.0
        %4111 = vmatprep.subr.mxu0 0.0
        %4112 = vmatpush2.msra.mxu0 0.0
        %4113 = vmatprep.subr.mxu0 0.0
        %4114 = vmatpush2.msra.mxu0 0.0
        %4115 = vmatprep.subr.mxu0 0.0
        %4116 = vmatpush2.msra.mxu0 0.0
        %4117 = vmatprep.subr.mxu0 0.0
        %4118 = vmatpush2.msra.mxu0 0.0
        %4119 = vmatprep.subr.mxu0 0.0
        %4120 = vmatpush2.msra.mxu0 0.0
        %4121 = vmatprep.subr.mxu0 0.0
        %4122 = vmatpush2.msra.mxu0 0.0
        %4123 = vmatprep.subr.mxu0 0.0
        %4124 = vmatpush2.msra.mxu0 0.0
        %4125 = vmatprep.subr.mxu0 0.0
        %4126 = vmatpush2.msra.mxu0 0.0
        %4127 = vmatprep.subr.mxu0 0.0
        %4128 = vmatpush2.msra.mxu0 0.0
        %4129 = vmatprep.subr.mxu0 0.0
        %4130 = vmatpush2.msra.mxu0 0.0
        %4131 = vmatprep.subr.mxu0 0.0
        %4132 = vmatpush2.msra.mxu0 0.0
        %4133 = vmatprep.mubr.f32.mxu0 0.0
        %v4134 = vand.u32 %v3082, 4294901760
        %4135 = vmatmul.mubr.f32.gmra.mxu0 %v4134
        %v4136 = vpop.f32.mrf.mxu0
        %v4137 = vadd.f32 %v3898, %v4136
        %v4138 = vpop.f32.mrf.mxu0
        %4139 = vmatprep.mubr.f32.mxu0 0.0
        %v4140 = vand.u32 %v3083, 4294901760
        %4141 = vmatmul.mubr.f32.gmra.mxu0 %v4140
        %v4142 = vpop.f32.mrf.mxu0
        %v4143 = vadd.f32 %v3906, %v4142
        %v4144 = vpop.f32.mrf.mxu0
        %4145 = vmatprep.mubr.f32.mxu0 0.0
        %v4146 = vand.u32 %v3084, 4294901760
        %4147 = vmatmul.mubr.f32.gmra.mxu0 %v4146
        %v4148 = vpop.f32.mrf.mxu0
        %v4149 = vadd.f32 %v3914, %v4148
        %v4150 = vpop.f32.mrf.mxu0
        %4151 = vmatprep.mubr.f32.mxu0 0.0
        %v4152 = vand.u32 %v3085, 4294901760
        %4153 = vmatmul.mubr.f32.gmra.mxu0 %v4152
        %v4154 = vpop.f32.mrf.mxu0
        %v4155 = vadd.f32 %v3922, %v4154
        %v4156 = vpop.f32.mrf.mxu0
        %4157 = vmatprep.mubr.f32.mxu0 0.0
        %v4158 = vand.u32 %v3086, 4294901760
        %4159 = vmatmul.mubr.f32.gmra.mxu0 %v4158
        %v4160 = vpop.f32.mrf.mxu0
        %v4161 = vadd.f32 %v3930, %v4160
        %v4162 = vpop.f32.mrf.mxu0
        %4163 = vmatprep.mubr.f32.mxu0 0.0
        %v4164 = vand.u32 %v3087, 4294901760
        %4165 = vmatmul.mubr.f32.gmra.mxu0 %v4164
        %v4166 = vpop.f32.mrf.mxu0
        %v4167 = vadd.f32 %v3938, %v4166
        %v4168 = vpop.f32.mrf.mxu0
        %4169 = vmatprep.mubr.f32.mxu0 0.0
        %v4170 = vand.u32 %v3088, 4294901760
        %4171 = vmatmul.mubr.f32.gmra.mxu0 %v4170
        %v4172 = vpop.f32.mrf.mxu0
        %v4173 = vadd.f32 %v3946, %v4172
        %v4174 = vpop.f32.mrf.mxu0
        %4175 = vmatprep.mubr.f32.mxu0 0.0
        %v4176 = vand.u32 %v3089, 4294901760
        %4177 = vmatmul.mubr.f32.gmra.mxu0 %v4176
        %v4178 = vpop.f32.mrf.mxu0
        %v4179 = vadd.f32 %v3954, %v4178
        %v4180 = vpop.f32.mrf.mxu0
        %4181 = vmatprep.mubr.f32.mxu0 0.0
        %v4182 = vand.u32 %v3090, 4294901760
        %4183 = vmatmul.mubr.f32.gmra.mxu0 %v4182
        %v4184 = vpop.f32.mrf.mxu0
        %v4185 = vadd.f32 %v3962, %v4184
        %v4186 = vpop.f32.mrf.mxu0
        %4187 = vmatprep.mubr.f32.mxu0 0.0
        %v4188 = vand.u32 %v3091, 4294901760
        %4189 = vmatmul.mubr.f32.gmra.mxu0 %v4188
        %v4190 = vpop.f32.mrf.mxu0
        %v4191 = vadd.f32 %v3970, %v4190
        %v4192 = vpop.f32.mrf.mxu0
        %4193 = vmatprep.mubr.f32.mxu0 0.0
        %v4194 = vand.u32 %v3092, 4294901760
        %4195 = vmatmul.mubr.f32.gmra.mxu0 %v4194
        %v4196 = vpop.f32.mrf.mxu0
        %v4197 = vadd.f32 %v3978, %v4196
        %v4198 = vpop.f32.mrf.mxu0
        %4199 = vmatprep.mubr.f32.mxu0 0.0
        %v4200 = vand.u32 %v3093, 4294901760
        %4201 = vmatmul.mubr.f32.gmra.mxu0 %v4200
        %v4202 = vpop.f32.mrf.mxu0
        %v4203 = vadd.f32 %v3986, %v4202
        %v4204 = vpop.f32.mrf.mxu0
        %4205 = vmatprep.mubr.f32.mxu0 0.0
        %v4206 = vand.u32 %v3094, 4294901760
        %4207 = vmatmul.mubr.f32.gmra.mxu0 %v4206
        %v4208 = vpop.f32.mrf.mxu0
        %v4209 = vadd.f32 %v3994, %v4208
        %v4210 = vpop.f32.mrf.mxu0
        %4211 = vmatprep.mubr.f32.mxu0 0.0
        %v4212 = vand.u32 %v3095, 4294901760
        %4213 = vmatmul.mubr.f32.gmra.mxu0 %v4212
        %v4214 = vpop.f32.mrf.mxu0
        %v4215 = vadd.f32 %v4002, %v4214
        %v4216 = vpop.f32.mrf.mxu0
        %4217 = vmatprep.mubr.f32.mxu0 0.0
        %v4218 = vand.u32 %v3096, 4294901760
        %4219 = vmatmul.mubr.f32.gmra.mxu0 %v4218
        %v4220 = vpop.f32.mrf.mxu0
        %v4221 = vadd.f32 %v4010, %v4220
        %v4222 = vpop.f32.mrf.mxu0
        %4223 = vmatprep.mubr.f32.mxu0 0.0
        %v4224 = vand.u32 %v3097, 4294901760
        %4225 = vmatmul.mubr.f32.gmra.mxu0 %v4224
        %v4226 = vpop.f32.mrf.mxu0
        %v4227 = vadd.f32 %v4018, %v4226
        %v4228 = vpop.f32.mrf.mxu0
        %4229 = vdwg.mxu0
        %4230 = vmatprep.subr.mxu0 0.0
        %v4231 = vand.u32 %v3113, 4294901760
        %4232 = vmatpush1.msra.mxu0 %v4231
        %4233 = vmatprep.subr.mxu0 0.0
        %v4234 = vand.u32 %v3112, 4294901760
        %4235 = vmatpush1.msra.mxu0 %v4234
        %4236 = vmatprep.subr.mxu0 0.0
        %v4237 = vand.u32 %v3111, 4294901760
        %4238 = vmatpush1.msra.mxu0 %v4237
        %4239 = vmatprep.subr.mxu0 0.0
        %v4240 = vand.u32 %v3110, 4294901760
        %4241 = vmatpush1.msra.mxu0 %v4240
        %4242 = vmatprep.subr.mxu0 0.0
        %v4243 = vand.u32 %v3109, 4294901760
        %4244 = vmatpush1.msra.mxu0 %v4243
        %4245 = vmatprep.subr.mxu0 0.0
        %v4246 = vand.u32 %v3108, 4294901760
        %4247 = vmatpush1.msra.mxu0 %v4246
        %4248 = vmatprep.subr.mxu0 0.0
        %v4249 = vand.u32 %v3107, 4294901760
        %4250 = vmatpush1.msra.mxu0 %v4249
        %4251 = vmatprep.subr.mxu0 0.0
        %v4252 = vand.u32 %v3106, 4294901760
        %4253 = vmatpush1.msra.mxu0 %v4252
        %4254 = vmatprep.subr.mxu0 0.0
        %v4255 = vand.u32 %v3105, 4294901760
        %4256 = vmatpush1.msra.mxu0 %v4255
        %4257 = vmatprep.subr.mxu0 0.0
        %v4258 = vand.u32 %v3104, 4294901760
        %4259 = vmatpush1.msra.mxu0 %v4258
        %4260 = vmatprep.subr.mxu0 0.0
        %v4261 = vand.u32 %v3103, 4294901760
        %4262 = vmatpush1.msra.mxu0 %v4261
        %4263 = vmatprep.subr.mxu0 0.0
        %v4264 = vand.u32 %v3102, 4294901760
        %4265 = vmatpush1.msra.mxu0 %v4264
        %4266 = vmatprep.subr.mxu0 0.0
        %v4267 = vand.u32 %v3101, 4294901760
        %4268 = vmatpush1.msra.mxu0 %v4267
        %4269 = vmatprep.subr.mxu0 0.0
        %v4270 = vand.u32 %v3100, 4294901760
        %4271 = vmatpush1.msra.mxu0 %v4270
        %4272 = vmatprep.subr.mxu0 0.0
        %v4273 = vand.u32 %v3099, 4294901760
        %4274 = vmatpush1.msra.mxu0 %v4273
        %4275 = vmatprep.subr.mxu0 0.0
        %v4276 = vand.u32 %v3098, 4294901760
        %4277 = vmatpush1.msra.mxu0 %v4276
        %4278 = vmatprep.subr.mxu0 0.0
        %4279 = vmatpush2.msra.mxu0 0.0
        %4280 = vmatprep.subr.mxu0 0.0
        %4281 = vmatpush2.msra.mxu0 0.0
        %4282 = vmatprep.subr.mxu0 0.0
        %4283 = vmatpush2.msra.mxu0 0.0
        %4284 = vmatprep.subr.mxu0 0.0
        %4285 = vmatpush2.msra.mxu0 0.0
        %4286 = vmatprep.subr.mxu0 0.0
        %4287 = vmatpush2.msra.mxu0 0.0
        %4288 = vmatprep.subr.mxu0 0.0
        %4289 = vmatpush2.msra.mxu0 0.0
        %4290 = vmatprep.subr.mxu0 0.0
        %4291 = vmatpush2.msra.mxu0 0.0
        %4292 = vmatprep.subr.mxu0 0.0
        %4293 = vmatpush2.msra.mxu0 0.0
        %4294 = vmatprep.subr.mxu0 0.0
        %4295 = vmatpush2.msra.mxu0 0.0
        %4296 = vmatprep.subr.mxu0 0.0
        %4297 = vmatpush2.msra.mxu0 0.0
        %4298 = vmatprep.subr.mxu0 0.0
        %4299 = vmatpush2.msra.mxu0 0.0
        %4300 = vmatprep.subr.mxu0 0.0
        %4301 = vmatpush2.msra.mxu0 0.0
        %4302 = vmatprep.subr.mxu0 0.0
        %4303 = vmatpush2.msra.mxu0 0.0
        %4304 = vmatprep.subr.mxu0 0.0
        %4305 = vmatpush2.msra.mxu0 0.0
        %4306 = vmatprep.subr.mxu0 0.0
        %4307 = vmatpush2.msra.mxu0 0.0
        %4308 = vmatprep.subr.mxu0 0.0
        %4309 = vmatpush2.msra.mxu0 0.0
        %4310 = vmatprep.mubr.f32.mxu0 0.0
        %v4311 = vand.u32 %v3082, 4294901760
        %4312 = vmatmul.mubr.f32.gmra.mxu0 %v4311
        %v4313 = vpop.f32.mrf.mxu0
        %v4314 = vadd.f32 %v4137, %v4313
        %v4315 = vpop.f32.mrf.mxu0
        %4316 = vmatprep.mubr.f32.mxu0 0.0
        %v4317 = vand.u32 %v3083, 4294901760
        %4318 = vmatmul.mubr.f32.gmra.mxu0 %v4317
        %v4319 = vpop.f32.mrf.mxu0
        %v4320 = vadd.f32 %v4143, %v4319
        %v4321 = vpop.f32.mrf.mxu0
        %4322 = vmatprep.mubr.f32.mxu0 0.0
        %v4323 = vand.u32 %v3084, 4294901760
        %4324 = vmatmul.mubr.f32.gmra.mxu0 %v4323
        %v4325 = vpop.f32.mrf.mxu0
        %v4326 = vadd.f32 %v4149, %v4325
        %v4327 = vpop.f32.mrf.mxu0
        %4328 = vmatprep.mubr.f32.mxu0 0.0
        %v4329 = vand.u32 %v3085, 4294901760
        %4330 = vmatmul.mubr.f32.gmra.mxu0 %v4329
        %v4331 = vpop.f32.mrf.mxu0
        %v4332 = vadd.f32 %v4155, %v4331
        %v4333 = vpop.f32.mrf.mxu0
        %4334 = vmatprep.mubr.f32.mxu0 0.0
        %v4335 = vand.u32 %v3086, 4294901760
        %4336 = vmatmul.mubr.f32.gmra.mxu0 %v4335
        %v4337 = vpop.f32.mrf.mxu0
        %v4338 = vadd.f32 %v4161, %v4337
        %v4339 = vpop.f32.mrf.mxu0
        %4340 = vmatprep.mubr.f32.mxu0 0.0
        %v4341 = vand.u32 %v3087, 4294901760
        %4342 = vmatmul.mubr.f32.gmra.mxu0 %v4341
        %v4343 = vpop.f32.mrf.mxu0
        %v4344 = vadd.f32 %v4167, %v4343
        %v4345 = vpop.f32.mrf.mxu0
        %4346 = vmatprep.mubr.f32.mxu0 0.0
        %v4347 = vand.u32 %v3088, 4294901760
        %4348 = vmatmul.mubr.f32.gmra.mxu0 %v4347
        %v4349 = vpop.f32.mrf.mxu0
        %v4350 = vadd.f32 %v4173, %v4349
        %v4351 = vpop.f32.mrf.mxu0
        %4352 = vmatprep.mubr.f32.mxu0 0.0
        %v4353 = vand.u32 %v3089, 4294901760
        %4354 = vmatmul.mubr.f32.gmra.mxu0 %v4353
        %v4355 = vpop.f32.mrf.mxu0
        %v4356 = vadd.f32 %v4179, %v4355
        %v4357 = vpop.f32.mrf.mxu0
        %4358 = vmatprep.mubr.f32.mxu0 0.0
        %v4359 = vand.u32 %v3090, 4294901760
        %4360 = vmatmul.mubr.f32.gmra.mxu0 %v4359
        %v4361 = vpop.f32.mrf.mxu0
        %v4362 = vadd.f32 %v4185, %v4361
        %v4363 = vpop.f32.mrf.mxu0
        %4364 = vmatprep.mubr.f32.mxu0 0.0
        %v4365 = vand.u32 %v3091, 4294901760
        %4366 = vmatmul.mubr.f32.gmra.mxu0 %v4365
        %v4367 = vpop.f32.mrf.mxu0
        %v4368 = vadd.f32 %v4191, %v4367
        %v4369 = vpop.f32.mrf.mxu0
        %4370 = vmatprep.mubr.f32.mxu0 0.0
        %v4371 = vand.u32 %v3092, 4294901760
        %4372 = vmatmul.mubr.f32.gmra.mxu0 %v4371
        %v4373 = vpop.f32.mrf.mxu0
        %v4374 = vadd.f32 %v4197, %v4373
        %v4375 = vpop.f32.mrf.mxu0
        %4376 = vmatprep.mubr.f32.mxu0 0.0
        %v4377 = vand.u32 %v3093, 4294901760
        %4378 = vmatmul.mubr.f32.gmra.mxu0 %v4377
        %v4379 = vpop.f32.mrf.mxu0
        %v4380 = vadd.f32 %v4203, %v4379
        %v4381 = vpop.f32.mrf.mxu0
        %4382 = vmatprep.mubr.f32.mxu0 0.0
        %v4383 = vand.u32 %v3094, 4294901760
        %4384 = vmatmul.mubr.f32.gmra.mxu0 %v4383
        %v4385 = vpop.f32.mrf.mxu0
        %v4386 = vadd.f32 %v4209, %v4385
        %v4387 = vpop.f32.mrf.mxu0
        %4388 = vmatprep.mubr.f32.mxu0 0.0
        %v4389 = vand.u32 %v3095, 4294901760
        %4390 = vmatmul.mubr.f32.gmra.mxu0 %v4389
        %v4391 = vpop.f32.mrf.mxu0
        %v4392 = vadd.f32 %v4215, %v4391
        %v4393 = vpop.f32.mrf.mxu0
        %4394 = vmatprep.mubr.f32.mxu0 0.0
        %v4395 = vand.u32 %v3096, 4294901760
        %4396 = vmatmul.mubr.f32.gmra.mxu0 %v4395
        %v4397 = vpop.f32.mrf.mxu0
        %v4398 = vadd.f32 %v4221, %v4397
        %v4399 = vpop.f32.mrf.mxu0
        %4400 = vmatprep.mubr.f32.mxu0 0.0
        %v4401 = vand.u32 %v3097, 4294901760
        %4402 = vmatmul.mubr.f32.gmra.mxu0 %v4401
        %v4403 = vpop.f32.mrf.mxu0
        %v4404 = vadd.f32 %v4227, %v4403
        %v4405 = vpop.f32.mrf.mxu0
        %4406 = vdwg.mxu0
        %v4407 = vmax.f32 %v4314, 0.0
        %v4408 = vmax.f32 %v4320, 0.0
        %v4409 = vmax.f32 %v4326, 0.0
        %v4410 = vmax.f32 %v4332, 0.0
        %v4411 = vmax.f32 %v4338, 0.0
        %v4412 = vmax.f32 %v4344, 0.0
        %v4413 = vmax.f32 %v4350, 0.0
        %v4414 = vmax.f32 %v4356, 0.0
        %v4415 = vmax.f32 %v4362, 0.0
        %v4416 = vmax.f32 %v4368, 0.0
        %v4417 = vmax.f32 %v4374, 0.0
        %v4418 = vmax.f32 %v4380, 0.0
        %v4419 = vmax.f32 %v4386, 0.0
        %v4420 = vmax.f32 %v4392, 0.0
        %v4421 = vmax.f32 %v4398, 0.0
        %v4422 = vmax.f32 %v4404, 0.0
        %v4423 = vld [vmem:[#allocation9] sm:$0xff]
        %v4424 = vld [vmem:[#allocation9 + $0x8] sm:$0xff]
        %v4425 = vld [vmem:[#allocation9 + $0x10] sm:$0xff]
        %v4426 = vld [vmem:[#allocation9 + $0x18] sm:$0xff]
        %v4427 = vld [vmem:[#allocation9 + $0x20] sm:$0xff]
        %v4428 = vld [vmem:[#allocation9 + $0x28] sm:$0xff]
        %v4429 = vld [vmem:[#allocation9 + $0x30] sm:$0xff]
        %v4430 = vld [vmem:[#allocation9 + $0x38] sm:$0xff]
        %v4431 = vld [vmem:[#allocation9 + $0x40] sm:$0xff]
        %v4432 = vld [vmem:[#allocation9 + $0x48] sm:$0xff]
        %v4433 = vld [vmem:[#allocation9 + $0x50] sm:$0xff]
        %v4434 = vld [vmem:[#allocation9 + $0x58] sm:$0xff]
        %v4435 = vld [vmem:[#allocation9 + $0x60] sm:$0xff]
        %v4436 = vld [vmem:[#allocation9 + $0x68] sm:$0xff]
        %v4437 = vld [vmem:[#allocation9 + $0x70] sm:$0xff]
        %v4438 = vld [vmem:[#allocation9 + $0x78] sm:$0xff]
        %v4439 = vld [vmem:[%s8] sm:$0x1]
        %v4441 = vlaneseq
        %v4442 = vshrl.u32 %v4441, 7
        %v4443 = vsub.s32 0, %v4442
        %v4444 = vrot.slane %v4439, %v4443
        %4446 = vmatprep.subr.mxu0 0.0
        %v4447 = vand.u32 %v4438, 4294901760
        %4448 = vmatpush1.msra.mxu0 %v4447
        %4449 = vmatprep.subr.mxu0 0.0
        %v4450 = vand.u32 %v4437, 4294901760
        %4451 = vmatpush1.msra.mxu0 %v4450
        %4452 = vmatprep.subr.mxu0 0.0
        %v4453 = vand.u32 %v4436, 4294901760
        %4454 = vmatpush1.msra.mxu0 %v4453
        %4455 = vmatprep.subr.mxu0 0.0
        %v4456 = vand.u32 %v4435, 4294901760
        %4457 = vmatpush1.msra.mxu0 %v4456
        %4458 = vmatprep.subr.mxu0 0.0
        %v4459 = vand.u32 %v4434, 4294901760
        %4460 = vmatpush1.msra.mxu0 %v4459
        %4461 = vmatprep.subr.mxu0 0.0
        %v4462 = vand.u32 %v4433, 4294901760
        %4463 = vmatpush1.msra.mxu0 %v4462
        %4464 = vmatprep.subr.mxu0 0.0
        %v4465 = vand.u32 %v4432, 4294901760
        %4466 = vmatpush1.msra.mxu0 %v4465
        %4467 = vmatprep.subr.mxu0 0.0
        %v4468 = vand.u32 %v4431, 4294901760
        %4469 = vmatpush1.msra.mxu0 %v4468
        %4470 = vmatprep.subr.mxu0 0.0
        %v4471 = vand.u32 %v4430, 4294901760
        %4472 = vmatpush1.msra.mxu0 %v4471
        %4473 = vmatprep.subr.mxu0 0.0
        %v4474 = vand.u32 %v4429, 4294901760
        %4475 = vmatpush1.msra.mxu0 %v4474
        %4476 = vmatprep.subr.mxu0 0.0
        %v4477 = vand.u32 %v4428, 4294901760
        %4478 = vmatpush1.msra.mxu0 %v4477
        %4479 = vmatprep.subr.mxu0 0.0
        %v4480 = vand.u32 %v4427, 4294901760
        %4481 = vmatpush1.msra.mxu0 %v4480
        %4482 = vmatprep.subr.mxu0 0.0
        %v4483 = vand.u32 %v4426, 4294901760
        %4484 = vmatpush1.msra.mxu0 %v4483
        %4485 = vmatprep.subr.mxu0 0.0
        %v4486 = vand.u32 %v4425, 4294901760
        %4487 = vmatpush1.msra.mxu0 %v4486
        %4488 = vmatprep.subr.mxu0 0.0
        %v4489 = vand.u32 %v4424, 4294901760
        %4490 = vmatpush1.msra.mxu0 %v4489
        %4491 = vmatprep.subr.mxu0 0.0
        %v4492 = vand.u32 %v4423, 4294901760
        %4493 = vmatpush1.msra.mxu0 %v4492
        %4494 = vmatprep.subr.mxu0 0.0
        %4495 = vmatpush2.msra.mxu0 0.0
        %4496 = vmatprep.subr.mxu0 0.0
        %4497 = vmatpush2.msra.mxu0 0.0
        %4498 = vmatprep.subr.mxu0 0.0
        %4499 = vmatpush2.msra.mxu0 0.0
        %4500 = vmatprep.subr.mxu0 0.0
        %4501 = vmatpush2.msra.mxu0 0.0
        %4502 = vmatprep.subr.mxu0 0.0
        %4503 = vmatpush2.msra.mxu0 0.0
        %4504 = vmatprep.subr.mxu0 0.0
        %4505 = vmatpush2.msra.mxu0 0.0
        %4506 = vmatprep.subr.mxu0 0.0
        %4507 = vmatpush2.msra.mxu0 0.0
        %4508 = vmatprep.subr.mxu0 0.0
        %4509 = vmatpush2.msra.mxu0 0.0
        %4510 = vmatprep.subr.mxu0 0.0
        %4511 = vmatpush2.msra.mxu0 0.0
        %4512 = vmatprep.subr.mxu0 0.0
        %4513 = vmatpush2.msra.mxu0 0.0
        %4514 = vmatprep.subr.mxu0 0.0
        %4515 = vmatpush2.msra.mxu0 0.0
        %4516 = vmatprep.subr.mxu0 0.0
        %4517 = vmatpush2.msra.mxu0 0.0
        %4518 = vmatprep.subr.mxu0 0.0
        %4519 = vmatpush2.msra.mxu0 0.0
        %4520 = vmatprep.subr.mxu0 0.0
        %4521 = vmatpush2.msra.mxu0 0.0
        %4522 = vmatprep.subr.mxu0 0.0
        %4523 = vmatpush2.msra.mxu0 0.0
        %4524 = vmatprep.subr.mxu0 0.0
        %4525 = vmatpush2.msra.mxu0 0.0
        %4526 = vmatprep.mubr.f32.mxu0 0.0
        %v4527 = vand.u32 %v4407, 4294901760
        %v4528 = vsub.f32 %v4407, %v4527
        %v4529 = vand.u32 %v4528, 4294901760
        %v4530 = vsub.f32 %v4528, %v4529
        %v4531 = vand.u32 %v4530, 4294901760
        %4532 = vmatmul.mubr.f32.gmra.mxu0 %v4531
        %v4533 = vpop.f32.mrf.mxu0
        %v4534 = vadd.f32 %v4444, %v4533
        %v4535 = vpop.f32.mrf.mxu0
        %4536 = vmatprep.mubr.f32.mxu0 0.0
        %v4537 = vand.u32 %v4408, 4294901760
        %v4538 = vsub.f32 %v4408, %v4537
        %v4539 = vand.u32 %v4538, 4294901760
        %v4540 = vsub.f32 %v4538, %v4539
        %v4541 = vand.u32 %v4540, 4294901760
        %4542 = vmatmul.mubr.f32.gmra.mxu0 %v4541
        %v4543 = vpop.f32.mrf.mxu0
        %v4544 = vadd.f32 %v4444, %v4543
        %v4545 = vpop.f32.mrf.mxu0
        %4546 = vmatprep.mubr.f32.mxu0 0.0
        %v4547 = vand.u32 %v4409, 4294901760
        %v4548 = vsub.f32 %v4409, %v4547
        %v4549 = vand.u32 %v4548, 4294901760
        %v4550 = vsub.f32 %v4548, %v4549
        %v4551 = vand.u32 %v4550, 4294901760
        %4552 = vmatmul.mubr.f32.gmra.mxu0 %v4551
        %v4553 = vpop.f32.mrf.mxu0
        %v4554 = vadd.f32 %v4444, %v4553
        %v4555 = vpop.f32.mrf.mxu0
        %4556 = vmatprep.mubr.f32.mxu0 0.0
        %v4557 = vand.u32 %v4410, 4294901760
        %v4558 = vsub.f32 %v4410, %v4557
        %v4559 = vand.u32 %v4558, 4294901760
        %v4560 = vsub.f32 %v4558, %v4559
        %v4561 = vand.u32 %v4560, 4294901760
        %4562 = vmatmul.mubr.f32.gmra.mxu0 %v4561
        %v4563 = vpop.f32.mrf.mxu0
        %v4564 = vadd.f32 %v4444, %v4563
        %v4565 = vpop.f32.mrf.mxu0
        %4566 = vmatprep.mubr.f32.mxu0 0.0
        %v4567 = vand.u32 %v4411, 4294901760
        %v4568 = vsub.f32 %v4411, %v4567
        %v4569 = vand.u32 %v4568, 4294901760
        %v4570 = vsub.f32 %v4568, %v4569
        %v4571 = vand.u32 %v4570, 4294901760
        %4572 = vmatmul.mubr.f32.gmra.mxu0 %v4571
        %v4573 = vpop.f32.mrf.mxu0
        %v4574 = vadd.f32 %v4444, %v4573
        %v4575 = vpop.f32.mrf.mxu0
        %4576 = vmatprep.mubr.f32.mxu0 0.0
        %v4577 = vand.u32 %v4412, 4294901760
        %v4578 = vsub.f32 %v4412, %v4577
        %v4579 = vand.u32 %v4578, 4294901760
        %v4580 = vsub.f32 %v4578, %v4579
        %v4581 = vand.u32 %v4580, 4294901760
        %4582 = vmatmul.mubr.f32.gmra.mxu0 %v4581
        %v4583 = vpop.f32.mrf.mxu0
        %v4584 = vadd.f32 %v4444, %v4583
        %v4585 = vpop.f32.mrf.mxu0
        %4586 = vmatprep.mubr.f32.mxu0 0.0
        %v4587 = vand.u32 %v4413, 4294901760
        %v4588 = vsub.f32 %v4413, %v4587
        %v4589 = vand.u32 %v4588, 4294901760
        %v4590 = vsub.f32 %v4588, %v4589
        %v4591 = vand.u32 %v4590, 4294901760
        %4592 = vmatmul.mubr.f32.gmra.mxu0 %v4591
        %v4593 = vpop.f32.mrf.mxu0
        %v4594 = vadd.f32 %v4444, %v4593
        %v4595 = vpop.f32.mrf.mxu0
        %4596 = vmatprep.mubr.f32.mxu0 0.0
        %v4597 = vand.u32 %v4414, 4294901760
        %v4598 = vsub.f32 %v4414, %v4597
        %v4599 = vand.u32 %v4598, 4294901760
        %v4600 = vsub.f32 %v4598, %v4599
        %v4601 = vand.u32 %v4600, 4294901760
        %4602 = vmatmul.mubr.f32.gmra.mxu0 %v4601
        %v4603 = vpop.f32.mrf.mxu0
        %v4604 = vadd.f32 %v4444, %v4603
        %v4605 = vpop.f32.mrf.mxu0
        %4606 = vmatprep.mubr.f32.mxu0 0.0
        %v4607 = vand.u32 %v4415, 4294901760
        %v4608 = vsub.f32 %v4415, %v4607
        %v4609 = vand.u32 %v4608, 4294901760
        %v4610 = vsub.f32 %v4608, %v4609
        %v4611 = vand.u32 %v4610, 4294901760
        %4612 = vmatmul.mubr.f32.gmra.mxu0 %v4611
        %v4613 = vpop.f32.mrf.mxu0
        %v4614 = vadd.f32 %v4444, %v4613
        %v4615 = vpop.f32.mrf.mxu0
        %4616 = vmatprep.mubr.f32.mxu0 0.0
        %v4617 = vand.u32 %v4416, 4294901760
        %v4618 = vsub.f32 %v4416, %v4617
        %v4619 = vand.u32 %v4618, 4294901760
        %v4620 = vsub.f32 %v4618, %v4619
        %v4621 = vand.u32 %v4620, 4294901760
        %4622 = vmatmul.mubr.f32.gmra.mxu0 %v4621
        %v4623 = vpop.f32.mrf.mxu0
        %v4624 = vadd.f32 %v4444, %v4623
        %v4625 = vpop.f32.mrf.mxu0
        %4626 = vmatprep.mubr.f32.mxu0 0.0
        %v4627 = vand.u32 %v4417, 4294901760
        %v4628 = vsub.f32 %v4417, %v4627
        %v4629 = vand.u32 %v4628, 4294901760
        %v4630 = vsub.f32 %v4628, %v4629
        %v4631 = vand.u32 %v4630, 4294901760
        %4632 = vmatmul.mubr.f32.gmra.mxu0 %v4631
        %v4633 = vpop.f32.mrf.mxu0
        %v4634 = vadd.f32 %v4444, %v4633
        %v4635 = vpop.f32.mrf.mxu0
        %4636 = vmatprep.mubr.f32.mxu0 0.0
        %v4637 = vand.u32 %v4418, 4294901760
        %v4638 = vsub.f32 %v4418, %v4637
        %v4639 = vand.u32 %v4638, 4294901760
        %v4640 = vsub.f32 %v4638, %v4639
        %v4641 = vand.u32 %v4640, 4294901760
        %4642 = vmatmul.mubr.f32.gmra.mxu0 %v4641
        %v4643 = vpop.f32.mrf.mxu0
        %v4644 = vadd.f32 %v4444, %v4643
        %v4645 = vpop.f32.mrf.mxu0
        %4646 = vmatprep.mubr.f32.mxu0 0.0
        %v4647 = vand.u32 %v4419, 4294901760
        %v4648 = vsub.f32 %v4419, %v4647
        %v4649 = vand.u32 %v4648, 4294901760
        %v4650 = vsub.f32 %v4648, %v4649
        %v4651 = vand.u32 %v4650, 4294901760
        %4652 = vmatmul.mubr.f32.gmra.mxu0 %v4651
        %v4653 = vpop.f32.mrf.mxu0
        %v4654 = vadd.f32 %v4444, %v4653
        %v4655 = vpop.f32.mrf.mxu0
        %4656 = vmatprep.mubr.f32.mxu0 0.0
        %v4657 = vand.u32 %v4420, 4294901760
        %v4658 = vsub.f32 %v4420, %v4657
        %v4659 = vand.u32 %v4658, 4294901760
        %v4660 = vsub.f32 %v4658, %v4659
        %v4661 = vand.u32 %v4660, 4294901760
        %4662 = vmatmul.mubr.f32.gmra.mxu0 %v4661
        %v4663 = vpop.f32.mrf.mxu0
        %v4664 = vadd.f32 %v4444, %v4663
        %v4665 = vpop.f32.mrf.mxu0
        %4666 = vmatprep.mubr.f32.mxu0 0.0
        %v4667 = vand.u32 %v4421, 4294901760
        %v4668 = vsub.f32 %v4421, %v4667
        %v4669 = vand.u32 %v4668, 4294901760
        %v4670 = vsub.f32 %v4668, %v4669
        %v4671 = vand.u32 %v4670, 4294901760
        %4672 = vmatmul.mubr.f32.gmra.mxu0 %v4671
        %v4673 = vpop.f32.mrf.mxu0
        %v4674 = vadd.f32 %v4444, %v4673
        %v4675 = vpop.f32.mrf.mxu0
        %4676 = vmatprep.mubr.f32.mxu0 0.0
        %v4677 = vand.u32 %v4422, 4294901760
        %v4678 = vsub.f32 %v4422, %v4677
        %v4679 = vand.u32 %v4678, 4294901760
        %v4680 = vsub.f32 %v4678, %v4679
        %v4681 = vand.u32 %v4680, 4294901760
        %4682 = vmatmul.mubr.f32.gmra.mxu0 %v4681
        %v4683 = vpop.f32.mrf.mxu0
        %v4684 = vadd.f32 %v4444, %v4683
        %v4685 = vpop.f32.mrf.mxu0
        %4686 = vdwg.mxu0
        %4687 = vmatprep.subr.mxu0 0.0
        %v4688 = vand.u32 %v4438, 4294901760
        %v4689 = vsub.f32 %v4438, %v4688
        %v4690 = vand.u32 %v4689, 4294901760
        %v4691 = vsub.f32 %v4689, %v4690
        %v4692 = vand.u32 %v4691, 4294901760
        %4693 = vmatpush1.msra.mxu0 %v4692
        %4694 = vmatprep.subr.mxu0 0.0
        %v4695 = vand.u32 %v4437, 4294901760
        %v4696 = vsub.f32 %v4437, %v4695
        %v4697 = vand.u32 %v4696, 4294901760
        %v4698 = vsub.f32 %v4696, %v4697
        %v4699 = vand.u32 %v4698, 4294901760
        %4700 = vmatpush1.msra.mxu0 %v4699
        %4701 = vmatprep.subr.mxu0 0.0
        %v4702 = vand.u32 %v4436, 4294901760
        %v4703 = vsub.f32 %v4436, %v4702
        %v4704 = vand.u32 %v4703, 4294901760
        %v4705 = vsub.f32 %v4703, %v4704
        %v4706 = vand.u32 %v4705, 4294901760
        %4707 = vmatpush1.msra.mxu0 %v4706
        %4708 = vmatprep.subr.mxu0 0.0
        %v4709 = vand.u32 %v4435, 4294901760
        %v4710 = vsub.f32 %v4435, %v4709
        %v4711 = vand.u32 %v4710, 4294901760
        %v4712 = vsub.f32 %v4710, %v4711
        %v4713 = vand.u32 %v4712, 4294901760
        %4714 = vmatpush1.msra.mxu0 %v4713
        %4715 = vmatprep.subr.mxu0 0.0
        %v4716 = vand.u32 %v4434, 4294901760
        %v4717 = vsub.f32 %v4434, %v4716
        %v4718 = vand.u32 %v4717, 4294901760
        %v4719 = vsub.f32 %v4717, %v4718
        %v4720 = vand.u32 %v4719, 4294901760
        %4721 = vmatpush1.msra.mxu0 %v4720
        %4722 = vmatprep.subr.mxu0 0.0
        %v4723 = vand.u32 %v4433, 4294901760
        %v4724 = vsub.f32 %v4433, %v4723
        %v4725 = vand.u32 %v4724, 4294901760
        %v4726 = vsub.f32 %v4724, %v4725
        %v4727 = vand.u32 %v4726, 4294901760
        %4728 = vmatpush1.msra.mxu0 %v4727
        %4729 = vmatprep.subr.mxu0 0.0
        %v4730 = vand.u32 %v4432, 4294901760
        %v4731 = vsub.f32 %v4432, %v4730
        %v4732 = vand.u32 %v4731, 4294901760
        %v4733 = vsub.f32 %v4731, %v4732
        %v4734 = vand.u32 %v4733, 4294901760
        %4735 = vmatpush1.msra.mxu0 %v4734
        %4736 = vmatprep.subr.mxu0 0.0
        %v4737 = vand.u32 %v4431, 4294901760
        %v4738 = vsub.f32 %v4431, %v4737
        %v4739 = vand.u32 %v4738, 4294901760
        %v4740 = vsub.f32 %v4738, %v4739
        %v4741 = vand.u32 %v4740, 4294901760
        %4742 = vmatpush1.msra.mxu0 %v4741
        %4743 = vmatprep.subr.mxu0 0.0
        %v4744 = vand.u32 %v4430, 4294901760
        %v4745 = vsub.f32 %v4430, %v4744
        %v4746 = vand.u32 %v4745, 4294901760
        %v4747 = vsub.f32 %v4745, %v4746
        %v4748 = vand.u32 %v4747, 4294901760
        %4749 = vmatpush1.msra.mxu0 %v4748
        %4750 = vmatprep.subr.mxu0 0.0
        %v4751 = vand.u32 %v4429, 4294901760
        %v4752 = vsub.f32 %v4429, %v4751
        %v4753 = vand.u32 %v4752, 4294901760
        %v4754 = vsub.f32 %v4752, %v4753
        %v4755 = vand.u32 %v4754, 4294901760
        %4756 = vmatpush1.msra.mxu0 %v4755
        %4757 = vmatprep.subr.mxu0 0.0
        %v4758 = vand.u32 %v4428, 4294901760
        %v4759 = vsub.f32 %v4428, %v4758
        %v4760 = vand.u32 %v4759, 4294901760
        %v4761 = vsub.f32 %v4759, %v4760
        %v4762 = vand.u32 %v4761, 4294901760
        %4763 = vmatpush1.msra.mxu0 %v4762
        %4764 = vmatprep.subr.mxu0 0.0
        %v4765 = vand.u32 %v4427, 4294901760
        %v4766 = vsub.f32 %v4427, %v4765
        %v4767 = vand.u32 %v4766, 4294901760
        %v4768 = vsub.f32 %v4766, %v4767
        %v4769 = vand.u32 %v4768, 4294901760
        %4770 = vmatpush1.msra.mxu0 %v4769
        %4771 = vmatprep.subr.mxu0 0.0
        %v4772 = vand.u32 %v4426, 4294901760
        %v4773 = vsub.f32 %v4426, %v4772
        %v4774 = vand.u32 %v4773, 4294901760
        %v4775 = vsub.f32 %v4773, %v4774
        %v4776 = vand.u32 %v4775, 4294901760
        %4777 = vmatpush1.msra.mxu0 %v4776
        %4778 = vmatprep.subr.mxu0 0.0
        %v4779 = vand.u32 %v4425, 4294901760
        %v4780 = vsub.f32 %v4425, %v4779
        %v4781 = vand.u32 %v4780, 4294901760
        %v4782 = vsub.f32 %v4780, %v4781
        %v4783 = vand.u32 %v4782, 4294901760
        %4784 = vmatpush1.msra.mxu0 %v4783
        %4785 = vmatprep.subr.mxu0 0.0
        %v4786 = vand.u32 %v4424, 4294901760
        %v4787 = vsub.f32 %v4424, %v4786
        %v4788 = vand.u32 %v4787, 4294901760
        %v4789 = vsub.f32 %v4787, %v4788
        %v4790 = vand.u32 %v4789, 4294901760
        %4791 = vmatpush1.msra.mxu0 %v4790
        %4792 = vmatprep.subr.mxu0 0.0
        %v4793 = vand.u32 %v4423, 4294901760
        %v4794 = vsub.f32 %v4423, %v4793
        %v4795 = vand.u32 %v4794, 4294901760
        %v4796 = vsub.f32 %v4794, %v4795
        %v4797 = vand.u32 %v4796, 4294901760
        %4798 = vmatpush1.msra.mxu0 %v4797
        %4799 = vmatprep.subr.mxu0 0.0
        %4800 = vmatpush2.msra.mxu0 0.0
        %4801 = vmatprep.subr.mxu0 0.0
        %4802 = vmatpush2.msra.mxu0 0.0
        %4803 = vmatprep.subr.mxu0 0.0
        %4804 = vmatpush2.msra.mxu0 0.0
        %4805 = vmatprep.subr.mxu0 0.0
        %4806 = vmatpush2.msra.mxu0 0.0
        %4807 = vmatprep.subr.mxu0 0.0
        %4808 = vmatpush2.msra.mxu0 0.0
        %4809 = vmatprep.subr.mxu0 0.0
        %4810 = vmatpush2.msra.mxu0 0.0
        %4811 = vmatprep.subr.mxu0 0.0
        %4812 = vmatpush2.msra.mxu0 0.0
        %4813 = vmatprep.subr.mxu0 0.0
        %4814 = vmatpush2.msra.mxu0 0.0
        %4815 = vmatprep.subr.mxu0 0.0
        %4816 = vmatpush2.msra.mxu0 0.0
        %4817 = vmatprep.subr.mxu0 0.0
        %4818 = vmatpush2.msra.mxu0 0.0
        %4819 = vmatprep.subr.mxu0 0.0
        %4820 = vmatpush2.msra.mxu0 0.0
        %4821 = vmatprep.subr.mxu0 0.0
        %4822 = vmatpush2.msra.mxu0 0.0
        %4823 = vmatprep.subr.mxu0 0.0
        %4824 = vmatpush2.msra.mxu0 0.0
        %4825 = vmatprep.subr.mxu0 0.0
        %4826 = vmatpush2.msra.mxu0 0.0
        %4827 = vmatprep.subr.mxu0 0.0
        %4828 = vmatpush2.msra.mxu0 0.0
        %4829 = vmatprep.subr.mxu0 0.0
        %4830 = vmatpush2.msra.mxu0 0.0
        %4831 = vmatprep.mubr.f32.mxu0 0.0
        %v4832 = vand.u32 %v4407, 4294901760
        %4833 = vmatmul.mubr.f32.gmra.mxu0 %v4832
        %v4834 = vpop.f32.mrf.mxu0
        %v4835 = vadd.f32 %v4534, %v4834
        %v4836 = vpop.f32.mrf.mxu0
        %4837 = vmatprep.mubr.f32.mxu0 0.0
        %v4838 = vand.u32 %v4408, 4294901760
        %4839 = vmatmul.mubr.f32.gmra.mxu0 %v4838
        %v4840 = vpop.f32.mrf.mxu0
        %v4841 = vadd.f32 %v4544, %v4840
        %v4842 = vpop.f32.mrf.mxu0
        %4843 = vmatprep.mubr.f32.mxu0 0.0
        %v4844 = vand.u32 %v4409, 4294901760
        %4845 = vmatmul.mubr.f32.gmra.mxu0 %v4844
        %v4846 = vpop.f32.mrf.mxu0
        %v4847 = vadd.f32 %v4554, %v4846
        %v4848 = vpop.f32.mrf.mxu0
        %4849 = vmatprep.mubr.f32.mxu0 0.0
        %v4850 = vand.u32 %v4410, 4294901760
        %4851 = vmatmul.mubr.f32.gmra.mxu0 %v4850
        %v4852 = vpop.f32.mrf.mxu0
        %v4853 = vadd.f32 %v4564, %v4852
        %v4854 = vpop.f32.mrf.mxu0
        %4855 = vmatprep.mubr.f32.mxu0 0.0
        %v4856 = vand.u32 %v4411, 4294901760
        %4857 = vmatmul.mubr.f32.gmra.mxu0 %v4856
        %v4858 = vpop.f32.mrf.mxu0
        %v4859 = vadd.f32 %v4574, %v4858
        %v4860 = vpop.f32.mrf.mxu0
        %4861 = vmatprep.mubr.f32.mxu0 0.0
        %v4862 = vand.u32 %v4412, 4294901760
        %4863 = vmatmul.mubr.f32.gmra.mxu0 %v4862
        %v4864 = vpop.f32.mrf.mxu0
        %v4865 = vadd.f32 %v4584, %v4864
        %v4866 = vpop.f32.mrf.mxu0
        %4867 = vmatprep.mubr.f32.mxu0 0.0
        %v4868 = vand.u32 %v4413, 4294901760
        %4869 = vmatmul.mubr.f32.gmra.mxu0 %v4868
        %v4870 = vpop.f32.mrf.mxu0
        %v4871 = vadd.f32 %v4594, %v4870
        %v4872 = vpop.f32.mrf.mxu0
        %4873 = vmatprep.mubr.f32.mxu0 0.0
        %v4874 = vand.u32 %v4414, 4294901760
        %4875 = vmatmul.mubr.f32.gmra.mxu0 %v4874
        %v4876 = vpop.f32.mrf.mxu0
        %v4877 = vadd.f32 %v4604, %v4876
        %v4878 = vpop.f32.mrf.mxu0
        %4879 = vmatprep.mubr.f32.mxu0 0.0
        %v4880 = vand.u32 %v4415, 4294901760
        %4881 = vmatmul.mubr.f32.gmra.mxu0 %v4880
        %v4882 = vpop.f32.mrf.mxu0
        %v4883 = vadd.f32 %v4614, %v4882
        %v4884 = vpop.f32.mrf.mxu0
        %4885 = vmatprep.mubr.f32.mxu0 0.0
        %v4886 = vand.u32 %v4416, 4294901760
        %4887 = vmatmul.mubr.f32.gmra.mxu0 %v4886
        %v4888 = vpop.f32.mrf.mxu0
        %v4889 = vadd.f32 %v4624, %v4888
        %v4890 = vpop.f32.mrf.mxu0
        %4891 = vmatprep.mubr.f32.mxu0 0.0
        %v4892 = vand.u32 %v4417, 4294901760
        %4893 = vmatmul.mubr.f32.gmra.mxu0 %v4892
        %v4894 = vpop.f32.mrf.mxu0
        %v4895 = vadd.f32 %v4634, %v4894
        %v4896 = vpop.f32.mrf.mxu0
        %4897 = vmatprep.mubr.f32.mxu0 0.0
        %v4898 = vand.u32 %v4418, 4294901760
        %4899 = vmatmul.mubr.f32.gmra.mxu0 %v4898
        %v4900 = vpop.f32.mrf.mxu0
        %v4901 = vadd.f32 %v4644, %v4900
        %v4902 = vpop.f32.mrf.mxu0
        %4903 = vmatprep.mubr.f32.mxu0 0.0
        %v4904 = vand.u32 %v4419, 4294901760
        %4905 = vmatmul.mubr.f32.gmra.mxu0 %v4904
        %v4906 = vpop.f32.mrf.mxu0
        %v4907 = vadd.f32 %v4654, %v4906
        %v4908 = vpop.f32.mrf.mxu0
        %4909 = vmatprep.mubr.f32.mxu0 0.0
        %v4910 = vand.u32 %v4420, 4294901760
        %4911 = vmatmul.mubr.f32.gmra.mxu0 %v4910
        %v4912 = vpop.f32.mrf.mxu0
        %v4913 = vadd.f32 %v4664, %v4912
        %v4914 = vpop.f32.mrf.mxu0
        %4915 = vmatprep.mubr.f32.mxu0 0.0
        %v4916 = vand.u32 %v4421, 4294901760
        %4917 = vmatmul.mubr.f32.gmra.mxu0 %v4916
        %v4918 = vpop.f32.mrf.mxu0
        %v4919 = vadd.f32 %v4674, %v4918
        %v4920 = vpop.f32.mrf.mxu0
        %4921 = vmatprep.mubr.f32.mxu0 0.0
        %v4922 = vand.u32 %v4422, 4294901760
        %4923 = vmatmul.mubr.f32.gmra.mxu0 %v4922
        %v4924 = vpop.f32.mrf.mxu0
        %v4925 = vadd.f32 %v4684, %v4924
        %v4926 = vpop.f32.mrf.mxu0
        %4927 = vdwg.mxu0
        %4928 = vmatprep.subr.mxu0 0.0
        %v4929 = vand.u32 %v4438, 4294901760
        %v4930 = vsub.f32 %v4438, %v4929
        %4931 = vmatpush1.msra.mxu0 %v4930
        %4932 = vmatprep.subr.mxu0 0.0
        %v4933 = vand.u32 %v4437, 4294901760
        %v4934 = vsub.f32 %v4437, %v4933
        %4935 = vmatpush1.msra.mxu0 %v4934
        %4936 = vmatprep.subr.mxu0 0.0
        %v4937 = vand.u32 %v4436, 4294901760
        %v4938 = vsub.f32 %v4436, %v4937
        %4939 = vmatpush1.msra.mxu0 %v4938
        %4940 = vmatprep.subr.mxu0 0.0
        %v4941 = vand.u32 %v4435, 4294901760
        %v4942 = vsub.f32 %v4435, %v4941
        %4943 = vmatpush1.msra.mxu0 %v4942
        %4944 = vmatprep.subr.mxu0 0.0
        %v4945 = vand.u32 %v4434, 4294901760
        %v4946 = vsub.f32 %v4434, %v4945
        %4947 = vmatpush1.msra.mxu0 %v4946
        %4948 = vmatprep.subr.mxu0 0.0
        %v4949 = vand.u32 %v4433, 4294901760
        %v4950 = vsub.f32 %v4433, %v4949
        %4951 = vmatpush1.msra.mxu0 %v4950
        %4952 = vmatprep.subr.mxu0 0.0
        %v4953 = vand.u32 %v4432, 4294901760
        %v4954 = vsub.f32 %v4432, %v4953
        %4955 = vmatpush1.msra.mxu0 %v4954
        %4956 = vmatprep.subr.mxu0 0.0
        %v4957 = vand.u32 %v4431, 4294901760
        %v4958 = vsub.f32 %v4431, %v4957
        %4959 = vmatpush1.msra.mxu0 %v4958
        %4960 = vmatprep.subr.mxu0 0.0
        %v4961 = vand.u32 %v4430, 4294901760
        %v4962 = vsub.f32 %v4430, %v4961
        %4963 = vmatpush1.msra.mxu0 %v4962
        %4964 = vmatprep.subr.mxu0 0.0
        %v4965 = vand.u32 %v4429, 4294901760
        %v4966 = vsub.f32 %v4429, %v4965
        %4967 = vmatpush1.msra.mxu0 %v4966
        %4968 = vmatprep.subr.mxu0 0.0
        %v4969 = vand.u32 %v4428, 4294901760
        %v4970 = vsub.f32 %v4428, %v4969
        %4971 = vmatpush1.msra.mxu0 %v4970
        %4972 = vmatprep.subr.mxu0 0.0
        %v4973 = vand.u32 %v4427, 4294901760
        %v4974 = vsub.f32 %v4427, %v4973
        %4975 = vmatpush1.msra.mxu0 %v4974
        %4976 = vmatprep.subr.mxu0 0.0
        %v4977 = vand.u32 %v4426, 4294901760
        %v4978 = vsub.f32 %v4426, %v4977
        %4979 = vmatpush1.msra.mxu0 %v4978
        %4980 = vmatprep.subr.mxu0 0.0
        %v4981 = vand.u32 %v4425, 4294901760
        %v4982 = vsub.f32 %v4425, %v4981
        %4983 = vmatpush1.msra.mxu0 %v4982
        %4984 = vmatprep.subr.mxu0 0.0
        %v4985 = vand.u32 %v4424, 4294901760
        %v4986 = vsub.f32 %v4424, %v4985
        %4987 = vmatpush1.msra.mxu0 %v4986
        %4988 = vmatprep.subr.mxu0 0.0
        %v4989 = vand.u32 %v4423, 4294901760
        %v4990 = vsub.f32 %v4423, %v4989
        %4991 = vmatpush1.msra.mxu0 %v4990
        %4992 = vmatprep.subr.mxu0 0.0
        %4993 = vmatpush2.msra.mxu0 0.0
        %4994 = vmatprep.subr.mxu0 0.0
        %4995 = vmatpush2.msra.mxu0 0.0
        %4996 = vmatprep.subr.mxu0 0.0
        %4997 = vmatpush2.msra.mxu0 0.0
        %4998 = vmatprep.subr.mxu0 0.0
        %4999 = vmatpush2.msra.mxu0 0.0
        %5000 = vmatprep.subr.mxu0 0.0
        %5001 = vmatpush2.msra.mxu0 0.0
        %5002 = vmatprep.subr.mxu0 0.0
        %5003 = vmatpush2.msra.mxu0 0.0
        %5004 = vmatprep.subr.mxu0 0.0
        %5005 = vmatpush2.msra.mxu0 0.0
        %5006 = vmatprep.subr.mxu0 0.0
        %5007 = vmatpush2.msra.mxu0 0.0
        %5008 = vmatprep.subr.mxu0 0.0
        %5009 = vmatpush2.msra.mxu0 0.0
        %5010 = vmatprep.subr.mxu0 0.0
        %5011 = vmatpush2.msra.mxu0 0.0
        %5012 = vmatprep.subr.mxu0 0.0
        %5013 = vmatpush2.msra.mxu0 0.0
        %5014 = vmatprep.subr.mxu0 0.0
        %5015 = vmatpush2.msra.mxu0 0.0
        %5016 = vmatprep.subr.mxu0 0.0
        %5017 = vmatpush2.msra.mxu0 0.0
        %5018 = vmatprep.subr.mxu0 0.0
        %5019 = vmatpush2.msra.mxu0 0.0
        %5020 = vmatprep.subr.mxu0 0.0
        %5021 = vmatpush2.msra.mxu0 0.0
        %5022 = vmatprep.subr.mxu0 0.0
        %5023 = vmatpush2.msra.mxu0 0.0
        %5024 = vmatprep.mubr.f32.mxu0 0.0
        %v5025 = vand.u32 %v4407, 4294901760
        %v5026 = vsub.f32 %v4407, %v5025
        %5027 = vmatmul.mubr.f32.gmra.mxu0 %v5026
        %v5028 = vpop.f32.mrf.mxu0
        %v5029 = vadd.f32 %v4835, %v5028
        %v5030 = vpop.f32.mrf.mxu0
        %5031 = vmatprep.mubr.f32.mxu0 0.0
        %v5032 = vand.u32 %v4408, 4294901760
        %v5033 = vsub.f32 %v4408, %v5032
        %5034 = vmatmul.mubr.f32.gmra.mxu0 %v5033
        %v5035 = vpop.f32.mrf.mxu0
        %v5036 = vadd.f32 %v4841, %v5035
        %v5037 = vpop.f32.mrf.mxu0
        %5038 = vmatprep.mubr.f32.mxu0 0.0
        %v5039 = vand.u32 %v4409, 4294901760
        %v5040 = vsub.f32 %v4409, %v5039
        %5041 = vmatmul.mubr.f32.gmra.mxu0 %v5040
        %v5042 = vpop.f32.mrf.mxu0
        %v5043 = vadd.f32 %v4847, %v5042
        %v5044 = vpop.f32.mrf.mxu0
        %5045 = vmatprep.mubr.f32.mxu0 0.0
        %v5046 = vand.u32 %v4410, 4294901760
        %v5047 = vsub.f32 %v4410, %v5046
        %5048 = vmatmul.mubr.f32.gmra.mxu0 %v5047
        %v5049 = vpop.f32.mrf.mxu0
        %v5050 = vadd.f32 %v4853, %v5049
        %v5051 = vpop.f32.mrf.mxu0
        %5052 = vmatprep.mubr.f32.mxu0 0.0
        %v5053 = vand.u32 %v4411, 4294901760
        %v5054 = vsub.f32 %v4411, %v5053
        %5055 = vmatmul.mubr.f32.gmra.mxu0 %v5054
        %v5056 = vpop.f32.mrf.mxu0
        %v5057 = vadd.f32 %v4859, %v5056
        %v5058 = vpop.f32.mrf.mxu0
        %5059 = vmatprep.mubr.f32.mxu0 0.0
        %v5060 = vand.u32 %v4412, 4294901760
        %v5061 = vsub.f32 %v4412, %v5060
        %5062 = vmatmul.mubr.f32.gmra.mxu0 %v5061
        %v5063 = vpop.f32.mrf.mxu0
        %v5064 = vadd.f32 %v4865, %v5063
        %v5065 = vpop.f32.mrf.mxu0
        %5066 = vmatprep.mubr.f32.mxu0 0.0
        %v5067 = vand.u32 %v4413, 4294901760
        %v5068 = vsub.f32 %v4413, %v5067
        %5069 = vmatmul.mubr.f32.gmra.mxu0 %v5068
        %v5070 = vpop.f32.mrf.mxu0
        %v5071 = vadd.f32 %v4871, %v5070
        %v5072 = vpop.f32.mrf.mxu0
        %5073 = vmatprep.mubr.f32.mxu0 0.0
        %v5074 = vand.u32 %v4414, 4294901760
        %v5075 = vsub.f32 %v4414, %v5074
        %5076 = vmatmul.mubr.f32.gmra.mxu0 %v5075
        %v5077 = vpop.f32.mrf.mxu0
        %v5078 = vadd.f32 %v4877, %v5077
        %v5079 = vpop.f32.mrf.mxu0
        %5080 = vmatprep.mubr.f32.mxu0 0.0
        %v5081 = vand.u32 %v4415, 4294901760
        %v5082 = vsub.f32 %v4415, %v5081
        %5083 = vmatmul.mubr.f32.gmra.mxu0 %v5082
        %v5084 = vpop.f32.mrf.mxu0
        %v5085 = vadd.f32 %v4883, %v5084
        %v5086 = vpop.f32.mrf.mxu0
        %5087 = vmatprep.mubr.f32.mxu0 0.0
        %v5088 = vand.u32 %v4416, 4294901760
        %v5089 = vsub.f32 %v4416, %v5088
        %5090 = vmatmul.mubr.f32.gmra.mxu0 %v5089
        %v5091 = vpop.f32.mrf.mxu0
        %v5092 = vadd.f32 %v4889, %v5091
        %v5093 = vpop.f32.mrf.mxu0
        %5094 = vmatprep.mubr.f32.mxu0 0.0
        %v5095 = vand.u32 %v4417, 4294901760
        %v5096 = vsub.f32 %v4417, %v5095
        %5097 = vmatmul.mubr.f32.gmra.mxu0 %v5096
        %v5098 = vpop.f32.mrf.mxu0
        %v5099 = vadd.f32 %v4895, %v5098
        %v5100 = vpop.f32.mrf.mxu0
        %5101 = vmatprep.mubr.f32.mxu0 0.0
        %v5102 = vand.u32 %v4418, 4294901760
        %v5103 = vsub.f32 %v4418, %v5102
        %5104 = vmatmul.mubr.f32.gmra.mxu0 %v5103
        %v5105 = vpop.f32.mrf.mxu0
        %v5106 = vadd.f32 %v4901, %v5105
        %v5107 = vpop.f32.mrf.mxu0
        %5108 = vmatprep.mubr.f32.mxu0 0.0
        %v5109 = vand.u32 %v4419, 4294901760
        %v5110 = vsub.f32 %v4419, %v5109
        %5111 = vmatmul.mubr.f32.gmra.mxu0 %v5110
        %v5112 = vpop.f32.mrf.mxu0
        %v5113 = vadd.f32 %v4907, %v5112
        %v5114 = vpop.f32.mrf.mxu0
        %5115 = vmatprep.mubr.f32.mxu0 0.0
        %v5116 = vand.u32 %v4420, 4294901760
        %v5117 = vsub.f32 %v4420, %v5116
        %5118 = vmatmul.mubr.f32.gmra.mxu0 %v5117
        %v5119 = vpop.f32.mrf.mxu0
        %v5120 = vadd.f32 %v4913, %v5119
        %v5121 = vpop.f32.mrf.mxu0
        %5122 = vmatprep.mubr.f32.mxu0 0.0
        %v5123 = vand.u32 %v4421, 4294901760
        %v5124 = vsub.f32 %v4421, %v5123
        %5125 = vmatmul.mubr.f32.gmra.mxu0 %v5124
        %v5126 = vpop.f32.mrf.mxu0
        %v5127 = vadd.f32 %v4919, %v5126
        %v5128 = vpop.f32.mrf.mxu0
        %5129 = vmatprep.mubr.f32.mxu0 0.0
        %v5130 = vand.u32 %v4422, 4294901760
        %v5131 = vsub.f32 %v4422, %v5130
        %5132 = vmatmul.mubr.f32.gmra.mxu0 %v5131
        %v5133 = vpop.f32.mrf.mxu0
        %v5134 = vadd.f32 %v4925, %v5133
        %v5135 = vpop.f32.mrf.mxu0
        %5136 = vdwg.mxu0
        %5137 = vmatprep.subr.mxu0 0.0
        %v5138 = vand.u32 %v4438, 4294901760
        %5139 = vmatpush1.msra.mxu0 %v5138
        %5140 = vmatprep.subr.mxu0 0.0
        %v5141 = vand.u32 %v4437, 4294901760
        %5142 = vmatpush1.msra.mxu0 %v5141
        %5143 = vmatprep.subr.mxu0 0.0
        %v5144 = vand.u32 %v4436, 4294901760
        %5145 = vmatpush1.msra.mxu0 %v5144
        %5146 = vmatprep.subr.mxu0 0.0
        %v5147 = vand.u32 %v4435, 4294901760
        %5148 = vmatpush1.msra.mxu0 %v5147
        %5149 = vmatprep.subr.mxu0 0.0
        %v5150 = vand.u32 %v4434, 4294901760
        %5151 = vmatpush1.msra.mxu0 %v5150
        %5152 = vmatprep.subr.mxu0 0.0
        %v5153 = vand.u32 %v4433, 4294901760
        %5154 = vmatpush1.msra.mxu0 %v5153
        %5155 = vmatprep.subr.mxu0 0.0
        %v5156 = vand.u32 %v4432, 4294901760
        %5157 = vmatpush1.msra.mxu0 %v5156
        %5158 = vmatprep.subr.mxu0 0.0
        %v5159 = vand.u32 %v4431, 4294901760
        %5160 = vmatpush1.msra.mxu0 %v5159
        %5161 = vmatprep.subr.mxu0 0.0
        %v5162 = vand.u32 %v4430, 4294901760
        %5163 = vmatpush1.msra.mxu0 %v5162
        %5164 = vmatprep.subr.mxu0 0.0
        %v5165 = vand.u32 %v4429, 4294901760
        %5166 = vmatpush1.msra.mxu0 %v5165
        %5167 = vmatprep.subr.mxu0 0.0
        %v5168 = vand.u32 %v4428, 4294901760
        %5169 = vmatpush1.msra.mxu0 %v5168
        %5170 = vmatprep.subr.mxu0 0.0
        %v5171 = vand.u32 %v4427, 4294901760
        %5172 = vmatpush1.msra.mxu0 %v5171
        %5173 = vmatprep.subr.mxu0 0.0
        %v5174 = vand.u32 %v4426, 4294901760
        %5175 = vmatpush1.msra.mxu0 %v5174
        %5176 = vmatprep.subr.mxu0 0.0
        %v5177 = vand.u32 %v4425, 4294901760
        %5178 = vmatpush1.msra.mxu0 %v5177
        %5179 = vmatprep.subr.mxu0 0.0
        %v5180 = vand.u32 %v4424, 4294901760
        %5181 = vmatpush1.msra.mxu0 %v5180
        %5182 = vmatprep.subr.mxu0 0.0
        %v5183 = vand.u32 %v4423, 4294901760
        %5184 = vmatpush1.msra.mxu0 %v5183
        %5185 = vmatprep.subr.mxu0 0.0
        %5186 = vmatpush2.msra.mxu0 0.0
        %5187 = vmatprep.subr.mxu0 0.0
        %5188 = vmatpush2.msra.mxu0 0.0
        %5189 = vmatprep.subr.mxu0 0.0
        %5190 = vmatpush2.msra.mxu0 0.0
        %5191 = vmatprep.subr.mxu0 0.0
        %5192 = vmatpush2.msra.mxu0 0.0
        %5193 = vmatprep.subr.mxu0 0.0
        %5194 = vmatpush2.msra.mxu0 0.0
        %5195 = vmatprep.subr.mxu0 0.0
        %5196 = vmatpush2.msra.mxu0 0.0
        %5197 = vmatprep.subr.mxu0 0.0
        %5198 = vmatpush2.msra.mxu0 0.0
        %5199 = vmatprep.subr.mxu0 0.0
        %5200 = vmatpush2.msra.mxu0 0.0
        %5201 = vmatprep.subr.mxu0 0.0
        %5202 = vmatpush2.msra.mxu0 0.0
        %5203 = vmatprep.subr.mxu0 0.0
        %5204 = vmatpush2.msra.mxu0 0.0
        %5205 = vmatprep.subr.mxu0 0.0
        %5206 = vmatpush2.msra.mxu0 0.0
        %5207 = vmatprep.subr.mxu0 0.0
        %5208 = vmatpush2.msra.mxu0 0.0
        %5209 = vmatprep.subr.mxu0 0.0
        %5210 = vmatpush2.msra.mxu0 0.0
        %5211 = vmatprep.subr.mxu0 0.0
        %5212 = vmatpush2.msra.mxu0 0.0
        %5213 = vmatprep.subr.mxu0 0.0
        %5214 = vmatpush2.msra.mxu0 0.0
        %5215 = vmatprep.subr.mxu0 0.0
        %5216 = vmatpush2.msra.mxu0 0.0
        %5217 = vmatprep.mubr.f32.mxu0 0.0
        %v5218 = vand.u32 %v4407, 4294901760
        %v5219 = vsub.f32 %v4407, %v5218
        %v5220 = vand.u32 %v5219, 4294901760
        %5221 = vmatmul.mubr.f32.gmra.mxu0 %v5220
        %v5222 = vpop.f32.mrf.mxu0
        %v5223 = vadd.f32 %v5029, %v5222
        %v5224 = vpop.f32.mrf.mxu0
        %5225 = vmatprep.mubr.f32.mxu0 0.0
        %v5226 = vand.u32 %v4408, 4294901760
        %v5227 = vsub.f32 %v4408, %v5226
        %v5228 = vand.u32 %v5227, 4294901760
        %5229 = vmatmul.mubr.f32.gmra.mxu0 %v5228
        %v5230 = vpop.f32.mrf.mxu0
        %v5231 = vadd.f32 %v5036, %v5230
        %v5232 = vpop.f32.mrf.mxu0
        %5233 = vmatprep.mubr.f32.mxu0 0.0
        %v5234 = vand.u32 %v4409, 4294901760
        %v5235 = vsub.f32 %v4409, %v5234
        %v5236 = vand.u32 %v5235, 4294901760
        %5237 = vmatmul.mubr.f32.gmra.mxu0 %v5236
        %v5238 = vpop.f32.mrf.mxu0
        %v5239 = vadd.f32 %v5043, %v5238
        %v5240 = vpop.f32.mrf.mxu0
        %5241 = vmatprep.mubr.f32.mxu0 0.0
        %v5242 = vand.u32 %v4410, 4294901760
        %v5243 = vsub.f32 %v4410, %v5242
        %v5244 = vand.u32 %v5243, 4294901760
        %5245 = vmatmul.mubr.f32.gmra.mxu0 %v5244
        %v5246 = vpop.f32.mrf.mxu0
        %v5247 = vadd.f32 %v5050, %v5246
        %v5248 = vpop.f32.mrf.mxu0
        %5249 = vmatprep.mubr.f32.mxu0 0.0
        %v5250 = vand.u32 %v4411, 4294901760
        %v5251 = vsub.f32 %v4411, %v5250
        %v5252 = vand.u32 %v5251, 4294901760
        %5253 = vmatmul.mubr.f32.gmra.mxu0 %v5252
        %v5254 = vpop.f32.mrf.mxu0
        %v5255 = vadd.f32 %v5057, %v5254
        %v5256 = vpop.f32.mrf.mxu0
        %5257 = vmatprep.mubr.f32.mxu0 0.0
        %v5258 = vand.u32 %v4412, 4294901760
        %v5259 = vsub.f32 %v4412, %v5258
        %v5260 = vand.u32 %v5259, 4294901760
        %5261 = vmatmul.mubr.f32.gmra.mxu0 %v5260
        %v5262 = vpop.f32.mrf.mxu0
        %v5263 = vadd.f32 %v5064, %v5262
        %v5264 = vpop.f32.mrf.mxu0
        %5265 = vmatprep.mubr.f32.mxu0 0.0
        %v5266 = vand.u32 %v4413, 4294901760
        %v5267 = vsub.f32 %v4413, %v5266
        %v5268 = vand.u32 %v5267, 4294901760
        %5269 = vmatmul.mubr.f32.gmra.mxu0 %v5268
        %v5270 = vpop.f32.mrf.mxu0
        %v5271 = vadd.f32 %v5071, %v5270
        %v5272 = vpop.f32.mrf.mxu0
        %5273 = vmatprep.mubr.f32.mxu0 0.0
        %v5274 = vand.u32 %v4414, 4294901760
        %v5275 = vsub.f32 %v4414, %v5274
        %v5276 = vand.u32 %v5275, 4294901760
        %5277 = vmatmul.mubr.f32.gmra.mxu0 %v5276
        %v5278 = vpop.f32.mrf.mxu0
        %v5279 = vadd.f32 %v5078, %v5278
        %v5280 = vpop.f32.mrf.mxu0
        %5281 = vmatprep.mubr.f32.mxu0 0.0
        %v5282 = vand.u32 %v4415, 4294901760
        %v5283 = vsub.f32 %v4415, %v5282
        %v5284 = vand.u32 %v5283, 4294901760
        %5285 = vmatmul.mubr.f32.gmra.mxu0 %v5284
        %v5286 = vpop.f32.mrf.mxu0
        %v5287 = vadd.f32 %v5085, %v5286
        %v5288 = vpop.f32.mrf.mxu0
        %5289 = vmatprep.mubr.f32.mxu0 0.0
        %v5290 = vand.u32 %v4416, 4294901760
        %v5291 = vsub.f32 %v4416, %v5290
        %v5292 = vand.u32 %v5291, 4294901760
        %5293 = vmatmul.mubr.f32.gmra.mxu0 %v5292
        %v5294 = vpop.f32.mrf.mxu0
        %v5295 = vadd.f32 %v5092, %v5294
        %v5296 = vpop.f32.mrf.mxu0
        %5297 = vmatprep.mubr.f32.mxu0 0.0
        %v5298 = vand.u32 %v4417, 4294901760
        %v5299 = vsub.f32 %v4417, %v5298
        %v5300 = vand.u32 %v5299, 4294901760
        %5301 = vmatmul.mubr.f32.gmra.mxu0 %v5300
        %v5302 = vpop.f32.mrf.mxu0
        %v5303 = vadd.f32 %v5099, %v5302
        %v5304 = vpop.f32.mrf.mxu0
        %5305 = vmatprep.mubr.f32.mxu0 0.0
        %v5306 = vand.u32 %v4418, 4294901760
        %v5307 = vsub.f32 %v4418, %v5306
        %v5308 = vand.u32 %v5307, 4294901760
        %5309 = vmatmul.mubr.f32.gmra.mxu0 %v5308
        %v5310 = vpop.f32.mrf.mxu0
        %v5311 = vadd.f32 %v5106, %v5310
        %v5312 = vpop.f32.mrf.mxu0
        %5313 = vmatprep.mubr.f32.mxu0 0.0
        %v5314 = vand.u32 %v4419, 4294901760
        %v5315 = vsub.f32 %v4419, %v5314
        %v5316 = vand.u32 %v5315, 4294901760
        %5317 = vmatmul.mubr.f32.gmra.mxu0 %v5316
        %v5318 = vpop.f32.mrf.mxu0
        %v5319 = vadd.f32 %v5113, %v5318
        %v5320 = vpop.f32.mrf.mxu0
        %5321 = vmatprep.mubr.f32.mxu0 0.0
        %v5322 = vand.u32 %v4420, 4294901760
        %v5323 = vsub.f32 %v4420, %v5322
        %v5324 = vand.u32 %v5323, 4294901760
        %5325 = vmatmul.mubr.f32.gmra.mxu0 %v5324
        %v5326 = vpop.f32.mrf.mxu0
        %v5327 = vadd.f32 %v5120, %v5326
        %v5328 = vpop.f32.mrf.mxu0
        %5329 = vmatprep.mubr.f32.mxu0 0.0
        %v5330 = vand.u32 %v4421, 4294901760
        %v5331 = vsub.f32 %v4421, %v5330
        %v5332 = vand.u32 %v5331, 4294901760
        %5333 = vmatmul.mubr.f32.gmra.mxu0 %v5332
        %v5334 = vpop.f32.mrf.mxu0
        %v5335 = vadd.f32 %v5127, %v5334
        %v5336 = vpop.f32.mrf.mxu0
        %5337 = vmatprep.mubr.f32.mxu0 0.0
        %v5338 = vand.u32 %v4422, 4294901760
        %v5339 = vsub.f32 %v4422, %v5338
        %v5340 = vand.u32 %v5339, 4294901760
        %5341 = vmatmul.mubr.f32.gmra.mxu0 %v5340
        %v5342 = vpop.f32.mrf.mxu0
        %v5343 = vadd.f32 %v5134, %v5342
        %v5344 = vpop.f32.mrf.mxu0
        %5345 = vdwg.mxu0
        %5346 = vmatprep.subr.mxu0 0.0
        %v5347 = vand.u32 %v4438, 4294901760
        %v5348 = vsub.f32 %v4438, %v5347
        %v5349 = vand.u32 %v5348, 4294901760
        %5350 = vmatpush1.msra.mxu0 %v5349
        %5351 = vmatprep.subr.mxu0 0.0
        %v5352 = vand.u32 %v4437, 4294901760
        %v5353 = vsub.f32 %v4437, %v5352
        %v5354 = vand.u32 %v5353, 4294901760
        %5355 = vmatpush1.msra.mxu0 %v5354
        %5356 = vmatprep.subr.mxu0 0.0
        %v5357 = vand.u32 %v4436, 4294901760
        %v5358 = vsub.f32 %v4436, %v5357
        %v5359 = vand.u32 %v5358, 4294901760
        %5360 = vmatpush1.msra.mxu0 %v5359
        %5361 = vmatprep.subr.mxu0 0.0
        %v5362 = vand.u32 %v4435, 4294901760
        %v5363 = vsub.f32 %v4435, %v5362
        %v5364 = vand.u32 %v5363, 4294901760
        %5365 = vmatpush1.msra.mxu0 %v5364
        %5366 = vmatprep.subr.mxu0 0.0
        %v5367 = vand.u32 %v4434, 4294901760
        %v5368 = vsub.f32 %v4434, %v5367
        %v5369 = vand.u32 %v5368, 4294901760
        %5370 = vmatpush1.msra.mxu0 %v5369
        %5371 = vmatprep.subr.mxu0 0.0
        %v5372 = vand.u32 %v4433, 4294901760
        %v5373 = vsub.f32 %v4433, %v5372
        %v5374 = vand.u32 %v5373, 4294901760
        %5375 = vmatpush1.msra.mxu0 %v5374
        %5376 = vmatprep.subr.mxu0 0.0
        %v5377 = vand.u32 %v4432, 4294901760
        %v5378 = vsub.f32 %v4432, %v5377
        %v5379 = vand.u32 %v5378, 4294901760
        %5380 = vmatpush1.msra.mxu0 %v5379
        %5381 = vmatprep.subr.mxu0 0.0
        %v5382 = vand.u32 %v4431, 4294901760
        %v5383 = vsub.f32 %v4431, %v5382
        %v5384 = vand.u32 %v5383, 4294901760
        %5385 = vmatpush1.msra.mxu0 %v5384
        %5386 = vmatprep.subr.mxu0 0.0
        %v5387 = vand.u32 %v4430, 4294901760
        %v5388 = vsub.f32 %v4430, %v5387
        %v5389 = vand.u32 %v5388, 4294901760
        %5390 = vmatpush1.msra.mxu0 %v5389
        %5391 = vmatprep.subr.mxu0 0.0
        %v5392 = vand.u32 %v4429, 4294901760
        %v5393 = vsub.f32 %v4429, %v5392
        %v5394 = vand.u32 %v5393, 4294901760
        %5395 = vmatpush1.msra.mxu0 %v5394
        %5396 = vmatprep.subr.mxu0 0.0
        %v5397 = vand.u32 %v4428, 4294901760
        %v5398 = vsub.f32 %v4428, %v5397
        %v5399 = vand.u32 %v5398, 4294901760
        %5400 = vmatpush1.msra.mxu0 %v5399
        %5401 = vmatprep.subr.mxu0 0.0
        %v5402 = vand.u32 %v4427, 4294901760
        %v5403 = vsub.f32 %v4427, %v5402
        %v5404 = vand.u32 %v5403, 4294901760
        %5405 = vmatpush1.msra.mxu0 %v5404
        %5406 = vmatprep.subr.mxu0 0.0
        %v5407 = vand.u32 %v4426, 4294901760
        %v5408 = vsub.f32 %v4426, %v5407
        %v5409 = vand.u32 %v5408, 4294901760
        %5410 = vmatpush1.msra.mxu0 %v5409
        %5411 = vmatprep.subr.mxu0 0.0
        %v5412 = vand.u32 %v4425, 4294901760
        %v5413 = vsub.f32 %v4425, %v5412
        %v5414 = vand.u32 %v5413, 4294901760
        %5415 = vmatpush1.msra.mxu0 %v5414
        %5416 = vmatprep.subr.mxu0 0.0
        %v5417 = vand.u32 %v4424, 4294901760
        %v5418 = vsub.f32 %v4424, %v5417
        %v5419 = vand.u32 %v5418, 4294901760
        %5420 = vmatpush1.msra.mxu0 %v5419
        %5421 = vmatprep.subr.mxu0 0.0
        %v5422 = vand.u32 %v4423, 4294901760
        %v5423 = vsub.f32 %v4423, %v5422
        %v5424 = vand.u32 %v5423, 4294901760
        %5425 = vmatpush1.msra.mxu0 %v5424
        %5426 = vmatprep.subr.mxu0 0.0
        %5427 = vmatpush2.msra.mxu0 0.0
        %5428 = vmatprep.subr.mxu0 0.0
        %5429 = vmatpush2.msra.mxu0 0.0
        %5430 = vmatprep.subr.mxu0 0.0
        %5431 = vmatpush2.msra.mxu0 0.0
        %5432 = vmatprep.subr.mxu0 0.0
        %5433 = vmatpush2.msra.mxu0 0.0
        %5434 = vmatprep.subr.mxu0 0.0
        %5435 = vmatpush2.msra.mxu0 0.0
        %5436 = vmatprep.subr.mxu0 0.0
        %5437 = vmatpush2.msra.mxu0 0.0
        %5438 = vmatprep.subr.mxu0 0.0
        %5439 = vmatpush2.msra.mxu0 0.0
        %5440 = vmatprep.subr.mxu0 0.0
        %5441 = vmatpush2.msra.mxu0 0.0
        %5442 = vmatprep.subr.mxu0 0.0
        %5443 = vmatpush2.msra.mxu0 0.0
        %5444 = vmatprep.subr.mxu0 0.0
        %5445 = vmatpush2.msra.mxu0 0.0
        %5446 = vmatprep.subr.mxu0 0.0
        %5447 = vmatpush2.msra.mxu0 0.0
        %5448 = vmatprep.subr.mxu0 0.0
        %5449 = vmatpush2.msra.mxu0 0.0
        %5450 = vmatprep.subr.mxu0 0.0
        %5451 = vmatpush2.msra.mxu0 0.0
        %5452 = vmatprep.subr.mxu0 0.0
        %5453 = vmatpush2.msra.mxu0 0.0
        %5454 = vmatprep.subr.mxu0 0.0
        %5455 = vmatpush2.msra.mxu0 0.0
        %5456 = vmatprep.subr.mxu0 0.0
        %5457 = vmatpush2.msra.mxu0 0.0
        %5458 = vmatprep.mubr.f32.mxu0 0.0
        %v5459 = vand.u32 %v4407, 4294901760
        %5460 = vmatmul.mubr.f32.gmra.mxu0 %v5459
        %v5461 = vpop.f32.mrf.mxu0
        %v5462 = vadd.f32 %v5223, %v5461
        %v5463 = vpop.f32.mrf.mxu0
        %5464 = vmatprep.mubr.f32.mxu0 0.0
        %v5465 = vand.u32 %v4408, 4294901760
        %5466 = vmatmul.mubr.f32.gmra.mxu0 %v5465
        %v5467 = vpop.f32.mrf.mxu0
        %v5468 = vadd.f32 %v5231, %v5467
        %v5469 = vpop.f32.mrf.mxu0
        %5470 = vmatprep.mubr.f32.mxu0 0.0
        %v5471 = vand.u32 %v4409, 4294901760
        %5472 = vmatmul.mubr.f32.gmra.mxu0 %v5471
        %v5473 = vpop.f32.mrf.mxu0
        %v5474 = vadd.f32 %v5239, %v5473
        %v5475 = vpop.f32.mrf.mxu0
        %5476 = vmatprep.mubr.f32.mxu0 0.0
        %v5477 = vand.u32 %v4410, 4294901760
        %5478 = vmatmul.mubr.f32.gmra.mxu0 %v5477
        %v5479 = vpop.f32.mrf.mxu0
        %v5480 = vadd.f32 %v5247, %v5479
        %v5481 = vpop.f32.mrf.mxu0
        %5482 = vmatprep.mubr.f32.mxu0 0.0
        %v5483 = vand.u32 %v4411, 4294901760
        %5484 = vmatmul.mubr.f32.gmra.mxu0 %v5483
        %v5485 = vpop.f32.mrf.mxu0
        %v5486 = vadd.f32 %v5255, %v5485
        %v5487 = vpop.f32.mrf.mxu0
        %5488 = vmatprep.mubr.f32.mxu0 0.0
        %v5489 = vand.u32 %v4412, 4294901760
        %5490 = vmatmul.mubr.f32.gmra.mxu0 %v5489
        %v5491 = vpop.f32.mrf.mxu0
        %v5492 = vadd.f32 %v5263, %v5491
        %v5493 = vpop.f32.mrf.mxu0
        %5494 = vmatprep.mubr.f32.mxu0 0.0
        %v5495 = vand.u32 %v4413, 4294901760
        %5496 = vmatmul.mubr.f32.gmra.mxu0 %v5495
        %v5497 = vpop.f32.mrf.mxu0
        %v5498 = vadd.f32 %v5271, %v5497
        %v5499 = vpop.f32.mrf.mxu0
        %5500 = vmatprep.mubr.f32.mxu0 0.0
        %v5501 = vand.u32 %v4414, 4294901760
        %5502 = vmatmul.mubr.f32.gmra.mxu0 %v5501
        %v5503 = vpop.f32.mrf.mxu0
        %v5504 = vadd.f32 %v5279, %v5503
        %v5505 = vpop.f32.mrf.mxu0
        %5506 = vmatprep.mubr.f32.mxu0 0.0
        %v5507 = vand.u32 %v4415, 4294901760
        %5508 = vmatmul.mubr.f32.gmra.mxu0 %v5507
        %v5509 = vpop.f32.mrf.mxu0
        %v5510 = vadd.f32 %v5287, %v5509
        %v5511 = vpop.f32.mrf.mxu0
        %5512 = vmatprep.mubr.f32.mxu0 0.0
        %v5513 = vand.u32 %v4416, 4294901760
        %5514 = vmatmul.mubr.f32.gmra.mxu0 %v5513
        %v5515 = vpop.f32.mrf.mxu0
        %v5516 = vadd.f32 %v5295, %v5515
        %v5517 = vpop.f32.mrf.mxu0
        %5518 = vmatprep.mubr.f32.mxu0 0.0
        %v5519 = vand.u32 %v4417, 4294901760
        %5520 = vmatmul.mubr.f32.gmra.mxu0 %v5519
        %v5521 = vpop.f32.mrf.mxu0
        %v5522 = vadd.f32 %v5303, %v5521
        %v5523 = vpop.f32.mrf.mxu0
        %5524 = vmatprep.mubr.f32.mxu0 0.0
        %v5525 = vand.u32 %v4418, 4294901760
        %5526 = vmatmul.mubr.f32.gmra.mxu0 %v5525
        %v5527 = vpop.f32.mrf.mxu0
        %v5528 = vadd.f32 %v5311, %v5527
        %v5529 = vpop.f32.mrf.mxu0
        %5530 = vmatprep.mubr.f32.mxu0 0.0
        %v5531 = vand.u32 %v4419, 4294901760
        %5532 = vmatmul.mubr.f32.gmra.mxu0 %v5531
        %v5533 = vpop.f32.mrf.mxu0
        %v5534 = vadd.f32 %v5319, %v5533
        %v5535 = vpop.f32.mrf.mxu0
        %5536 = vmatprep.mubr.f32.mxu0 0.0
        %v5537 = vand.u32 %v4420, 4294901760
        %5538 = vmatmul.mubr.f32.gmra.mxu0 %v5537
        %v5539 = vpop.f32.mrf.mxu0
        %v5540 = vadd.f32 %v5327, %v5539
        %v5541 = vpop.f32.mrf.mxu0
        %5542 = vmatprep.mubr.f32.mxu0 0.0
        %v5543 = vand.u32 %v4421, 4294901760
        %5544 = vmatmul.mubr.f32.gmra.mxu0 %v5543
        %v5545 = vpop.f32.mrf.mxu0
        %v5546 = vadd.f32 %v5335, %v5545
        %v5547 = vpop.f32.mrf.mxu0
        %5548 = vmatprep.mubr.f32.mxu0 0.0
        %v5549 = vand.u32 %v4422, 4294901760
        %5550 = vmatmul.mubr.f32.gmra.mxu0 %v5549
        %v5551 = vpop.f32.mrf.mxu0
        %v5552 = vadd.f32 %v5343, %v5551
        %v5553 = vpop.f32.mrf.mxu0
        %5554 = vdwg.mxu0
        %5555 = vmatprep.subr.mxu0 0.0
        %v5556 = vand.u32 %v4438, 4294901760
        %5557 = vmatpush1.msra.mxu0 %v5556
        %5558 = vmatprep.subr.mxu0 0.0
        %v5559 = vand.u32 %v4437, 4294901760
        %5560 = vmatpush1.msra.mxu0 %v5559
        %5561 = vmatprep.subr.mxu0 0.0
        %v5562 = vand.u32 %v4436, 4294901760
        %5563 = vmatpush1.msra.mxu0 %v5562
        %5564 = vmatprep.subr.mxu0 0.0
        %v5565 = vand.u32 %v4435, 4294901760
        %5566 = vmatpush1.msra.mxu0 %v5565
        %5567 = vmatprep.subr.mxu0 0.0
        %v5568 = vand.u32 %v4434, 4294901760
        %5569 = vmatpush1.msra.mxu0 %v5568
        %5570 = vmatprep.subr.mxu0 0.0
        %v5571 = vand.u32 %v4433, 4294901760
        %5572 = vmatpush1.msra.mxu0 %v5571
        %5573 = vmatprep.subr.mxu0 0.0
        %v5574 = vand.u32 %v4432, 4294901760
        %5575 = vmatpush1.msra.mxu0 %v5574
        %5576 = vmatprep.subr.mxu0 0.0
        %v5577 = vand.u32 %v4431, 4294901760
        %5578 = vmatpush1.msra.mxu0 %v5577
        %5579 = vmatprep.subr.mxu0 0.0
        %v5580 = vand.u32 %v4430, 4294901760
        %5581 = vmatpush1.msra.mxu0 %v5580
        %5582 = vmatprep.subr.mxu0 0.0
        %v5583 = vand.u32 %v4429, 4294901760
        %5584 = vmatpush1.msra.mxu0 %v5583
        %5585 = vmatprep.subr.mxu0 0.0
        %v5586 = vand.u32 %v4428, 4294901760
        %5587 = vmatpush1.msra.mxu0 %v5586
        %5588 = vmatprep.subr.mxu0 0.0
        %v5589 = vand.u32 %v4427, 4294901760
        %5590 = vmatpush1.msra.mxu0 %v5589
        %5591 = vmatprep.subr.mxu0 0.0
        %v5592 = vand.u32 %v4426, 4294901760
        %5593 = vmatpush1.msra.mxu0 %v5592
        %5594 = vmatprep.subr.mxu0 0.0
        %v5595 = vand.u32 %v4425, 4294901760
        %5596 = vmatpush1.msra.mxu0 %v5595
        %5597 = vmatprep.subr.mxu0 0.0
        %v5598 = vand.u32 %v4424, 4294901760
        %5599 = vmatpush1.msra.mxu0 %v5598
        %5600 = vmatprep.subr.mxu0 0.0
        %v5601 = vand.u32 %v4423, 4294901760
        %5602 = vmatpush1.msra.mxu0 %v5601
        %5603 = vmatprep.subr.mxu0 0.0
        %5604 = vmatpush2.msra.mxu0 0.0
        %5605 = vmatprep.subr.mxu0 0.0
        %5606 = vmatpush2.msra.mxu0 0.0
        %5607 = vmatprep.subr.mxu0 0.0
        %5608 = vmatpush2.msra.mxu0 0.0
        %5609 = vmatprep.subr.mxu0 0.0
        %5610 = vmatpush2.msra.mxu0 0.0
        %5611 = vmatprep.subr.mxu0 0.0
        %5612 = vmatpush2.msra.mxu0 0.0
        %5613 = vmatprep.subr.mxu0 0.0
        %5614 = vmatpush2.msra.mxu0 0.0
        %5615 = vmatprep.subr.mxu0 0.0
        %5616 = vmatpush2.msra.mxu0 0.0
        %5617 = vmatprep.subr.mxu0 0.0
        %5618 = vmatpush2.msra.mxu0 0.0
        %5619 = vmatprep.subr.mxu0 0.0
        %5620 = vmatpush2.msra.mxu0 0.0
        %5621 = vmatprep.subr.mxu0 0.0
        %5622 = vmatpush2.msra.mxu0 0.0
        %5623 = vmatprep.subr.mxu0 0.0
        %5624 = vmatpush2.msra.mxu0 0.0
        %5625 = vmatprep.subr.mxu0 0.0
        %5626 = vmatpush2.msra.mxu0 0.0
        %5627 = vmatprep.subr.mxu0 0.0
        %5628 = vmatpush2.msra.mxu0 0.0
        %5629 = vmatprep.subr.mxu0 0.0
        %5630 = vmatpush2.msra.mxu0 0.0
        %5631 = vmatprep.subr.mxu0 0.0
        %5632 = vmatpush2.msra.mxu0 0.0
        %5633 = vmatprep.subr.mxu0 0.0
        %5634 = vmatpush2.msra.mxu0 0.0
        %5635 = vmatprep.mubr.f32.mxu0 0.0
        %v5636 = vand.u32 %v4407, 4294901760
        %5637 = vmatmul.mubr.f32.gmra.mxu0 %v5636
        %v5638 = vpop.f32.mrf.mxu0
        %v5639 = vadd.f32 %v5462, %v5638
        %v5640 = vpop.f32.mrf.mxu0
        %5641 = vmatprep.mubr.f32.mxu0 0.0
        %v5642 = vand.u32 %v4408, 4294901760
        %5643 = vmatmul.mubr.f32.gmra.mxu0 %v5642
        %v5644 = vpop.f32.mrf.mxu0
        %v5645 = vadd.f32 %v5468, %v5644
        %v5646 = vpop.f32.mrf.mxu0
        %5647 = vmatprep.mubr.f32.mxu0 0.0
        %v5648 = vand.u32 %v4409, 4294901760
        %5649 = vmatmul.mubr.f32.gmra.mxu0 %v5648
        %v5650 = vpop.f32.mrf.mxu0
        %v5651 = vadd.f32 %v5474, %v5650
        %v5652 = vpop.f32.mrf.mxu0
        %5653 = vmatprep.mubr.f32.mxu0 0.0
        %v5654 = vand.u32 %v4410, 4294901760
        %5655 = vmatmul.mubr.f32.gmra.mxu0 %v5654
        %v5656 = vpop.f32.mrf.mxu0
        %v5657 = vadd.f32 %v5480, %v5656
        %v5658 = vpop.f32.mrf.mxu0
        %5659 = vmatprep.mubr.f32.mxu0 0.0
        %v5660 = vand.u32 %v4411, 4294901760
        %5661 = vmatmul.mubr.f32.gmra.mxu0 %v5660
        %v5662 = vpop.f32.mrf.mxu0
        %v5663 = vadd.f32 %v5486, %v5662
        %v5664 = vpop.f32.mrf.mxu0
        %5665 = vmatprep.mubr.f32.mxu0 0.0
        %v5666 = vand.u32 %v4412, 4294901760
        %5667 = vmatmul.mubr.f32.gmra.mxu0 %v5666
        %v5668 = vpop.f32.mrf.mxu0
        %v5669 = vadd.f32 %v5492, %v5668
        %v5670 = vpop.f32.mrf.mxu0
        %5671 = vmatprep.mubr.f32.mxu0 0.0
        %v5672 = vand.u32 %v4413, 4294901760
        %5673 = vmatmul.mubr.f32.gmra.mxu0 %v5672
        %v5674 = vpop.f32.mrf.mxu0
        %v5675 = vadd.f32 %v5498, %v5674
        %v5676 = vpop.f32.mrf.mxu0
        %5677 = vmatprep.mubr.f32.mxu0 0.0
        %v5678 = vand.u32 %v4414, 4294901760
        %5679 = vmatmul.mubr.f32.gmra.mxu0 %v5678
        %v5680 = vpop.f32.mrf.mxu0
        %v5681 = vadd.f32 %v5504, %v5680
        %v5682 = vpop.f32.mrf.mxu0
        %5683 = vmatprep.mubr.f32.mxu0 0.0
        %v5684 = vand.u32 %v4415, 4294901760
        %5685 = vmatmul.mubr.f32.gmra.mxu0 %v5684
        %v5686 = vpop.f32.mrf.mxu0
        %v5687 = vadd.f32 %v5510, %v5686
        %v5688 = vpop.f32.mrf.mxu0
        %5689 = vmatprep.mubr.f32.mxu0 0.0
        %v5690 = vand.u32 %v4416, 4294901760
        %5691 = vmatmul.mubr.f32.gmra.mxu0 %v5690
        %v5692 = vpop.f32.mrf.mxu0
        %v5693 = vadd.f32 %v5516, %v5692
        %v5694 = vpop.f32.mrf.mxu0
        %5695 = vmatprep.mubr.f32.mxu0 0.0
        %v5696 = vand.u32 %v4417, 4294901760
        %5697 = vmatmul.mubr.f32.gmra.mxu0 %v5696
        %v5698 = vpop.f32.mrf.mxu0
        %v5699 = vadd.f32 %v5522, %v5698
        %v5700 = vpop.f32.mrf.mxu0
        %5701 = vmatprep.mubr.f32.mxu0 0.0
        %v5702 = vand.u32 %v4418, 4294901760
        %5703 = vmatmul.mubr.f32.gmra.mxu0 %v5702
        %v5704 = vpop.f32.mrf.mxu0
        %v5705 = vadd.f32 %v5528, %v5704
        %v5706 = vpop.f32.mrf.mxu0
        %5707 = vmatprep.mubr.f32.mxu0 0.0
        %v5708 = vand.u32 %v4419, 4294901760
        %5709 = vmatmul.mubr.f32.gmra.mxu0 %v5708
        %v5710 = vpop.f32.mrf.mxu0
        %v5711 = vadd.f32 %v5534, %v5710
        %v5712 = vpop.f32.mrf.mxu0
        %5713 = vmatprep.mubr.f32.mxu0 0.0
        %v5714 = vand.u32 %v4420, 4294901760
        %5715 = vmatmul.mubr.f32.gmra.mxu0 %v5714
        %v5716 = vpop.f32.mrf.mxu0
        %v5717 = vadd.f32 %v5540, %v5716
        %v5718 = vpop.f32.mrf.mxu0
        %5719 = vmatprep.mubr.f32.mxu0 0.0
        %v5720 = vand.u32 %v4421, 4294901760
        %5721 = vmatmul.mubr.f32.gmra.mxu0 %v5720
        %v5722 = vpop.f32.mrf.mxu0
        %v5723 = vadd.f32 %v5546, %v5722
        %v5724 = vpop.f32.mrf.mxu0
        %5725 = vmatprep.mubr.f32.mxu0 0.0
        %v5726 = vand.u32 %v4422, 4294901760
        %5727 = vmatmul.mubr.f32.gmra.mxu0 %v5726
        %v5728 = vpop.f32.mrf.mxu0
        %v5729 = vadd.f32 %v5552, %v5728
        %v5730 = vpop.f32.mrf.mxu0
        %5731 = vdwg.mxu0
        %5732 = vst [vmem:[%s410] sm:$0xff] %v5639
        %5733 = vst [vmem:[%s410 + $0x8] sm:$0xff] %v5645
        %5734 = vst [vmem:[%s410 + $0x10] sm:$0xff] %v5651
        %5735 = vst [vmem:[%s410 + $0x18] sm:$0xff] %v5657
        %5736 = vst [vmem:[%s410 + $0x20] sm:$0xff] %v5663
        %5737 = vst [vmem:[%s410 + $0x28] sm:$0xff] %v5669
        %5738 = vst [vmem:[%s410 + $0x30] sm:$0xff] %v5675
        %5739 = vst [vmem:[%s410 + $0x38] sm:$0xff] %v5681
        %5740 = vst [vmem:[%s410 + $0x40] sm:$0xff] %v5687
        %5741 = vst [vmem:[%s410 + $0x48] sm:$0xff] %v5693
        %5742 = vst [vmem:[%s410 + $0x50] sm:$0xff] %v5699
        %5743 = vst [vmem:[%s410 + $0x58] sm:$0xff] %v5705
        %5744 = vst [vmem:[%s410 + $0x60] sm:$0xff] %v5711
        %5745 = vst [vmem:[%s410 + $0x68] sm:$0xff] %v5717
        %5746 = vst [vmem:[%s410 + $0x70] sm:$0xff] %v5723
        %5747 = vst [vmem:[%s410 + $0x78] sm:$0xff] %v5729
        %s5748 = sand.u32 %s227, 1
        %s5749 = sand.u32 %s227, 1
        %s5750 = smul.addr %s5749, 128
        %s5751 = scalar_lea.vmem [#allocation10], %s5750
        // Predicated region
        $region77: #{mlp_forward.1} parent=55 // pred_check
          %p5752 = pneg %p237
        $region78: #{mlp_forward.1} parent=55 // pred_check_branch
          %5754 = sbr.rel (%p5752) target = $region80
        $region79: #{mlp_forward.1} parent=55 // pred_region
          %s5755 = smul.u32 16, %s25
          %s5756 = ssub.s32 25, %s5755
          %p5757 = scmp.lt.s32.totalorder %s5756, 16
          %s5758 = scalar_select %p5757, %s5756, 16
          %s5759 = smul.u32 128, %s5758
          %p5760 = scmp.ne.s32.totalorder 0, %s5759
          %s5761 = smul.addr %s5755, 8
          %s5762 = scalar_lea.vmem %s9, %s5761
          // Predicated region
          $region81: #{mlp_forward.1} parent=79 // pred_check
            %p5763 = pneg %p5760
          $region82: #{mlp_forward.1} parent=79 // pred_check_branch
            %5765 = sbr.rel (%p5763) target = $region84
          $region83: #{mlp_forward.1} parent=79 // pred_region
            // Predicated region
            $region85: #{mlp_forward.1} parent=83 // pred_check
              _
            $region86: #{mlp_forward.1} parent=83 // pred_check_branch
              %5767 = sbr.rel (0) target = $region88
            $region87: #{mlp_forward.1} parent=83 // pred_region
              // Predicated region
              $region107: #{mlp_forward.1} parent=87 // pred_check
                _
              $region108: #{mlp_forward.1} parent=87 // pred_check_branch
                %5847 = sbr.rel (0) target = $region110
              $region109: #{mlp_forward.1} parent=87 // pred_region
                %s5848 = sshrl.u32 %s5758, 4
                // While loop
                $region111: #{mlp_forward.1} parent=109 // loop_pre_header
                  _
                $region112: #{mlp_forward.1} parent=109 // loop_header
                  %s5850 = sphi 0, %s5852
                  %p5851 = scmp.ge.s32.totalorder %s5850, %s5848
                  %s5855 = sphi 0, %s5892
                  %s5856 = sphi %s5751, %s5895
                  %s5857 = sphi %s5762, %s5896
                $region113: #{mlp_forward.1} parent=109 // loop_header_branch
                  %5854 = sbr.rel (%p5851) target = $region117
                $region114: #{mlp_forward.1} parent=109 // loop_body
                  %v5858 = vld [vmem:[%s5856] sm:$0xff]
                  %5859 = vst [vmem:[%s5857] sm:$0xff] %v5858
                  %v5860 = vld [vmem:[%s5856 + $0x8] sm:$0xff]
                  %5861 = vst [vmem:[%s5857 + $0x8] sm:$0xff] %v5860
                  %v5862 = vld [vmem:[%s5856 + $0x10] sm:$0xff]
                  %5863 = vst [vmem:[%s5857 + $0x10] sm:$0xff] %v5862
                  %v5864 = vld [vmem:[%s5856 + $0x18] sm:$0xff]
                  %5865 = vst [vmem:[%s5857 + $0x18] sm:$0xff] %v5864
                  %v5866 = vld [vmem:[%s5856 + $0x20] sm:$0xff]
                  %5867 = vst [vmem:[%s5857 + $0x20] sm:$0xff] %v5866
                  %v5868 = vld [vmem:[%s5856 + $0x28] sm:$0xff]
                  %5869 = vst [vmem:[%s5857 + $0x28] sm:$0xff] %v5868
                  %v5870 = vld [vmem:[%s5856 + $0x30] sm:$0xff]
                  %5871 = vst [vmem:[%s5857 + $0x30] sm:$0xff] %v5870
                  %v5872 = vld [vmem:[%s5856 + $0x38] sm:$0xff]
                  %5873 = vst [vmem:[%s5857 + $0x38] sm:$0xff] %v5872
                  %v5874 = vld [vmem:[%s5856 + $0x40] sm:$0xff]
                  %5875 = vst [vmem:[%s5857 + $0x40] sm:$0xff] %v5874
                  %v5876 = vld [vmem:[%s5856 + $0x48] sm:$0xff]
                  %5877 = vst [vmem:[%s5857 + $0x48] sm:$0xff] %v5876
                  %v5878 = vld [vmem:[%s5856 + $0x50] sm:$0xff]
                  %5879 = vst [vmem:[%s5857 + $0x50] sm:$0xff] %v5878
                  %v5880 = vld [vmem:[%s5856 + $0x58] sm:$0xff]
                  %5881 = vst [vmem:[%s5857 + $0x58] sm:$0xff] %v5880
                  %v5882 = vld [vmem:[%s5856 + $0x60] sm:$0xff]
                  %5883 = vst [vmem:[%s5857 + $0x60] sm:$0xff] %v5882
                  %v5884 = vld [vmem:[%s5856 + $0x68] sm:$0xff]
                  %5885 = vst [vmem:[%s5857 + $0x68] sm:$0xff] %v5884
                  %v5886 = vld [vmem:[%s5856 + $0x70] sm:$0xff]
                  %5887 = vst [vmem:[%s5857 + $0x70] sm:$0xff] %v5886
                  %v5888 = vld [vmem:[%s5856 + $0x78] sm:$0xff]
                  %5889 = vst [vmem:[%s5857 + $0x78] sm:$0xff] %v5888
                  %s5890 = sadd.s32 1, %s5855
                  %p5891 = scmp.ge.s32.totalorder %s5890, %s5848
                  %s5892 = scalar_select %p5891, 0, %s5890
                  %s5893 = smul.u32 %s5892, 128
                  %s5894 = smul.u32 %s5892, 128
                  %s5895 = scalar_lea.vmem %s5751, %s5893 [#allocation10]
                  %s5896 = scalar_lea.vmem %s5762, %s5894
                $region115: #{mlp_forward.1} parent=109 // loop_footer
                  %s5852 = sadd.s32 %s5850, 1
                $region116: #{mlp_forward.1} parent=109 // loop_footer_branch
                  %5849 = sbr.rel target = $region112
                $region117: #{mlp_forward.1} parent=109 // loop_exit
                  _
                %s5897 = sshrl.u32 %s5758, 4
                %s5898 = sand.u32 %s5758, 15
                %s5899 = smul.u32 %s5897, 16
                %s5900 = smul.u32 8, %s5899
                %s5901 = scalar_lea.vmem %s5751, %s5900 [#allocation10]
                %s5902 = smul.u32 8, %s5899
                %s5903 = scalar_lea.vmem %s5762, %s5902
                // While loop
                $region118: #{mlp_forward.1} parent=109 // loop_pre_header
                  _
                $region119: #{mlp_forward.1} parent=109 // loop_header
                  %s5905 = sphi 0, %s5907
                  %p5906 = scmp.ge.s32.totalorder %s5905, %s5898
                  %s5910 = sphi 0, %s5917
                  %s5911 = sphi %s5901, %s5920
                  %s5912 = sphi %s5903, %s5921
                $region120: #{mlp_forward.1} parent=109 // loop_header_branch
                  %5909 = sbr.rel (%p5906) target = $region124
                $region121: #{mlp_forward.1} parent=109 // loop_body
                  %v5913 = vld [vmem:[%s5911] sm:$0xff]
                  %5914 = vst [vmem:[%s5912] sm:$0xff] %v5913
                  %s5915 = sadd.s32 1, %s5910
                  %p5916 = scmp.ge.s32.totalorder %s5915, %s5898
                  %s5917 = scalar_select %p5916, 0, %s5915
                  %s5918 = smul.u32 %s5917, 8
                  %s5919 = smul.u32 %s5917, 8
                  %s5920 = scalar_lea.vmem %s5901, %s5918 [#allocation10]
                  %s5921 = scalar_lea.vmem %s5903, %s5919
                $region122: #{mlp_forward.1} parent=109 // loop_footer
                  %s5907 = sadd.s32 %s5905, 1
                $region123: #{mlp_forward.1} parent=109 // loop_footer_branch
                  %5904 = sbr.rel target = $region119
                $region124: #{mlp_forward.1} parent=109 // loop_exit
                  _
              $region110: #{mlp_forward.1} parent=87 // pred_fallthru
                _
              // Predicated region
              $region125: #{mlp_forward.1} parent=87 // pred_check
                _
              $region126: #{mlp_forward.1} parent=87 // pred_check_branch
                %5923 = sbr.rel target = $region128
              $region127: #{mlp_forward.1} parent=87 // pred_region
                _
              $region128: #{mlp_forward.1} parent=87 // pred_fallthru
                _
            $region88: #{mlp_forward.1} parent=83 // pred_fallthru
              _
            // Predicated region
            $region89: #{mlp_forward.1} parent=83 // pred_check
              _
            $region90: #{mlp_forward.1} parent=83 // pred_check_branch
              %5769 = sbr.rel target = $region92
            $region91: #{mlp_forward.1} parent=83 // pred_region
              %s5771 = ssub.s32 256, 1
              %s5772 = sshrl.u32 %s5758, 4
              // While loop
              $region93: #{mlp_forward.1} parent=91 // loop_pre_header
                _
              $region94: #{mlp_forward.1} parent=91 // loop_header
                %s5774 = sphi 0, %s5776
                %p5775 = scmp.ge.s32.totalorder %s5774, %s5772
                %s5779 = sphi 0, %s5816
                %s5780 = sphi %s5751, %s5819
                %s5781 = sphi %s5762, %s5820
              $region95: #{mlp_forward.1} parent=91 // loop_header_branch
                %5778 = sbr.rel (%p5775) target = $region99
              $region96: #{mlp_forward.1} parent=91 // loop_body
                %v5782 = vld [vmem:[%s5780] sm:%s5771]
                %5783 = vst [vmem:[%s5781] sm:%s5771] %v5782
                %v5784 = vld [vmem:[%s5780 + $0x8] sm:%s5771]
                %5785 = vst [vmem:[%s5781 + $0x8] sm:%s5771] %v5784
                %v5786 = vld [vmem:[%s5780 + $0x10] sm:%s5771]
                %5787 = vst [vmem:[%s5781 + $0x10] sm:%s5771] %v5786
                %v5788 = vld [vmem:[%s5780 + $0x18] sm:%s5771]
                %5789 = vst [vmem:[%s5781 + $0x18] sm:%s5771] %v5788
                %v5790 = vld [vmem:[%s5780 + $0x20] sm:%s5771]
                %5791 = vst [vmem:[%s5781 + $0x20] sm:%s5771] %v5790
                %v5792 = vld [vmem:[%s5780 + $0x28] sm:%s5771]
                %5793 = vst [vmem:[%s5781 + $0x28] sm:%s5771] %v5792
                %v5794 = vld [vmem:[%s5780 + $0x30] sm:%s5771]
                %5795 = vst [vmem:[%s5781 + $0x30] sm:%s5771] %v5794
                %v5796 = vld [vmem:[%s5780 + $0x38] sm:%s5771]
                %5797 = vst [vmem:[%s5781 + $0x38] sm:%s5771] %v5796
                %v5798 = vld [vmem:[%s5780 + $0x40] sm:%s5771]
                %5799 = vst [vmem:[%s5781 + $0x40] sm:%s5771] %v5798
                %v5800 = vld [vmem:[%s5780 + $0x48] sm:%s5771]
                %5801 = vst [vmem:[%s5781 + $0x48] sm:%s5771] %v5800
                %v5802 = vld [vmem:[%s5780 + $0x50] sm:%s5771]
                %5803 = vst [vmem:[%s5781 + $0x50] sm:%s5771] %v5802
                %v5804 = vld [vmem:[%s5780 + $0x58] sm:%s5771]
                %5805 = vst [vmem:[%s5781 + $0x58] sm:%s5771] %v5804
                %v5806 = vld [vmem:[%s5780 + $0x60] sm:%s5771]
                %5807 = vst [vmem:[%s5781 + $0x60] sm:%s5771] %v5806
                %v5808 = vld [vmem:[%s5780 + $0x68] sm:%s5771]
                %5809 = vst [vmem:[%s5781 + $0x68] sm:%s5771] %v5808
                %v5810 = vld [vmem:[%s5780 + $0x70] sm:%s5771]
                %5811 = vst [vmem:[%s5781 + $0x70] sm:%s5771] %v5810
                %v5812 = vld [vmem:[%s5780 + $0x78] sm:%s5771]
                %5813 = vst [vmem:[%s5781 + $0x78] sm:%s5771] %v5812
                %s5814 = sadd.s32 1, %s5779
                %p5815 = scmp.ge.s32.totalorder %s5814, %s5772
                %s5816 = scalar_select %p5815, 0, %s5814
                %s5817 = smul.u32 %s5816, 128
                %s5818 = smul.u32 %s5816, 128
                %s5819 = scalar_lea.vmem %s5751, %s5817 [#allocation10]
                %s5820 = scalar_lea.vmem %s5762, %s5818
              $region97: #{mlp_forward.1} parent=91 // loop_footer
                %s5776 = sadd.s32 %s5774, 1
              $region98: #{mlp_forward.1} parent=91 // loop_footer_branch
                %5773 = sbr.rel target = $region94
              $region99: #{mlp_forward.1} parent=91 // loop_exit
                _
              %s5821 = sshrl.u32 %s5758, 4
              %s5822 = sand.u32 %s5758, 15
              %s5823 = smul.u32 %s5821, 16
              %s5824 = smul.u32 8, %s5823
              %s5825 = scalar_lea.vmem %s5751, %s5824 [#allocation10]
              %s5826 = smul.u32 8, %s5823
              %s5827 = scalar_lea.vmem %s5762, %s5826
              // While loop
              $region100: #{mlp_forward.1} parent=91 // loop_pre_header
                _
              $region101: #{mlp_forward.1} parent=91 // loop_header
                %s5829 = sphi 0, %s5831
                %p5830 = scmp.ge.s32.totalorder %s5829, %s5822
                %s5834 = sphi 0, %s5841
                %s5835 = sphi %s5825, %s5844
                %s5836 = sphi %s5827, %s5845
              $region102: #{mlp_forward.1} parent=91 // loop_header_branch
                %5833 = sbr.rel (%p5830) target = $region106
              $region103: #{mlp_forward.1} parent=91 // loop_body
                %v5837 = vld [vmem:[%s5835] sm:%s5771]
                %5838 = vst [vmem:[%s5836] sm:%s5771] %v5837
                %s5839 = sadd.s32 1, %s5834
                %p5840 = scmp.ge.s32.totalorder %s5839, %s5822
                %s5841 = scalar_select %p5840, 0, %s5839
                %s5842 = smul.u32 %s5841, 8
                %s5843 = smul.u32 %s5841, 8
                %s5844 = scalar_lea.vmem %s5825, %s5842 [#allocation10]
                %s5845 = scalar_lea.vmem %s5827, %s5843
              $region104: #{mlp_forward.1} parent=91 // loop_footer
                %s5831 = sadd.s32 %s5829, 1
              $region105: #{mlp_forward.1} parent=91 // loop_footer_branch
                %5828 = sbr.rel target = $region101
              $region106: #{mlp_forward.1} parent=91 // loop_exit
                _
            $region92: #{mlp_forward.1} parent=83 // pred_fallthru
              _
          $region84: #{mlp_forward.1} parent=79 // pred_fallthru
            _
          %5924 = vnop
        $region80: #{mlp_forward.1} parent=55 // pred_fallthru
          _
      $region56: #{mlp_forward.1} parent=5 // pred_fallthru
        _
      %p5925 = scmp.le.s32.totalorder 2, %s20
      // Predicated region
      $region129: #{mlp_forward.1} parent=5 // pred_check
        %p5926 = pneg %p5925
      $region130: #{mlp_forward.1} parent=5 // pred_check_branch
        %5928 = sbr.rel (%p5926) target = $region132
      $region131: #{mlp_forward.1} parent=5 // pred_region
        %s5929 = ssub.s32 %s20, 2
        // Predicated region
        $region133: #{mlp_forward.1} parent=131 // pred_check
          %p5930 = pneg %p243
        $region134: #{mlp_forward.1} parent=131 // pred_check_branch
          %5932 = sbr.rel (%p5930) target = $region136
        $region135: #{mlp_forward.1} parent=131 // pred_region
          %s5933 = sand.u32 %s228, 1
          %s5934 = sand.u32 %s228, 1
          %s5935 = smul.addr %s5934, 128
          %s5936 = scalar_lea.vmem [#allocation10], %s5935
        $region136: #{mlp_forward.1} parent=131 // pred_fallthru
          _
      $region132: #{mlp_forward.1} parent=5 // pred_fallthru
        _
    $region6: #{mlp_forward.1} parent=1 // loop_footer
      %s24 = sadd.s32 1, %s20
    $region7: #{mlp_forward.1} parent=1 // loop_footer_branch
      %19 = sbr.rel target = $region3
    $region8: #{mlp_forward.1} parent=1 // loop_exit
      _
    %5937 = vsyncpa [#allocation3], 1
    %s5938 = scalar_lea.sflag [#allocation3], 1
    %5939 = vsyncpa %s5938, 1
    %5940 = vsyncpa [#allocation5], 1
    %5941 = vsyncpa [#allocation8], 1

</llo_original>
